<compile_context>
chip_gen: v5e
topology: v5e:2x2
jax: 0.10.0
libtpu: 0.0.40
codegen_flags: <defaults>
</compile_context>

<pallas_src>
import functools

import numpy as np
import jax
import jax.numpy as jnp
from jax.experimental import pallas as pl
from jax.experimental.pallas import tpu as pltpu

NEG_SLOPE = 0.01  # nn.LeakyReLU() default


def _leaky_relu(x):
    return jnp.where(x >= 0, x, NEG_SLOPE * x)


# ---------------------------------------------------------------------------
# Fused kernel: compact dense stage + selection bridge + 1x1-conv stage.
#   x_ref   : (cin, TN)           compact input, samples on the lane axis
#   sel_ref : (aa, grp, d3+cin)   0/1 per-pixel channel-selection matrices
#   weights : pre-sliced / pre-transposed / pre-cast in the wrapper
#   out_ref : (1, aa*TN)          lane-dense score tile, pixel-major per tile
# ---------------------------------------------------------------------------
def fused_kernel(x_ref, sel_ref,
                 w1_ref, b1_ref, w2_ref, b2_ref, w3a_ref, w3b_ref, b3_ref,
                 w4_ref, b4_ref, w5_ref, b5_ref,
                 w6x_ref, w6y4_ref, w6y5_ref, b6_ref,
                 out_ref, *, aa, op_dtype):
    def mm(a, b):
        # MXU matmul, f32 accumulation.
        return jnp.dot(a, b, preferred_element_type=jnp.float32)

    def narrow(v):
        # Cast an f32 activation to the MXU operand dtype (bf16 by default).
        return v.astype(op_dtype)

    # ---- dense stage (layerD1..D3): compact, samples on the lane axis ------
    x = x_ref[...]                                             # (cin, TN)
    y1 = _leaky_relu(mm(w1_ref[...], x) + b1_ref[...])         # (cm, TN) f32
    y1n = narrow(y1)
    y2 = _leaky_relu(mm(w2_ref[...], y1n) + b2_ref[...])       # (cm, TN) f32
    y2n = narrow(y2)
    # split matmul instead of cat((y1, y2)) @ w3
    y3 = mm(w3a_ref[...], y1n) + mm(w3b_ref[...], y2n) + b3_ref[...]  # (d3, TN)

    # ---- bridge: per-pixel channel gather via tiny 0/1 selection matmuls,
    #      then lay the aa pixels out along the lane axis (pixel-major;
    #      128-aligned lane concat, so no sublane relayout). ------------------
    cat_in = jnp.concatenate([narrow(y3), x], axis=0)          # (d3+cin, TN)
    pieces = [narrow(mm(sel_ref[p], cat_in)) for p in range(aa)]   # aa x (grp, TN)
    conv_in = jnp.concatenate(pieces, axis=1)                  # (grp, aa*TN)

    # ---- 1x1-conv stage (layerD4..D6) over all aa*TN pixel lanes at once ----
    y4 = _leaky_relu(mm(w4_ref[...], conv_in) + b4_ref[...])   # (cm, P)
    y4n = narrow(y4)
    y5 = _leaky_relu(mm(w5_ref[...], y4n) + b5_ref[...])       # (cm, P)
    y5n = narrow(y5)
    # TODO(synk): the three 1-row matmuls below could be merged into a single
    # (1, grp+2*cm) matmul via a VMEM scratch to save two MXU drains.
    y6 = (mm(w6x_ref[...], conv_in) + mm(w6y4_ref[...], y4n)
          + mm(w6y5_ref[...], y5n) + b6_ref[...])              # (1, P) lane-dense
    out_ref[...] = y6


# ---------------------------------------------------------------------------
# Wrapper
# ---------------------------------------------------------------------------
def output_layer_2d(layer_data, params, *, a, channels_array, channels_mid,
                    channels_extra, sample_tile=512, use_bf16=True):
    N = layer_data.shape[0]
    ca, cm, ce = channels_array, channels_mid, channels_extra
    aa = a * a
    cin = ca * aa
    d3 = ce * aa
    grp = ((ce + ca + 7) // 8) * 8          # per-pixel conv-input rows, padded to 8
    op_dtype = jnp.bfloat16 if use_bf16 else jnp.float32
    f32 = jnp.float32

    # ---- sample tile (lane width of every matmul) and grid ------------------
    TN = max(128, (int(sample_tile) // 128) * 128)
    n128 = ((N + 127) // 128) * 128
    TN = min(TN, n128)
    num_tiles = -(-N // TN)
    if num_tiles > 1 and num_tiles % 2 == 1:
        num_tiles += 1                      # even split across v7x's 2 TensorCores
    N_pad = num_tiles * TN
    P_tile = TN * aa

    # ---- compact input: (cin, N_pad), sample-in-lane, bf16 in HBM ----------
    x2d = layer_data.reshape(N, cin).astype(f32)      # torch .view(length, cin)
    if N_pad != N:
        x2d = jnp.concatenate([x2d, jnp.zeros((N_pad - N, cin), f32)], axis=0)
    x_c = x2d.T.astype(op_dtype)                      # (cin, N_pad)

    # ---- per-pixel 0/1 channel-selection matrices (tiny constant) ----------
    # row j < ce     -> yD3v channel j at pixel p   (cat_in row j*aa + p)
    # row ce + c     -> layer_array channel c at p  (cat_in row d3 + c*aa + p)
    # remaining rows -> zero padding
    sel_np = np.zeros((aa, grp, d3 + cin), np.float32)
    for p in range(aa):
        for c in range(ce):
            sel_np[p, c, c * aa + p] = 1.0
        for c in range(ca):
            sel_np[p, ce + c, d3 + c * aa + p] = 1.0
    sel = jnp.asarray(sel_np, dtype=op_dtype)

    # ---- weights: pre-transposed, pre-split, pre-cast (no in-kernel casts) --
    wd = lambda w: w.astype(op_dtype)
    w1T = wd(params["w1"].T)                    # (cm, cin)
    w2T = wd(params["w2"].T)                    # (cm, cm)
    w3aT = wd(params["w3"][:cm].T)              # (d3, cm)  -- y1 rows of w3
    w3bT = wd(params["w3"][cm:].T)              # (d3, cm)  -- y2 rows of w3
    w4T8 = wd(jnp.concatenate(
        [params["w4"].T, jnp.zeros((cm, grp - (ce + ca)), f32)], axis=1))  # (cm, grp)
    w5T = wd(params["w5"].T)                    # (cm, cm)
    w6x8 = wd(jnp.concatenate(
        [params["w6"][:ce].T, jnp.zeros((1, grp - ce), f32)], axis=1))     # (1, grp)
    w6y4T = wd(params["w6"][ce:ce + cm].T)      # (1, cm)
    w6y5T = wd(params["w6"][ce + cm:].T)        # (1, cm)
    b1T = params["b1"].T.astype(f32)            # (cm, 1)
    b2T = params["b2"].T.astype(f32)            # (cm, 1)
    b3T = params["b3"].T.astype(f32)            # (d3, 1)
    b4T = params["b4"].T.astype(f32)            # (cm, 1)
    b5T = params["b5"].T.astype(f32)            # (cm, 1)
    b6 = params["b6"].astype(f32)               # (1, 1)

    def cspec(arr):
        return pl.BlockSpec(arr.shape, lambda i, _nd=arr.ndim: (0,) * _nd)

    in_specs = [
        pl.BlockSpec((cin, TN), lambda i: (0, i)),   # compact activation stream
        cspec(sel),
        cspec(w1T), cspec(b1T), cspec(w2T), cspec(b2T),
        cspec(w3aT), cspec(w3bT), cspec(b3T),
        cspec(w4T8), cspec(b4T), cspec(w5T), cspec(b5T),
        cspec(w6x8), cspec(w6y4T), cspec(w6y5T), cspec(b6),
    ]
    out_spec = pl.BlockSpec((1, P_tile), lambda i: (0, i))   # lane-dense output

    # ---- VMEM budget derived from the actual chip (v7x has only 64 MiB/TC) --
    try:
        vmem_cap = int(pltpu.get_tpu_info().vmem_capacity_bytes)
        vmem_limit = min(vmem_cap // 2, 64 * 1024 * 1024)
    except Exception:
        vmem_limit = 32 * 1024 * 1024

    kernel = functools.partial(fused_kernel, aa=aa, op_dtype=op_dtype)

    out_flat = pl.pallas_call(
        kernel,
        out_shape=jax.ShapeDtypeStruct((1, N_pad * aa), jnp.float32),
        grid=(num_tiles,),
        in_specs=in_specs,
        out_specs=out_spec,
        compiler_params=pltpu.CompilerParams(
            dimension_semantics=("parallel",),
            vmem_limit_bytes=vmem_limit,
        ),
    )(x_c, sel, w1T, b1T, w2T, b2T, w3aT, w3bT, b3T,
      w4T8, b4T, w5T, b5T, w6x8, w6y4T, w6y5T, b6)

    # per-tile pixel-major layout -> (N, a, a); tiny XLA fix-up on the output.
    out = (out_flat.reshape(num_tiles, aa, TN)
           .transpose(0, 2, 1)
           .reshape(N_pad, aa))
    return out[:N].reshape(N, a, a)


# ---------------------------------------------------------------------------
# Pure-JAX reference (mirrors the PyTorch forward exactly)
# ---------------------------------------------------------------------------
def reference(layer_data, params, *, a, channels_array, channels_mid, channels_extra):
    N = layer_data.shape[0]
    lrl = lambda v: jnp.where(v >= 0, v, NEG_SLOPE * v)
    x = layer_data.reshape(N, -1)
    y1 = lrl(x @ params["w1"] + params["b1"])
    y2 = lrl(y1 @ params["w2"] + params["b2"])
    y3 = jnp.concatenate([y1, y2], 1) @ params["w3"] + params["b3"]
    y3v = y3.reshape(N, channels_extra, a, a)

    def conv1x1(xn, w, b):  # xn: NCHW, w: (cin, cout), b: (1, cout)
        return jnp.einsum("nchw,cd->ndhw", xn, w) + b[0][None, :, None, None]

    ycat = jnp.concatenate([y3v, layer_data], 1)
    y4 = lrl(conv1x1(ycat, params["w4"], params["b4"]))
    y5 = lrl(conv1x1(y4, params["w5"], params["b5"]))
    y6 = conv1x1(jnp.concatenate([y3v, y4, y5], 1), params["w6"], params["b6"])
    return y6.reshape(N, a, a)


# ---------------------------------------------------------------------------
# Deterministic parameter construction (shapes from the module's __init__)
# ---------------------------------------------------------------------------
def make_params(key, *, a, channels_array, channels_mid, channels_extra):
    c_in = channels_array * a * a
    d3 = channels_extra * a * a
    c4_in = channels_array + channels_extra
    c6_in = 2 * channels_mid + channels_extra
    shapes = {
        "w1": (c_in, channels_mid),          "b1": (1, channels_mid),
        "w2": (channels_mid, channels_mid),  "b2": (1, channels_mid),
        "w3": (2 * channels_mid, d3),        "b3": (1, d3),
        "w4": (c4_in, channels_mid),         "b4": (1, channels_mid),
        "w5": (channels_mid, channels_mid),  "b5": (1, channels_mid),
        "w6": (c6_in, 1),                    "b6": (1, 1),
    }
    params = {}
    for name, shape in sorted(shapes.items()):
        key, sub = jax.random.split(key)
        params[name] = 0.1 * jax.random.normal(sub, shape, dtype=jnp.float32)
    return params


if __name__ == "__main__":
    # Small, module-consistent shapes: pp.alpha=4, channels_array=4,
    # channels_mid=32, channels_extra=2, batch length=8.
    a = 4
    channels_array = 4
    channels_mid = 32
    channels_extra = 2
    length = 8

    key = jax.random.PRNGKey(0)
    k_x, k_p = jax.random.split(key)
    layer_data = jax.random.normal(
        k_x, (length, channels_array, a, a), dtype=jnp.float32
    )
    params = make_params(
        k_p, a=a, channels_array=channels_array,
        channels_mid=channels_mid, channels_extra=channels_extra,
    )

    ref = reference(
        layer_data, params, a=a, channels_array=channels_array,
        channels_mid=channels_mid, channels_extra=channels_extra,
    )

    # Exact-dtype path (f32 MXU operands): must match the reference tightly.
    out_f32 = output_layer_2d(
        layer_data, params, a=a, channels_array=channels_array,
        channels_mid=channels_mid, channels_extra=channels_extra,
        use_bf16=False,
    )
    out_f32 = jax.block_until_ready(out_f32)
    assert out_f32.shape == (length, a, a)
    assert jnp.allclose(out_f32, ref, rtol=1e-5, atol=1e-5), "f32 path mismatch"

    # Default fast path (bf16 MXU operands, f32 accumulation / elementwise).
    out = output_layer_2d(
        layer_data, params, a=a, channels_array=channels_array,
        channels_mid=channels_mid, channels_extra=channels_extra,
    )
    out = jax.block_until_ready(out)
    assert out.shape == (length, a, a)
    assert jnp.allclose(out, ref, rtol=5e-2, atol=5e-2), "bf16 path mismatch"

    print("KERNEL_OK")
</pallas_src>

<mosaic_0001>
module attributes {stable_mosaic.version = 11 : i64} {
  func.func @fused_kernel(%arg0: i32, %arg1: memref<64x128xf32, #tpu.memory_space<vmem>>, %arg2: memref<16x8x96xf32, #tpu.memory_space<vmem>>, %arg3: memref<32x64xf32, #tpu.memory_space<vmem>>, %arg4: memref<32x1xf32, #tpu.memory_space<vmem>>, %arg5: memref<32x32xf32, #tpu.memory_space<vmem>>, %arg6: memref<32x1xf32, #tpu.memory_space<vmem>>, %arg7: memref<32x32xf32, #tpu.memory_space<vmem>>, %arg8: memref<32x32xf32, #tpu.memory_space<vmem>>, %arg9: memref<32x1xf32, #tpu.memory_space<vmem>>, %arg10: memref<32x8xf32, #tpu.memory_space<vmem>>, %arg11: memref<32x1xf32, #tpu.memory_space<vmem>>, %arg12: memref<32x32xf32, #tpu.memory_space<vmem>>, %arg13: memref<32x1xf32, #tpu.memory_space<vmem>>, %arg14: memref<1x8xf32, #tpu.memory_space<vmem>>, %arg15: memref<1x32xf32, #tpu.memory_space<vmem>>, %arg16: memref<1x32xf32, #tpu.memory_space<vmem>>, %arg17: memref<1x1xf32, #tpu.memory_space<vmem>>, %arg18: memref<1x2048xf32, #tpu.memory_space<vmem>>) attributes {dimension_semantics = [#tpu.dimension_semantics<parallel>], iteration_bounds = array<i64: 1>, scalar_prefetch = 0 : i64, scratch_operands = 0 : i64, tpu.core_type = #tpu.core_type<tc>, window_params = [{transform_indices = @transform_0, window_bounds = array<i64: 64, 128>}, {pipeline_mode = #tpu.pipeline_mode<synchronous>, transform_indices = @transform_1, window_bounds = array<i64: 16, 8, 96>}, {pipeline_mode = #tpu.pipeline_mode<synchronous>, transform_indices = @transform_2, window_bounds = array<i64: 32, 64>}, {pipeline_mode = #tpu.pipeline_mode<synchronous>, transform_indices = @transform_3, window_bounds = array<i64: 32, 1>}, {pipeline_mode = #tpu.pipeline_mode<synchronous>, transform_indices = @transform_4, window_bounds = array<i64: 32, 32>}, {pipeline_mode = #tpu.pipeline_mode<synchronous>, transform_indices = @transform_5, window_bounds = array<i64: 32, 1>}, {pipeline_mode = #tpu.pipeline_mode<synchronous>, transform_indices = @transform_6, window_bounds = array<i64: 32, 32>}, {pipeline_mode = #tpu.pipeline_mode<synchronous>, transform_indices = @transform_7, window_bounds = array<i64: 32, 32>}, {pipeline_mode = #tpu.pipeline_mode<synchronous>, transform_indices = @transform_8, window_bounds = array<i64: 32, 1>}, {pipeline_mode = #tpu.pipeline_mode<synchronous>, transform_indices = @transform_9, window_bounds = array<i64: 32, 8>}, {pipeline_mode = #tpu.pipeline_mode<synchronous>, transform_indices = @transform_10, window_bounds = array<i64: 32, 1>}, {pipeline_mode = #tpu.pipeline_mode<synchronous>, transform_indices = @transform_11, window_bounds = array<i64: 32, 32>}, {pipeline_mode = #tpu.pipeline_mode<synchronous>, transform_indices = @transform_12, window_bounds = array<i64: 32, 1>}, {pipeline_mode = #tpu.pipeline_mode<synchronous>, transform_indices = @transform_13, window_bounds = array<i64: 1, 8>}, {pipeline_mode = #tpu.pipeline_mode<synchronous>, transform_indices = @transform_14, window_bounds = array<i64: 1, 32>}, {pipeline_mode = #tpu.pipeline_mode<synchronous>, transform_indices = @transform_15, window_bounds = array<i64: 1, 32>}, {pipeline_mode = #tpu.pipeline_mode<synchronous>, transform_indices = @transform_16, window_bounds = array<i64: 1, 1>}, {transform_indices = @transform_17, window_bounds = array<i64: 1, 2048>}]} {
    %c0 = arith.constant 0 : index
    %c0_0 = arith.constant 0 : index
    %0 = vector.load %arg1[%c0, %c0_0] : memref<64x128xf32, #tpu.memory_space<vmem>>, vector<64x128xf32>
    %c0_1 = arith.constant 0 : index
    %c0_2 = arith.constant 0 : index
    %1 = vector.load %arg3[%c0_1, %c0_2] : memref<32x64xf32, #tpu.memory_space<vmem>>, vector<32x64xf32>
    %cst = arith.constant dense<0.000000e+00> : vector<32x128xf32>
    %2 = tpu.matmul %1, %0, %cst {dimension_numbers = #tpu.dot_dimension_numbers<[1], [0], [0], [1], [0, 0, 1, 1], [], []>} : vector<32x64xf32>, vector<64x128xf32>, vector<32x128xf32> -> vector<32x128xf32>
    %c0_3 = arith.constant 0 : index
    %c0_4 = arith.constant 0 : index
    %3 = vector.load %arg4[%c0_3, %c0_4] : memref<32x1xf32, #tpu.memory_space<vmem>>, vector<32x1xf32>
    %4 = vector.broadcast %3 : vector<32x1xf32> to vector<32x128xf32>
    %5 = arith.addf %2, %4 : vector<32x128xf32>
    %cst_5 = arith.constant 0.000000e+00 : f32
    %6 = vector.broadcast %cst_5 : f32 to vector<32x128xf32>
    %7 = arith.cmpf oge, %5, %6 : vector<32x128xf32>
    %cst_6 = arith.constant 0.00999999977 : f32
    %8 = vector.broadcast %cst_6 : f32 to vector<32x128xf32>
    %9 = arith.mulf %8, %5 : vector<32x128xf32>
    %10 = arith.select %7, %5, %9 : vector<32x128xi1>, vector<32x128xf32>
    %c0_7 = arith.constant 0 : index
    %c0_8 = arith.constant 0 : index
    %11 = vector.load %arg5[%c0_7, %c0_8] : memref<32x32xf32, #tpu.memory_space<vmem>>, vector<32x32xf32>
    %cst_9 = arith.constant dense<0.000000e+00> : vector<32x128xf32>
    %12 = tpu.matmul %11, %10, %cst_9 {dimension_numbers = #tpu.dot_dimension_numbers<[1], [0], [0], [1], [0, 0, 1, 1], [], []>} : vector<32x32xf32>, vector<32x128xf32>, vector<32x128xf32> -> vector<32x128xf32>
    %c0_10 = arith.constant 0 : index
    %c0_11 = arith.constant 0 : index
    %13 = vector.load %arg6[%c0_10, %c0_11] : memref<32x1xf32, #tpu.memory_space<vmem>>, vector<32x1xf32>
    %14 = vector.broadcast %13 : vector<32x1xf32> to vector<32x128xf32>
    %15 = arith.addf %12, %14 : vector<32x128xf32>
    %cst_12 = arith.constant 0.000000e+00 : f32
    %16 = vector.broadcast %cst_12 : f32 to vector<32x128xf32>
    %17 = arith.cmpf oge, %15, %16 : vector<32x128xf32>
    %cst_13 = arith.constant 0.00999999977 : f32
    %18 = vector.broadcast %cst_13 : f32 to vector<32x128xf32>
    %19 = arith.mulf %18, %15 : vector<32x128xf32>
    %20 = arith.select %17, %15, %19 : vector<32x128xi1>, vector<32x128xf32>
    %c0_14 = arith.constant 0 : index
    %c0_15 = arith.constant 0 : index
    %21 = vector.load %arg7[%c0_14, %c0_15] : memref<32x32xf32, #tpu.memory_space<vmem>>, vector<32x32xf32>
    %cst_16 = arith.constant dense<0.000000e+00> : vector<32x128xf32>
    %22 = tpu.matmul %21, %10, %cst_16 {dimension_numbers = #tpu.dot_dimension_numbers<[1], [0], [0], [1], [0, 0, 1, 1], [], []>} : vector<32x32xf32>, vector<32x128xf32>, vector<32x128xf32> -> vector<32x128xf32>
    %c0_17 = arith.constant 0 : index
    %c0_18 = arith.constant 0 : index
    %23 = vector.load %arg8[%c0_17, %c0_18] : memref<32x32xf32, #tpu.memory_space<vmem>>, vector<32x32xf32>
    %cst_19 = arith.constant dense<0.000000e+00> : vector<32x128xf32>
    %24 = tpu.matmul %23, %20, %cst_19 {dimension_numbers = #tpu.dot_dimension_numbers<[1], [0], [0], [1], [0, 0, 1, 1], [], []>} : vector<32x32xf32>, vector<32x128xf32>, vector<32x128xf32> -> vector<32x128xf32>
    %25 = arith.addf %22, %24 : vector<32x128xf32>
    %c0_20 = arith.constant 0 : index
    %c0_21 = arith.constant 0 : index
    %26 = vector.load %arg9[%c0_20, %c0_21] : memref<32x1xf32, #tpu.memory_space<vmem>>, vector<32x1xf32>
    %27 = vector.broadcast %26 : vector<32x1xf32> to vector<32x128xf32>
    %28 = arith.addf %25, %27 : vector<32x128xf32>
    %29 = tpu.concatenate %28, %0 in 0 : vector<32x128xf32>, vector<64x128xf32> -> vector<96x128xf32>
    %c0_22 = arith.constant 0 : index
    %c0_23 = arith.constant 0 : index
    %c0_24 = arith.constant 0 : index
    %30 = vector.load %arg2[%c0_22, %c0_23, %c0_24] : memref<16x8x96xf32, #tpu.memory_space<vmem>>, vector<1x8x96xf32>
    %31 = vector.shape_cast %30 : vector<1x8x96xf32> to vector<8x96xf32>
    %cst_25 = arith.constant dense<0.000000e+00> : vector<8x128xf32>
    %32 = tpu.matmul %31, %29, %cst_25 {dimension_numbers = #tpu.dot_dimension_numbers<[1], [0], [0], [1], [0, 0, 1, 1], [], []>} : vector<8x96xf32>, vector<96x128xf32>, vector<8x128xf32> -> vector<8x128xf32>
    %c1 = arith.constant 1 : index
    %c0_26 = arith.constant 0 : index
    %c0_27 = arith.constant 0 : index
    %33 = vector.load %arg2[%c1, %c0_26, %c0_27] : memref<16x8x96xf32, #tpu.memory_space<vmem>>, vector<1x8x96xf32>
    %34 = vector.shape_cast %33 : vector<1x8x96xf32> to vector<8x96xf32>
    %cst_28 = arith.constant dense<0.000000e+00> : vector<8x128xf32>
    %35 = tpu.matmul %34, %29, %cst_28 {dimension_numbers = #tpu.dot_dimension_numbers<[1], [0], [0], [1], [0, 0, 1, 1], [], []>} : vector<8x96xf32>, vector<96x128xf32>, vector<8x128xf32> -> vector<8x128xf32>
    %c2 = arith.constant 2 : index
    %c0_29 = arith.constant 0 : index
    %c0_30 = arith.constant 0 : index
    %36 = vector.load %arg2[%c2, %c0_29, %c0_30] : memref<16x8x96xf32, #tpu.memory_space<vmem>>, vector<1x8x96xf32>
    %37 = vector.shape_cast %36 : vector<1x8x96xf32> to vector<8x96xf32>
    %cst_31 = arith.constant dense<0.000000e+00> : vector<8x128xf32>
    %38 = tpu.matmul %37, %29, %cst_31 {dimension_numbers = #tpu.dot_dimension_numbers<[1], [0], [0], [1], [0, 0, 1, 1], [], []>} : vector<8x96xf32>, vector<96x128xf32>, vector<8x128xf32> -> vector<8x128xf32>
    %c3 = arith.constant 3 : index
    %c0_32 = arith.constant 0 : index
    %c0_33 = arith.constant 0 : index
    %39 = vector.load %arg2[%c3, %c0_32, %c0_33] : memref<16x8x96xf32, #tpu.memory_space<vmem>>, vector<1x8x96xf32>
    %40 = vector.shape_cast %39 : vector<1x8x96xf32> to vector<8x96xf32>
    %cst_34 = arith.constant dense<0.000000e+00> : vector<8x128xf32>
    %41 = tpu.matmul %40, %29, %cst_34 {dimension_numbers = #tpu.dot_dimension_numbers<[1], [0], [0], [1], [0, 0, 1, 1], [], []>} : vector<8x96xf32>, vector<96x128xf32>, vector<8x128xf32> -> vector<8x128xf32>
    %c4 = arith.constant 4 : index
    %c0_35 = arith.constant 0 : index
    %c0_36 = arith.constant 0 : index
    %42 = vector.load %arg2[%c4, %c0_35, %c0_36] : memref<16x8x96xf32, #tpu.memory_space<vmem>>, vector<1x8x96xf32>
    %43 = vector.shape_cast %42 : vector<1x8x96xf32> to vector<8x96xf32>
    %cst_37 = arith.constant dense<0.000000e+00> : vector<8x128xf32>
    %44 = tpu.matmul %43, %29, %cst_37 {dimension_numbers = #tpu.dot_dimension_numbers<[1], [0], [0], [1], [0, 0, 1, 1], [], []>} : vector<8x96xf32>, vector<96x128xf32>, vector<8x128xf32> -> vector<8x128xf32>
    %c5 = arith.constant 5 : index
    %c0_38 = arith.constant 0 : index
    %c0_39 = arith.constant 0 : index
    %45 = vector.load %arg2[%c5, %c0_38, %c0_39] : memref<16x8x96xf32, #tpu.memory_space<vmem>>, vector<1x8x96xf32>
    %46 = vector.shape_cast %45 : vector<1x8x96xf32> to vector<8x96xf32>
    %cst_40 = arith.constant dense<0.000000e+00> : vector<8x128xf32>
    %47 = tpu.matmul %46, %29, %cst_40 {dimension_numbers = #tpu.dot_dimension_numbers<[1], [0], [0], [1], [0, 0, 1, 1], [], []>} : vector<8x96xf32>, vector<96x128xf32>, vector<8x128xf32> -> vector<8x128xf32>
    %c6 = arith.constant 6 : index
    %c0_41 = arith.constant 0 : index
    %c0_42 = arith.constant 0 : index
    %48 = vector.load %arg2[%c6, %c0_41, %c0_42] : memref<16x8x96xf32, #tpu.memory_space<vmem>>, vector<1x8x96xf32>
    %49 = vector.shape_cast %48 : vector<1x8x96xf32> to vector<8x96xf32>
    %cst_43 = arith.constant dense<0.000000e+00> : vector<8x128xf32>
    %50 = tpu.matmul %49, %29, %cst_43 {dimension_numbers = #tpu.dot_dimension_numbers<[1], [0], [0], [1], [0, 0, 1, 1], [], []>} : vector<8x96xf32>, vector<96x128xf32>, vector<8x128xf32> -> vector<8x128xf32>
    %c7 = arith.constant 7 : index
    %c0_44 = arith.constant 0 : index
    %c0_45 = arith.constant 0 : index
    %51 = vector.load %arg2[%c7, %c0_44, %c0_45] : memref<16x8x96xf32, #tpu.memory_space<vmem>>, vector<1x8x96xf32>
    %52 = vector.shape_cast %51 : vector<1x8x96xf32> to vector<8x96xf32>
    %cst_46 = arith.constant dense<0.000000e+00> : vector<8x128xf32>
    %53 = tpu.matmul %52, %29, %cst_46 {dimension_numbers = #tpu.dot_dimension_numbers<[1], [0], [0], [1], [0, 0, 1, 1], [], []>} : vector<8x96xf32>, vector<96x128xf32>, vector<8x128xf32> -> vector<8x128xf32>
    %c8 = arith.constant 8 : index
    %c0_47 = arith.constant 0 : index
    %c0_48 = arith.constant 0 : index
    %54 = vector.load %arg2[%c8, %c0_47, %c0_48] : memref<16x8x96xf32, #tpu.memory_space<vmem>>, vector<1x8x96xf32>
    %55 = vector.shape_cast %54 : vector<1x8x96xf32> to vector<8x96xf32>
    %cst_49 = arith.constant dense<0.000000e+00> : vector<8x128xf32>
    %56 = tpu.matmul %55, %29, %cst_49 {dimension_numbers = #tpu.dot_dimension_numbers<[1], [0], [0], [1], [0, 0, 1, 1], [], []>} : vector<8x96xf32>, vector<96x128xf32>, vector<8x128xf32> -> vector<8x128xf32>
    %c9 = arith.constant 9 : index
    %c0_50 = arith.constant 0 : index
    %c0_51 = arith.constant 0 : index
    %57 = vector.load %arg2[%c9, %c0_50, %c0_51] : memref<16x8x96xf32, #tpu.memory_space<vmem>>, vector<1x8x96xf32>
    %58 = vector.shape_cast %57 : vector<1x8x96xf32> to vector<8x96xf32>
    %cst_52 = arith.constant dense<0.000000e+00> : vector<8x128xf32>
    %59 = tpu.matmul %58, %29, %cst_52 {dimension_numbers = #tpu.dot_dimension_numbers<[1], [0], [0], [1], [0, 0, 1, 1], [], []>} : vector<8x96xf32>, vector<96x128xf32>, vector<8x128xf32> -> vector<8x128xf32>
    %c10 = arith.constant 10 : index
    %c0_53 = arith.constant 0 : index
    %c0_54 = arith.constant 0 : index
    %60 = vector.load %arg2[%c10, %c0_53, %c0_54] : memref<16x8x96xf32, #tpu.memory_space<vmem>>, vector<1x8x96xf32>
    %61 = vector.shape_cast %60 : vector<1x8x96xf32> to vector<8x96xf32>
    %cst_55 = arith.constant dense<0.000000e+00> : vector<8x128xf32>
    %62 = tpu.matmul %61, %29, %cst_55 {dimension_numbers = #tpu.dot_dimension_numbers<[1], [0], [0], [1], [0, 0, 1, 1], [], []>} : vector<8x96xf32>, vector<96x128xf32>, vector<8x128xf32> -> vector<8x128xf32>
    %c11 = arith.constant 11 : index
    %c0_56 = arith.constant 0 : index
    %c0_57 = arith.constant 0 : index
    %63 = vector.load %arg2[%c11, %c0_56, %c0_57] : memref<16x8x96xf32, #tpu.memory_space<vmem>>, vector<1x8x96xf32>
    %64 = vector.shape_cast %63 : vector<1x8x96xf32> to vector<8x96xf32>
    %cst_58 = arith.constant dense<0.000000e+00> : vector<8x128xf32>
    %65 = tpu.matmul %64, %29, %cst_58 {dimension_numbers = #tpu.dot_dimension_numbers<[1], [0], [0], [1], [0, 0, 1, 1], [], []>} : vector<8x96xf32>, vector<96x128xf32>, vector<8x128xf32> -> vector<8x128xf32>
    %c12 = arith.constant 12 : index
    %c0_59 = arith.constant 0 : index
    %c0_60 = arith.constant 0 : index
    %66 = vector.load %arg2[%c12, %c0_59, %c0_60] : memref<16x8x96xf32, #tpu.memory_space<vmem>>, vector<1x8x96xf32>
    %67 = vector.shape_cast %66 : vector<1x8x96xf32> to vector<8x96xf32>
    %cst_61 = arith.constant dense<0.000000e+00> : vector<8x128xf32>
    %68 = tpu.matmul %67, %29, %cst_61 {dimension_numbers = #tpu.dot_dimension_numbers<[1], [0], [0], [1], [0, 0, 1, 1], [], []>} : vector<8x96xf32>, vector<96x128xf32>, vector<8x128xf32> -> vector<8x128xf32>
    %c13 = arith.constant 13 : index
    %c0_62 = arith.constant 0 : index
    %c0_63 = arith.constant 0 : index
    %69 = vector.load %arg2[%c13, %c0_62, %c0_63] : memref<16x8x96xf32, #tpu.memory_space<vmem>>, vector<1x8x96xf32>
    %70 = vector.shape_cast %69 : vector<1x8x96xf32> to vector<8x96xf32>
    %cst_64 = arith.constant dense<0.000000e+00> : vector<8x128xf32>
    %71 = tpu.matmul %70, %29, %cst_64 {dimension_numbers = #tpu.dot_dimension_numbers<[1], [0], [0], [1], [0, 0, 1, 1], [], []>} : vector<8x96xf32>, vector<96x128xf32>, vector<8x128xf32> -> vector<8x128xf32>
    %c14 = arith.constant 14 : index
    %c0_65 = arith.constant 0 : index
    %c0_66 = arith.constant 0 : index
    %72 = vector.load %arg2[%c14, %c0_65, %c0_66] : memref<16x8x96xf32, #tpu.memory_space<vmem>>, vector<1x8x96xf32>
    %73 = vector.shape_cast %72 : vector<1x8x96xf32> to vector<8x96xf32>
    %cst_67 = arith.constant dense<0.000000e+00> : vector<8x128xf32>
    %74 = tpu.matmul %73, %29, %cst_67 {dimension_numbers = #tpu.dot_dimension_numbers<[1], [0], [0], [1], [0, 0, 1, 1], [], []>} : vector<8x96xf32>, vector<96x128xf32>, vector<8x128xf32> -> vector<8x128xf32>
    %c15 = arith.constant 15 : index
    %c0_68 = arith.constant 0 : index
    %c0_69 = arith.constant 0 : index
    %75 = vector.load %arg2[%c15, %c0_68, %c0_69] : memref<16x8x96xf32, #tpu.memory_space<vmem>>, vector<1x8x96xf32>
    %76 = vector.shape_cast %75 : vector<1x8x96xf32> to vector<8x96xf32>
    %cst_70 = arith.constant dense<0.000000e+00> : vector<8x128xf32>
    %77 = tpu.matmul %76, %29, %cst_70 {dimension_numbers = #tpu.dot_dimension_numbers<[1], [0], [0], [1], [0, 0, 1, 1], [], []>} : vector<8x96xf32>, vector<96x128xf32>, vector<8x128xf32> -> vector<8x128xf32>
    %78 = tpu.concatenate %32, %35, %38, %41, %44, %47, %50, %53, %56, %59, %62, %65, %68, %71, %74, %77 in 1 : vector<8x128xf32>, vector<8x128xf32>, vector<8x128xf32>, vector<8x128xf32>, vector<8x128xf32>, vector<8x128xf32>, vector<8x128xf32>, vector<8x128xf32>, vector<8x128xf32>, vector<8x128xf32>, vector<8x128xf32>, vector<8x128xf32>, vector<8x128xf32>, vector<8x128xf32>, vector<8x128xf32>, vector<8x128xf32> -> vector<8x2048xf32>
    %c0_71 = arith.constant 0 : index
    %c0_72 = arith.constant 0 : index
    %79 = vector.load %arg10[%c0_71, %c0_72] : memref<32x8xf32, #tpu.memory_space<vmem>>, vector<32x8xf32>
    %cst_73 = arith.constant dense<0.000000e+00> : vector<32x2048xf32>
    %80 = tpu.matmul %79, %78, %cst_73 {dimension_numbers = #tpu.dot_dimension_numbers<[1], [0], [0], [1], [0, 0, 1, 1], [], []>} : vector<32x8xf32>, vector<8x2048xf32>, vector<32x2048xf32> -> vector<32x2048xf32>
    %c0_74 = arith.constant 0 : index
    %c0_75 = arith.constant 0 : index
    %81 = vector.load %arg11[%c0_74, %c0_75] : memref<32x1xf32, #tpu.memory_space<vmem>>, vector<32x1xf32>
    %82 = vector.broadcast %81 : vector<32x1xf32> to vector<32x2048xf32>
    %83 = arith.addf %80, %82 : vector<32x2048xf32>
    %cst_76 = arith.constant 0.000000e+00 : f32
    %84 = vector.broadcast %cst_76 : f32 to vector<32x2048xf32>
    %85 = arith.cmpf oge, %83, %84 : vector<32x2048xf32>
    %cst_77 = arith.constant 0.00999999977 : f32
    %86 = vector.broadcast %cst_77 : f32 to vector<32x2048xf32>
    %87 = arith.mulf %86, %83 : vector<32x2048xf32>
    %88 = arith.select %85, %83, %87 : vector<32x2048xi1>, vector<32x2048xf32>
    %c0_78 = arith.constant 0 : index
    %c0_79 = arith.constant 0 : index
    %89 = vector.load %arg12[%c0_78, %c0_79] : memref<32x32xf32, #tpu.memory_space<vmem>>, vector<32x32xf32>
    %cst_80 = arith.constant dense<0.000000e+00> : vector<32x2048xf32>
    %90 = tpu.matmul %89, %88, %cst_80 {dimension_numbers = #tpu.dot_dimension_numbers<[1], [0], [0], [1], [0, 0, 1, 1], [], []>} : vector<32x32xf32>, vector<32x2048xf32>, vector<32x2048xf32> -> vector<32x2048xf32>
    %c0_81 = arith.constant 0 : index
    %c0_82 = arith.constant 0 : index
    %91 = vector.load %arg13[%c0_81, %c0_82] : memref<32x1xf32, #tpu.memory_space<vmem>>, vector<32x1xf32>
    %92 = vector.broadcast %91 : vector<32x1xf32> to vector<32x2048xf32>
    %93 = arith.addf %90, %92 : vector<32x2048xf32>
    %cst_83 = arith.constant 0.000000e+00 : f32
    %94 = vector.broadcast %cst_83 : f32 to vector<32x2048xf32>
    %95 = arith.cmpf oge, %93, %94 : vector<32x2048xf32>
    %cst_84 = arith.constant 0.00999999977 : f32
    %96 = vector.broadcast %cst_84 : f32 to vector<32x2048xf32>
    %97 = arith.mulf %96, %93 : vector<32x2048xf32>
    %98 = arith.select %95, %93, %97 : vector<32x2048xi1>, vector<32x2048xf32>
    %c0_85 = arith.constant 0 : index
    %c0_86 = arith.constant 0 : index
    %99 = vector.load %arg14[%c0_85, %c0_86] : memref<1x8xf32, #tpu.memory_space<vmem>>, vector<1x8xf32>
    %cst_87 = arith.constant dense<0.000000e+00> : vector<1x2048xf32>
    %100 = tpu.matmul %99, %78, %cst_87 {dimension_numbers = #tpu.dot_dimension_numbers<[1], [0], [0], [1], [0, 0, 1, 1], [], []>} : vector<1x8xf32>, vector<8x2048xf32>, vector<1x2048xf32> -> vector<1x2048xf32>
    %c0_88 = arith.constant 0 : index
    %c0_89 = arith.constant 0 : index
    %101 = vector.load %arg15[%c0_88, %c0_89] : memref<1x32xf32, #tpu.memory_space<vmem>>, vector<1x32xf32>
    %cst_90 = arith.constant dense<0.000000e+00> : vector<1x2048xf32>
    %102 = tpu.matmul %101, %88, %cst_90 {dimension_numbers = #tpu.dot_dimension_numbers<[1], [0], [0], [1], [0, 0, 1, 1], [], []>} : vector<1x32xf32>, vector<32x2048xf32>, vector<1x2048xf32> -> vector<1x2048xf32>
    %103 = arith.addf %100, %102 : vector<1x2048xf32>
    %c0_91 = arith.constant 0 : index
    %c0_92 = arith.constant 0 : index
    %104 = vector.load %arg16[%c0_91, %c0_92] : memref<1x32xf32, #tpu.memory_space<vmem>>, vector<1x32xf32>
    %cst_93 = arith.constant dense<0.000000e+00> : vector<1x2048xf32>
    %105 = tpu.matmul %104, %98, %cst_93 {dimension_numbers = #tpu.dot_dimension_numbers<[1], [0], [0], [1], [0, 0, 1, 1], [], []>} : vector<1x32xf32>, vector<32x2048xf32>, vector<1x2048xf32> -> vector<1x2048xf32>
    %106 = arith.addf %103, %105 : vector<1x2048xf32>
    %c0_94 = arith.constant 0 : index
    %c0_95 = arith.constant 0 : index
    %107 = vector.load %arg17[%c0_94, %c0_95] : memref<1x1xf32, #tpu.memory_space<vmem>>, vector<1x1xf32>
    %108 = vector.broadcast %107 : vector<1x1xf32> to vector<1x2048xf32>
    %109 = arith.addf %106, %108 : vector<1x2048xf32>
    %c0_96 = arith.constant 0 : index
    %c0_97 = arith.constant 0 : index
    %110 = vector.load %arg18[%c0_96, %c0_97] : memref<1x2048xf32, #tpu.memory_space<vmem>>, vector<1x2048xf32>
    tpu.vector_store %arg18[%c0_96, %c0_97], %109 {strides = array<i32>} : memref<1x2048xf32, #tpu.memory_space<vmem>>, vector<1x2048xf32>,
    return
  }
  func.func @transform_0(%arg0: i32) -> (i32, i32) {
    %c0_i32 = arith.constant 0 : i32
    %c0_i32_0 = arith.constant 0 : i32
    return %c0_i32, %arg0 : i32, i32
  }
  func.func @transform_1(%arg0: i32) -> (i32, i32, i32) {
    %c0_i32 = arith.constant 0 : i32
    %c0_i32_0 = arith.constant 0 : i32
    %c0_i32_1 = arith.constant 0 : i32
    %c0_i32_2 = arith.constant 0 : i32
    return %c0_i32, %c0_i32_0, %c0_i32_1 : i32, i32, i32
  }
  func.func @transform_2(%arg0: i32) -> (i32, i32) {
    %c0_i32 = arith.constant 0 : i32
    %c0_i32_0 = arith.constant 0 : i32
    %c0_i32_1 = arith.constant 0 : i32
    return %c0_i32, %c0_i32_0 : i32, i32
  }
  func.func @transform_3(%arg0: i32) -> (i32, i32) {
    %c0_i32 = arith.constant 0 : i32
    %c0_i32_0 = arith.constant 0 : i32
    %c0_i32_1 = arith.constant 0 : i32
    return %c0_i32, %c0_i32_0 : i32, i32
  }
  func.func @transform_4(%arg0: i32) -> (i32, i32) {
    %c0_i32 = arith.constant 0 : i32
    %c0_i32_0 = arith.constant 0 : i32
    %c0_i32_1 = arith.constant 0 : i32
    return %c0_i32, %c0_i32_0 : i32, i32
  }
  func.func @transform_5(%arg0: i32) -> (i32, i32) {
    %c0_i32 = arith.constant 0 : i32
    %c0_i32_0 = arith.constant 0 : i32
    %c0_i32_1 = arith.constant 0 : i32
    return %c0_i32, %c0_i32_0 : i32, i32
  }
  func.func @transform_6(%arg0: i32) -> (i32, i32) {
    %c0_i32 = arith.constant 0 : i32
    %c0_i32_0 = arith.constant 0 : i32
    %c0_i32_1 = arith.constant 0 : i32
    return %c0_i32, %c0_i32_0 : i32, i32
  }
  func.func @transform_7(%arg0: i32) -> (i32, i32) {
    %c0_i32 = arith.constant 0 : i32
    %c0_i32_0 = arith.constant 0 : i32
    %c0_i32_1 = arith.constant 0 : i32
    return %c0_i32, %c0_i32_0 : i32, i32
  }
  func.func @transform_8(%arg0: i32) -> (i32, i32) {
    %c0_i32 = arith.constant 0 : i32
    %c0_i32_0 = arith.constant 0 : i32
    %c0_i32_1 = arith.constant 0 : i32
    return %c0_i32, %c0_i32_0 : i32, i32
  }
  func.func @transform_9(%arg0: i32) -> (i32, i32) {
    %c0_i32 = arith.constant 0 : i32
    %c0_i32_0 = arith.constant 0 : i32
    %c0_i32_1 = arith.constant 0 : i32
    return %c0_i32, %c0_i32_0 : i32, i32
  }
  func.func @transform_10(%arg0: i32) -> (i32, i32) {
    %c0_i32 = arith.constant 0 : i32
    %c0_i32_0 = arith.constant 0 : i32
    %c0_i32_1 = arith.constant 0 : i32
    return %c0_i32, %c0_i32_0 : i32, i32
  }
  func.func @transform_11(%arg0: i32) -> (i32, i32) {
    %c0_i32 = arith.constant 0 : i32
    %c0_i32_0 = arith.constant 0 : i32
    %c0_i32_1 = arith.constant 0 : i32
    return %c0_i32, %c0_i32_0 : i32, i32
  }
  func.func @transform_12(%arg0: i32) -> (i32, i32) {
    %c0_i32 = arith.constant 0 : i32
    %c0_i32_0 = arith.constant 0 : i32
    %c0_i32_1 = arith.constant 0 : i32
    return %c0_i32, %c0_i32_0 : i32, i32
  }
  func.func @transform_13(%arg0: i32) -> (i32, i32) {
    %c0_i32 = arith.constant 0 : i32
    %c0_i32_0 = arith.constant 0 : i32
    %c0_i32_1 = arith.constant 0 : i32
    return %c0_i32, %c0_i32_0 : i32, i32
  }
  func.func @transform_14(%arg0: i32) -> (i32, i32) {
    %c0_i32 = arith.constant 0 : i32
    %c0_i32_0 = arith.constant 0 : i32
    %c0_i32_1 = arith.constant 0 : i32
    return %c0_i32, %c0_i32_0 : i32, i32
  }
  func.func @transform_15(%arg0: i32) -> (i32, i32) {
    %c0_i32 = arith.constant 0 : i32
    %c0_i32_0 = arith.constant 0 : i32
    %c0_i32_1 = arith.constant 0 : i32
    return %c0_i32, %c0_i32_0 : i32, i32
  }
  func.func @transform_16(%arg0: i32) -> (i32, i32) {
    %c0_i32 = arith.constant 0 : i32
    %c0_i32_0 = arith.constant 0 : i32
    %c0_i32_1 = arith.constant 0 : i32
    return %c0_i32, %c0_i32_0 : i32, i32
  }
  func.func @transform_17(%arg0: i32) -> (i32, i32) {
    %c0_i32 = arith.constant 0 : i32
    %c0_i32_0 = arith.constant 0 : i32
    return %c0_i32, %arg0 : i32, i32
  }
}

</mosaic_0001>

<llo_original>
// kernel: tpu_custom_call.1
$region0: #{tpu_custom_call.1}
  #allocation0 [shape = 'u32[]', space=smem, size = 0x4, offset = 0x4, fixed_abs, tag = 'smem constant byte address 0x4 - core index']
  #allocation1 [shape = 'u32[72,128]{1,0:T(1,128)}', space=vmem, size = 0x9000, scoped, tag = 'internal scratch']
  #allocation2 [shape = 'f32[1,1]{1,0:T(1,128)S(1)}', space=vmem, size = 0x200, scoped, tag = 'scoped memory for tpu_custom_call.1']
  %s0 = inlined_call_operand.vmem [shape: f32[64,128], index: 0, kind: input, shape index: {}]
  %s1 = inlined_call_operand.hbm [shape: f32[16,8,96], index: 1, kind: input, shape index: {}]
  %s2 = inlined_call_operand.vmem [shape: f32[32,64], index: 2, kind: input, shape index: {}]
  %s3 = inlined_call_operand.vmem [shape: f32[32,1], index: 3, kind: input, shape index: {}]
  %s4 = inlined_call_operand.vmem [shape: f32[32,32], index: 4, kind: input, shape index: {}]
  %s5 = inlined_call_operand.vmem [shape: f32[32,1], index: 5, kind: input, shape index: {}]
  %s6 = inlined_call_operand.vmem [shape: f32[32,32], index: 6, kind: input, shape index: {}]
  %s7 = inlined_call_operand.vmem [shape: f32[32,32], index: 7, kind: input, shape index: {}]
  %s8 = inlined_call_operand.vmem [shape: f32[32,1], index: 8, kind: input, shape index: {}]
  %s9 = inlined_call_operand.vmem [shape: f32[32,8], index: 9, kind: input, shape index: {}]
  %s10 = inlined_call_operand.vmem [shape: f32[32,1], index: 10, kind: input, shape index: {}]
  %s11 = inlined_call_operand.hbm [shape: f32[32,32], index: 11, kind: input, shape index: {}]
  %s12 = inlined_call_operand.vmem [shape: f32[32,1], index: 12, kind: input, shape index: {}]
  %s13 = inlined_call_operand.vmem [shape: f32[1,8], index: 13, kind: input, shape index: {}]
  %s14 = inlined_call_operand.vmem [shape: f32[1,32], index: 14, kind: input, shape index: {}]
  %s15 = inlined_call_operand.vmem [shape: f32[1,32], index: 15, kind: input, shape index: {}]
  %s16 = inlined_call_operand.<no memory space> [shape: f32[1,1], index: 16, kind: input, shape index: {}]
  %s17 = inlined_call_operand.hbm [shape: f32[1,2048], index: 17, kind: output, shape index: {}]
  %s18 = sld [smem:[#allocation0]]
  $region86: #{tpu_custom_call.1} parent=0
    _
  %s20 = ssub.s32 1, %s18
  %s21 = scalar_select 0, %s20, %s18
  %v22 = vstv %s16
  %23 = vst [vmem:[#allocation2] sm:$0x1] %v22
  $region1: #{tpu_custom_call.1} parent=0
    #allocation3 [shape = 'u8[65536]{0}', space=vmem, size = 0x10000, scoped, tag = 'input window, operand 1, single buffered']
    #allocation4 [shape = 's32[1]{0}', space=sflag, size = 0x4, scoped, tag = 'scoped memory for tpu_custom_call.1']
    #allocation5 [shape = 's32[1]{0}', space=sflag, size = 0x4, scoped, tag = 'scoped memory for tpu_custom_call.1']
    #allocation6 [shape = 'u8[16384]{0}', space=vmem, size = 0x4000, scoped, tag = 'input window, operand 11, single buffered']
    #allocation7 [shape = 's32[1]{0}', space=sflag, size = 0x4, scoped, tag = 'scoped memory for tpu_custom_call.1']
    #allocation8 [shape = 'u8[8192]{0}', space=vmem, size = 0x2000, scoped, tag = 'output window, operand 0, single buffered']
    %24 = vsyncpa [#allocation4], 0
    %25 = vsyncpa [#allocation7], 0
    %26 = vsyncpa [#allocation5], 0
    // Predicated region
    $region2: #{tpu_custom_call.1} parent=1 // pred_check
      _
    $region3: #{tpu_custom_call.1} parent=1 // pred_check_branch
      %28 = sbr.rel (0) target = $region5
    $region4: #{tpu_custom_call.1} parent=1 // pred_region
      _
    $region5: #{tpu_custom_call.1} parent=1 // pred_fallthru
      _
    // Predicated region
    $region6: #{tpu_custom_call.1} parent=1 // pred_check
      _
    $region7: #{tpu_custom_call.1} parent=1 // pred_check_branch
      %30 = sbr.rel (0) target = $region9
    $region8: #{tpu_custom_call.1} parent=1 // pred_region
      %32 = vsyncadd [#allocation4], 0
      %s33 = sshll.u32 %s1, 4
      %s34 = int_to_ptr.hbm [resolvable:$true] %s33
      %s35 = sshll.u32 [#allocation3], 4
      %s36 = int_to_ptr.vmem [resolvable:$true] %s35
      %41 = dma.hbm_to_vmem [thread:$0]  %s34, 2048, %s36, [#allocation4], 128, 128, 8
    $region9: #{tpu_custom_call.1} parent=1 // pred_fallthru
      _
    // Predicated region
    $region10: #{tpu_custom_call.1} parent=1 // pred_check
      _
    $region11: #{tpu_custom_call.1} parent=1 // pred_check_branch
      %43 = sbr.rel (0) target = $region13
    $region12: #{tpu_custom_call.1} parent=1 // pred_region
      _
    $region13: #{tpu_custom_call.1} parent=1 // pred_fallthru
      _
    // Predicated region
    $region14: #{tpu_custom_call.1} parent=1 // pred_check
      _
    $region15: #{tpu_custom_call.1} parent=1 // pred_check_branch
      %45 = sbr.rel (0) target = $region17
    $region16: #{tpu_custom_call.1} parent=1 // pred_region
      _
    $region17: #{tpu_custom_call.1} parent=1 // pred_fallthru
      _
    // Predicated region
    $region18: #{tpu_custom_call.1} parent=1 // pred_check
      _
    $region19: #{tpu_custom_call.1} parent=1 // pred_check_branch
      %47 = sbr.rel (0) target = $region21
    $region20: #{tpu_custom_call.1} parent=1 // pred_region
      _
    $region21: #{tpu_custom_call.1} parent=1 // pred_fallthru
      _
    // Predicated region
    $region22: #{tpu_custom_call.1} parent=1 // pred_check
      _
    $region23: #{tpu_custom_call.1} parent=1 // pred_check_branch
      %49 = sbr.rel (0) target = $region25
    $region24: #{tpu_custom_call.1} parent=1 // pred_region
      _
    $region25: #{tpu_custom_call.1} parent=1 // pred_fallthru
      _
    // Predicated region
    $region26: #{tpu_custom_call.1} parent=1 // pred_check
      _
    $region27: #{tpu_custom_call.1} parent=1 // pred_check_branch
      %51 = sbr.rel (0) target = $region29
    $region28: #{tpu_custom_call.1} parent=1 // pred_region
      _
    $region29: #{tpu_custom_call.1} parent=1 // pred_fallthru
      _
    // Predicated region
    $region30: #{tpu_custom_call.1} parent=1 // pred_check
      _
    $region31: #{tpu_custom_call.1} parent=1 // pred_check_branch
      %53 = sbr.rel (0) target = $region33
    $region32: #{tpu_custom_call.1} parent=1 // pred_region
      _
    $region33: #{tpu_custom_call.1} parent=1 // pred_fallthru
      _
    // Predicated region
    $region34: #{tpu_custom_call.1} parent=1 // pred_check
      _
    $region35: #{tpu_custom_call.1} parent=1 // pred_check_branch
      %55 = sbr.rel (0) target = $region37
    $region36: #{tpu_custom_call.1} parent=1 // pred_region
      _
    $region37: #{tpu_custom_call.1} parent=1 // pred_fallthru
      _
    // Predicated region
    $region38: #{tpu_custom_call.1} parent=1 // pred_check
      _
    $region39: #{tpu_custom_call.1} parent=1 // pred_check_branch
      %57 = sbr.rel (0) target = $region41
    $region40: #{tpu_custom_call.1} parent=1 // pred_region
      _
    $region41: #{tpu_custom_call.1} parent=1 // pred_fallthru
      _
    // Predicated region
    $region42: #{tpu_custom_call.1} parent=1 // pred_check
      _
    $region43: #{tpu_custom_call.1} parent=1 // pred_check_branch
      %59 = sbr.rel (0) target = $region45
    $region44: #{tpu_custom_call.1} parent=1 // pred_region
      _
    $region45: #{tpu_custom_call.1} parent=1 // pred_fallthru
      _
    // Predicated region
    $region46: #{tpu_custom_call.1} parent=1 // pred_check
      _
    $region47: #{tpu_custom_call.1} parent=1 // pred_check_branch
      %61 = sbr.rel (0) target = $region49
    $region48: #{tpu_custom_call.1} parent=1 // pred_region
      %63 = vsyncadd [#allocation7], 0
      %s64 = sshll.u32 %s11, 4
      %s65 = int_to_ptr.hbm [resolvable:$true] %s64
      %s66 = sshll.u32 [#allocation6], 4
      %s67 = int_to_ptr.vmem [resolvable:$true] %s66
      %72 = dma.hbm_to_vmem [thread:$0]  %s65, 512, %s67, [#allocation7], 128, 128, 8
    $region49: #{tpu_custom_call.1} parent=1 // pred_fallthru
      _
    // Predicated region
    $region50: #{tpu_custom_call.1} parent=1 // pred_check
      _
    $region51: #{tpu_custom_call.1} parent=1 // pred_check_branch
      %74 = sbr.rel (0) target = $region53
    $region52: #{tpu_custom_call.1} parent=1 // pred_region
      _
    $region53: #{tpu_custom_call.1} parent=1 // pred_fallthru
      _
    // Predicated region
    $region54: #{tpu_custom_call.1} parent=1 // pred_check
      _
    $region55: #{tpu_custom_call.1} parent=1 // pred_check_branch
      %76 = sbr.rel (0) target = $region57
    $region56: #{tpu_custom_call.1} parent=1 // pred_region
      _
    $region57: #{tpu_custom_call.1} parent=1 // pred_fallthru
      _
    // Predicated region
    $region58: #{tpu_custom_call.1} parent=1 // pred_check
      _
    $region59: #{tpu_custom_call.1} parent=1 // pred_check_branch
      %78 = sbr.rel (0) target = $region61
    $region60: #{tpu_custom_call.1} parent=1 // pred_region
      _
    $region61: #{tpu_custom_call.1} parent=1 // pred_fallthru
      _
    // Predicated region
    $region62: #{tpu_custom_call.1} parent=1 // pred_check
      _
    $region63: #{tpu_custom_call.1} parent=1 // pred_check_branch
      %80 = sbr.rel (0) target = $region65
    $region64: #{tpu_custom_call.1} parent=1 // pred_region
      _
    $region65: #{tpu_custom_call.1} parent=1 // pred_fallthru
      _
    // Predicated region
    $region66: #{tpu_custom_call.1} parent=1 // pred_check
      _
    $region67: #{tpu_custom_call.1} parent=1 // pred_check_branch
      %82 = sbr.rel (0) target = $region69
    $region68: #{tpu_custom_call.1} parent=1 // pred_region
      _
    $region69: #{tpu_custom_call.1} parent=1 // pred_fallthru
      _
    // Predicated region
    $region70: #{tpu_custom_call.1} parent=1 // pred_check
      _
    $region71: #{tpu_custom_call.1} parent=1 // pred_check_branch
      %84 = sbr.rel (0) target = $region73
    $region72: #{tpu_custom_call.1} parent=1 // pred_region
      %86 = dma.done [#allocation4], 2048
    $region73: #{tpu_custom_call.1} parent=1 // pred_fallthru
      _
    // Predicated region
    $region74: #{tpu_custom_call.1} parent=1 // pred_check
      _
    $region75: #{tpu_custom_call.1} parent=1 // pred_check_branch
      %88 = sbr.rel (0) target = $region77
    $region76: #{tpu_custom_call.1} parent=1 // pred_region
      %90 = dma.done [#allocation7], 512
    $region77: #{tpu_custom_call.1} parent=1 // pred_fallthru
      _
    %v91 = vld [vmem:[%s0] sm:$0xff]
    %v92 = vld [vmem:[%s0 + $0x8] sm:$0xff]
    %v93 = vld [vmem:[%s0 + $0x10] sm:$0xff]
    %v94 = vld [vmem:[%s0 + $0x18] sm:$0xff]
    %v95 = vld [vmem:[%s0 + $0x20] sm:$0xff]
    %v96 = vld [vmem:[%s0 + $0x28] sm:$0xff]
    %v97 = vld [vmem:[%s0 + $0x30] sm:$0xff]
    %v98 = vld [vmem:[%s0 + $0x38] sm:$0xff]
    %v99 = vld [vmem:[%s2] sm:$0xff]
    %v100 = vld [vmem:[%s2 + $0x8] sm:$0xff]
    %v101 = vld [vmem:[%s2 + $0x10] sm:$0xff]
    %v102 = vld [vmem:[%s2 + $0x18] sm:$0xff]
    %v103 = vld [vmem:[%s3] sm:$0xff]
    %v104 = vld [vmem:[%s3 + $0x8] sm:$0xff]
    %v105 = vld [vmem:[%s3 + $0x10] sm:$0xff]
    %v106 = vld [vmem:[%s3 + $0x18] sm:$0xff]
    %108 = vset.pattern.permute.xlu0 0
    %109 = vperm.xlu0 %108, %v103
    %v110 = vpop.permute.xlu0 %109
    %113 = vset.pattern.permute.xlu0 0
    %114 = vperm.xlu0 %113, %v104
    %v115 = vpop.permute.xlu0 %114
    %118 = vset.pattern.permute.xlu0 0
    %119 = vperm.xlu0 %118, %v105
    %v120 = vpop.permute.xlu0 %119
    %123 = vset.pattern.permute.xlu0 0
    %124 = vperm.xlu0 %123, %v106
    %v125 = vpop.permute.xlu0 %124
    %vm127 = vcmask 523264
    %v129 = vsel %vm127, %v99, 0
    %v132 = vsel %vm127, %v100, 0
    %v135 = vsel %vm127, %v101, 0
    %v138 = vsel %vm127, %v102, 0
    %140 = vmatpush.msra.mxu0 0.0
    %141 = vmatpush.msra.mxu0 0.0
    %142 = vmatpush.msra.mxu0 0.0
    %143 = vmatpush.msra.mxu0 0.0
    %144 = vmatpush.msra.mxu0 0.0
    %145 = vmatpush.msra.mxu0 0.0
    %146 = vmatpush.msra.mxu0 0.0
    %147 = vmatpush.msra.mxu0 0.0
    %148 = vmatpush.msra.mxu0 %v98
    %149 = vmatpush.msra.mxu0 %v97
    %150 = vmatpush.msra.mxu0 %v96
    %151 = vmatpush.msra.mxu0 %v95
    %152 = vmatpush.msra.mxu0 %v94
    %153 = vmatpush.msra.mxu0 %v93
    %154 = vmatpush.msra.mxu0 %v92
    %155 = vmatpush.msra.mxu0 %v91
    %156 = vmatmul.f32.gmra.mxu0 %v129
    %v157 = vpop.f32.mrf.mxu0
    %v158 = vadd.f32 %v110, %v157
    %159 = vmatmul.f32.gmra.mxu0 %v132
    %v160 = vpop.f32.mrf.mxu0
    %v161 = vadd.f32 %v115, %v160
    %162 = vmatmul.f32.gmra.mxu0 %v135
    %v163 = vpop.f32.mrf.mxu0
    %v164 = vadd.f32 %v120, %v163
    %165 = vmatmul.f32.gmra.mxu0 %v138
    %v166 = vpop.f32.mrf.mxu0
    %v167 = vadd.f32 %v125, %v166
    %168 = vdwg.mxu0
    %vm169 = vcmp.ge.f32.partialorder %v158, 0.0
    %vm170 = vcmp.ge.f32.partialorder %v161, 0.0
    %vm171 = vcmp.ge.f32.partialorder %v164, 0.0
    %vm172 = vcmp.ge.f32.partialorder %v167, 0.0
    %v173 = vmul.f32 %v158, 0.01
    %v174 = vmul.f32 %v161, 0.01
    %v175 = vmul.f32 %v164, 0.01
    %v176 = vmul.f32 %v167, 0.01
    %v177 = vsel %vm169, %v158, %v173
    %v178 = vsel %vm170, %v161, %v174
    %v179 = vsel %vm171, %v164, %v175
    %v180 = vsel %vm172, %v167, %v176
    %v181 = vld [vmem:[%s4] sm:$0xff]
    %v182 = vld [vmem:[%s4 + $0x8] sm:$0xff]
    %v183 = vld [vmem:[%s4 + $0x10] sm:$0xff]
    %v184 = vld [vmem:[%s4 + $0x18] sm:$0xff]
    %v185 = vld [vmem:[%s5] sm:$0xff]
    %v186 = vld [vmem:[%s5 + $0x8] sm:$0xff]
    %v187 = vld [vmem:[%s5 + $0x10] sm:$0xff]
    %v188 = vld [vmem:[%s5 + $0x18] sm:$0xff]
    %190 = vset.pattern.permute.xlu0 0
    %191 = vperm.xlu0 %190, %v185
    %v192 = vpop.permute.xlu0 %191
    %195 = vset.pattern.permute.xlu0 0
    %196 = vperm.xlu0 %195, %v186
    %v197 = vpop.permute.xlu0 %196
    %200 = vset.pattern.permute.xlu0 0
    %201 = vperm.xlu0 %200, %v187
    %v202 = vpop.permute.xlu0 %201
    %205 = vset.pattern.permute.xlu0 0
    %206 = vperm.xlu0 %205, %v188
    %v207 = vpop.permute.xlu0 %206
    %vm209 = vcmask 261120
    %v211 = vsel %vm209, %v181, 0
    %v214 = vsel %vm209, %v182, 0
    %v217 = vsel %vm209, %v183, 0
    %v220 = vsel %vm209, %v184, 0
    %222 = vmatpush.msra.mxu0 0.0
    %223 = vmatpush.msra.mxu0 0.0
    %224 = vmatpush.msra.mxu0 0.0
    %225 = vmatpush.msra.mxu0 0.0
    %226 = vmatpush.msra.mxu0 0.0
    %227 = vmatpush.msra.mxu0 0.0
    %228 = vmatpush.msra.mxu0 0.0
    %229 = vmatpush.msra.mxu0 0.0
    %230 = vmatpush.msra.mxu0 0.0
    %231 = vmatpush.msra.mxu0 0.0
    %232 = vmatpush.msra.mxu0 0.0
    %233 = vmatpush.msra.mxu0 0.0
    %234 = vmatpush.msra.mxu0 %v180
    %235 = vmatpush.msra.mxu0 %v179
    %236 = vmatpush.msra.mxu0 %v178
    %237 = vmatpush.msra.mxu0 %v177
    %238 = vmatmul.f32.gmra.mxu0 %v211
    %v239 = vpop.f32.mrf.mxu0
    %v240 = vadd.f32 %v192, %v239
    %241 = vmatmul.f32.gmra.mxu0 %v214
    %v242 = vpop.f32.mrf.mxu0
    %v243 = vadd.f32 %v197, %v242
    %244 = vmatmul.f32.gmra.mxu0 %v217
    %v245 = vpop.f32.mrf.mxu0
    %v246 = vadd.f32 %v202, %v245
    %247 = vmatmul.f32.gmra.mxu0 %v220
    %v248 = vpop.f32.mrf.mxu0
    %v249 = vadd.f32 %v207, %v248
    %250 = vdwg.mxu0
    %vm251 = vcmp.ge.f32.partialorder %v240, 0.0
    %vm252 = vcmp.ge.f32.partialorder %v243, 0.0
    %vm253 = vcmp.ge.f32.partialorder %v246, 0.0
    %vm254 = vcmp.ge.f32.partialorder %v249, 0.0
    %v255 = vmul.f32 %v240, 0.01
    %v256 = vmul.f32 %v243, 0.01
    %v257 = vmul.f32 %v246, 0.01
    %v258 = vmul.f32 %v249, 0.01
    %v259 = vsel %vm251, %v240, %v255
    %v260 = vsel %vm252, %v243, %v256
    %v261 = vsel %vm253, %v246, %v257
    %v262 = vsel %vm254, %v249, %v258
    %v263 = vld [vmem:[%s6] sm:$0xff]
    %v264 = vld [vmem:[%s6 + $0x8] sm:$0xff]
    %v265 = vld [vmem:[%s6 + $0x10] sm:$0xff]
    %v266 = vld [vmem:[%s6 + $0x18] sm:$0xff]
    %v267 = vld [vmem:[%s7] sm:$0xff]
    %v268 = vld [vmem:[%s7 + $0x8] sm:$0xff]
    %v269 = vld [vmem:[%s7 + $0x10] sm:$0xff]
    %v270 = vld [vmem:[%s7 + $0x18] sm:$0xff]
    %v272 = vsel %vm209, %v267, 0
    %v275 = vsel %vm209, %v268, 0
    %v278 = vsel %vm209, %v269, 0
    %v281 = vsel %vm209, %v270, 0
    %283 = vmatpush.msra.mxu0 0.0
    %284 = vmatpush.msra.mxu0 0.0
    %285 = vmatpush.msra.mxu0 0.0
    %286 = vmatpush.msra.mxu0 0.0
    %287 = vmatpush.msra.mxu0 0.0
    %288 = vmatpush.msra.mxu0 0.0
    %289 = vmatpush.msra.mxu0 0.0
    %290 = vmatpush.msra.mxu0 0.0
    %291 = vmatpush.msra.mxu0 0.0
    %292 = vmatpush.msra.mxu0 0.0
    %293 = vmatpush.msra.mxu0 0.0
    %294 = vmatpush.msra.mxu0 0.0
    %295 = vmatpush.msra.mxu0 %v262
    %296 = vmatpush.msra.mxu0 %v261
    %297 = vmatpush.msra.mxu0 %v260
    %298 = vmatpush.msra.mxu0 %v259
    %299 = vmatmul.f32.gmra.mxu0 %v272
    %v300 = vpop.f32.mrf.mxu0
    %v301 = vadd.f32 0.0, %v300
    %302 = vmatmul.f32.gmra.mxu0 %v275
    %v303 = vpop.f32.mrf.mxu0
    %v304 = vadd.f32 0.0, %v303
    %305 = vmatmul.f32.gmra.mxu0 %v278
    %v306 = vpop.f32.mrf.mxu0
    %v307 = vadd.f32 0.0, %v306
    %308 = vmatmul.f32.gmra.mxu0 %v281
    %v309 = vpop.f32.mrf.mxu0
    %v310 = vadd.f32 0.0, %v309
    %311 = vdwg.mxu0
    %v313 = vsel %vm209, %v263, 0
    %v316 = vsel %vm209, %v264, 0
    %v319 = vsel %vm209, %v265, 0
    %v322 = vsel %vm209, %v266, 0
    %324 = vmatpush.msra.mxu0 0.0
    %325 = vmatpush.msra.mxu0 0.0
    %326 = vmatpush.msra.mxu0 0.0
    %327 = vmatpush.msra.mxu0 0.0
    %328 = vmatpush.msra.mxu0 0.0
    %329 = vmatpush.msra.mxu0 0.0
    %330 = vmatpush.msra.mxu0 0.0
    %331 = vmatpush.msra.mxu0 0.0
    %332 = vmatpush.msra.mxu0 0.0
    %333 = vmatpush.msra.mxu0 0.0
    %334 = vmatpush.msra.mxu0 0.0
    %335 = vmatpush.msra.mxu0 0.0
    %336 = vmatpush.msra.mxu0 %v180
    %337 = vmatpush.msra.mxu0 %v179
    %338 = vmatpush.msra.mxu0 %v178
    %339 = vmatpush.msra.mxu0 %v177
    %340 = vmatmul.f32.gmra.mxu0 %v313
    %v341 = vpop.f32.mrf.mxu0
    %v342 = vadd.f32 %v301, %v341
    %343 = vmatmul.f32.gmra.mxu0 %v316
    %v344 = vpop.f32.mrf.mxu0
    %v345 = vadd.f32 %v304, %v344
    %346 = vmatmul.f32.gmra.mxu0 %v319
    %v347 = vpop.f32.mrf.mxu0
    %v348 = vadd.f32 %v307, %v347
    %349 = vmatmul.f32.gmra.mxu0 %v322
    %v350 = vpop.f32.mrf.mxu0
    %v351 = vadd.f32 %v310, %v350
    %352 = vdwg.mxu0
    %v353 = vld [vmem:[%s8] sm:$0xff]
    %v354 = vld [vmem:[%s8 + $0x8] sm:$0xff]
    %v355 = vld [vmem:[%s8 + $0x10] sm:$0xff]
    %v356 = vld [vmem:[%s8 + $0x18] sm:$0xff]
    %358 = vset.pattern.permute.xlu0 0
    %359 = vperm.xlu0 %358, %v353
    %v360 = vpop.permute.xlu0 %359
    %363 = vset.pattern.permute.xlu0 0
    %364 = vperm.xlu0 %363, %v354
    %v365 = vpop.permute.xlu0 %364
    %368 = vset.pattern.permute.xlu0 0
    %369 = vperm.xlu0 %368, %v355
    %v370 = vpop.permute.xlu0 %369
    %373 = vset.pattern.permute.xlu0 0
    %374 = vperm.xlu0 %373, %v356
    %v375 = vpop.permute.xlu0 %374
    %v377 = vadd.f32 %v342, %v360
    %v378 = vadd.f32 %v345, %v365
    %v379 = vadd.f32 %v348, %v370
    %v380 = vadd.f32 %v351, %v375
    %v381 = vld [vmem:[#allocation3] sm:$0xff]
    %vm382 = vcmask 785408
    %v384 = vsel %vm382, %v381, 0
    %386 = vmatpush.msra.mxu0 0.0
    %387 = vmatpush.msra.mxu0 0.0
    %388 = vmatpush.msra.mxu0 0.0
    %389 = vmatpush.msra.mxu0 0.0
    %390 = vmatpush.msra.mxu0 %v98
    %391 = vmatpush.msra.mxu0 %v97
    %392 = vmatpush.msra.mxu0 %v96
    %393 = vmatpush.msra.mxu0 %v95
    %394 = vmatpush.msra.mxu0 %v94
    %395 = vmatpush.msra.mxu0 %v93
    %396 = vmatpush.msra.mxu0 %v92
    %397 = vmatpush.msra.mxu0 %v91
    %398 = vmatpush.msra.mxu0 %v380
    %399 = vmatpush.msra.mxu0 %v379
    %400 = vmatpush.msra.mxu0 %v378
    %401 = vmatpush.msra.mxu0 %v377
    %402 = vmatmul.f32.gmra.mxu0 %v384
    %v403 = vpop.f32.mrf.mxu0
    %v404 = vadd.f32 0.0, %v403
    %405 = vdwg.mxu0
    %s406 = scalar_lea.vmem [#allocation3], 8
    %v407 = vld [vmem:[%s406] sm:$0xff]
    %v409 = vsel %vm382, %v407, 0
    %411 = vmatpush.msra.mxu0 0.0
    %412 = vmatpush.msra.mxu0 0.0
    %413 = vmatpush.msra.mxu0 0.0
    %414 = vmatpush.msra.mxu0 0.0
    %415 = vmatpush.msra.mxu0 %v98
    %416 = vmatpush.msra.mxu0 %v97
    %417 = vmatpush.msra.mxu0 %v96
    %418 = vmatpush.msra.mxu0 %v95
    %419 = vmatpush.msra.mxu0 %v94
    %420 = vmatpush.msra.mxu0 %v93
    %421 = vmatpush.msra.mxu0 %v92
    %422 = vmatpush.msra.mxu0 %v91
    %423 = vmatpush.msra.mxu0 %v380
    %424 = vmatpush.msra.mxu0 %v379
    %425 = vmatpush.msra.mxu0 %v378
    %426 = vmatpush.msra.mxu0 %v377
    %427 = vmatmul.f32.gmra.mxu0 %v409
    %v428 = vpop.f32.mrf.mxu0
    %v429 = vadd.f32 0.0, %v428
    %430 = vdwg.mxu0
    %s431 = scalar_lea.vmem [#allocation3], 16
    %v432 = vld [vmem:[%s431] sm:$0xff]
    %v434 = vsel %vm382, %v432, 0
    %436 = vmatpush.msra.mxu0 0.0
    %437 = vmatpush.msra.mxu0 0.0
    %438 = vmatpush.msra.mxu0 0.0
    %439 = vmatpush.msra.mxu0 0.0
    %440 = vmatpush.msra.mxu0 %v98
    %441 = vmatpush.msra.mxu0 %v97
    %442 = vmatpush.msra.mxu0 %v96
    %443 = vmatpush.msra.mxu0 %v95
    %444 = vmatpush.msra.mxu0 %v94
    %445 = vmatpush.msra.mxu0 %v93
    %446 = vmatpush.msra.mxu0 %v92
    %447 = vmatpush.msra.mxu0 %v91
    %448 = vmatpush.msra.mxu0 %v380
    %449 = vmatpush.msra.mxu0 %v379
    %450 = vmatpush.msra.mxu0 %v378
    %451 = vmatpush.msra.mxu0 %v377
    %452 = vmatmul.f32.gmra.mxu0 %v434
    %v453 = vpop.f32.mrf.mxu0
    %v454 = vadd.f32 0.0, %v453
    %455 = vdwg.mxu0
    %s456 = scalar_lea.vmem [#allocation3], 24
    %v457 = vld [vmem:[%s456] sm:$0xff]
    %v459 = vsel %vm382, %v457, 0
    %461 = vmatpush.msra.mxu0 0.0
    %462 = vmatpush.msra.mxu0 0.0
    %463 = vmatpush.msra.mxu0 0.0
    %464 = vmatpush.msra.mxu0 0.0
    %465 = vmatpush.msra.mxu0 %v98
    %466 = vmatpush.msra.mxu0 %v97
    %467 = vmatpush.msra.mxu0 %v96
    %468 = vmatpush.msra.mxu0 %v95
    %469 = vmatpush.msra.mxu0 %v94
    %470 = vmatpush.msra.mxu0 %v93
    %471 = vmatpush.msra.mxu0 %v92
    %472 = vmatpush.msra.mxu0 %v91
    %473 = vmatpush.msra.mxu0 %v380
    %474 = vmatpush.msra.mxu0 %v379
    %475 = vmatpush.msra.mxu0 %v378
    %476 = vmatpush.msra.mxu0 %v377
    %477 = vmatmul.f32.gmra.mxu0 %v459
    %v478 = vpop.f32.mrf.mxu0
    %v479 = vadd.f32 0.0, %v478
    %480 = vdwg.mxu0
    %s481 = scalar_lea.vmem [#allocation3], 32
    %v482 = vld [vmem:[%s481] sm:$0xff]
    %v484 = vsel %vm382, %v482, 0
    %486 = vmatpush.msra.mxu0 0.0
    %487 = vmatpush.msra.mxu0 0.0
    %488 = vmatpush.msra.mxu0 0.0
    %489 = vmatpush.msra.mxu0 0.0
    %490 = vmatpush.msra.mxu0 %v98
    %491 = vmatpush.msra.mxu0 %v97
    %492 = vmatpush.msra.mxu0 %v96
    %493 = vmatpush.msra.mxu0 %v95
    %494 = vmatpush.msra.mxu0 %v94
    %495 = vmatpush.msra.mxu0 %v93
    %496 = vmatpush.msra.mxu0 %v92
    %497 = vmatpush.msra.mxu0 %v91
    %498 = vmatpush.msra.mxu0 %v380
    %499 = vmatpush.msra.mxu0 %v379
    %500 = vmatpush.msra.mxu0 %v378
    %501 = vmatpush.msra.mxu0 %v377
    %502 = vmatmul.f32.gmra.mxu0 %v484
    %v503 = vpop.f32.mrf.mxu0
    %v504 = vadd.f32 0.0, %v503
    %505 = vdwg.mxu0
    %s506 = scalar_lea.vmem [#allocation3], 40
    %v507 = vld [vmem:[%s506] sm:$0xff]
    %v509 = vsel %vm382, %v507, 0
    %511 = vmatpush.msra.mxu0 0.0
    %512 = vmatpush.msra.mxu0 0.0
    %513 = vmatpush.msra.mxu0 0.0
    %514 = vmatpush.msra.mxu0 0.0
    %515 = vmatpush.msra.mxu0 %v98
    %516 = vmatpush.msra.mxu0 %v97
    %517 = vmatpush.msra.mxu0 %v96
    %518 = vmatpush.msra.mxu0 %v95
    %519 = vmatpush.msra.mxu0 %v94
    %520 = vmatpush.msra.mxu0 %v93
    %521 = vmatpush.msra.mxu0 %v92
    %522 = vmatpush.msra.mxu0 %v91
    %523 = vmatpush.msra.mxu0 %v380
    %524 = vmatpush.msra.mxu0 %v379
    %525 = vmatpush.msra.mxu0 %v378
    %526 = vmatpush.msra.mxu0 %v377
    %527 = vmatmul.f32.gmra.mxu0 %v509
    %v528 = vpop.f32.mrf.mxu0
    %v529 = vadd.f32 0.0, %v528
    %530 = vdwg.mxu0
    %s531 = scalar_lea.vmem [#allocation3], 48
    %v532 = vld [vmem:[%s531] sm:$0xff]
    %v534 = vsel %vm382, %v532, 0
    %536 = vmatpush.msra.mxu0 0.0
    %537 = vmatpush.msra.mxu0 0.0
    %538 = vmatpush.msra.mxu0 0.0
    %539 = vmatpush.msra.mxu0 0.0
    %540 = vmatpush.msra.mxu0 %v98
    %541 = vmatpush.msra.mxu0 %v97
    %542 = vmatpush.msra.mxu0 %v96
    %543 = vmatpush.msra.mxu0 %v95
    %544 = vmatpush.msra.mxu0 %v94
    %545 = vmatpush.msra.mxu0 %v93
    %546 = vmatpush.msra.mxu0 %v92
    %547 = vmatpush.msra.mxu0 %v91
    %548 = vmatpush.msra.mxu0 %v380
    %549 = vmatpush.msra.mxu0 %v379
    %550 = vmatpush.msra.mxu0 %v378
    %551 = vmatpush.msra.mxu0 %v377
    %552 = vmatmul.f32.gmra.mxu0 %v534
    %v553 = vpop.f32.mrf.mxu0
    %v554 = vadd.f32 0.0, %v553
    %555 = vdwg.mxu0
    %s556 = scalar_lea.vmem [#allocation3], 56
    %v557 = vld [vmem:[%s556] sm:$0xff]
    %v559 = vsel %vm382, %v557, 0
    %561 = vmatpush.msra.mxu0 0.0
    %562 = vmatpush.msra.mxu0 0.0
    %563 = vmatpush.msra.mxu0 0.0
    %564 = vmatpush.msra.mxu0 0.0
    %565 = vmatpush.msra.mxu0 %v98
    %566 = vmatpush.msra.mxu0 %v97
    %567 = vmatpush.msra.mxu0 %v96
    %568 = vmatpush.msra.mxu0 %v95
    %569 = vmatpush.msra.mxu0 %v94
    %570 = vmatpush.msra.mxu0 %v93
    %571 = vmatpush.msra.mxu0 %v92
    %572 = vmatpush.msra.mxu0 %v91
    %573 = vmatpush.msra.mxu0 %v380
    %574 = vmatpush.msra.mxu0 %v379
    %575 = vmatpush.msra.mxu0 %v378
    %576 = vmatpush.msra.mxu0 %v377
    %577 = vmatmul.f32.gmra.mxu0 %v559
    %v578 = vpop.f32.mrf.mxu0
    %v579 = vadd.f32 0.0, %v578
    %580 = vdwg.mxu0
    %s581 = scalar_lea.vmem [#allocation3], 64
    %v582 = vld [vmem:[%s581] sm:$0xff]
    %v584 = vsel %vm382, %v582, 0
    %586 = vmatpush.msra.mxu0 0.0
    %587 = vmatpush.msra.mxu0 0.0
    %588 = vmatpush.msra.mxu0 0.0
    %589 = vmatpush.msra.mxu0 0.0
    %590 = vmatpush.msra.mxu0 %v98
    %591 = vmatpush.msra.mxu0 %v97
    %592 = vmatpush.msra.mxu0 %v96
    %593 = vmatpush.msra.mxu0 %v95
    %594 = vmatpush.msra.mxu0 %v94
    %595 = vmatpush.msra.mxu0 %v93
    %596 = vmatpush.msra.mxu0 %v92
    %597 = vmatpush.msra.mxu0 %v91
    %598 = vmatpush.msra.mxu0 %v380
    %599 = vmatpush.msra.mxu0 %v379
    %600 = vmatpush.msra.mxu0 %v378
    %601 = vmatpush.msra.mxu0 %v377
    %602 = vmatmul.f32.gmra.mxu0 %v584
    %v603 = vpop.f32.mrf.mxu0
    %v604 = vadd.f32 0.0, %v603
    %605 = vdwg.mxu0
    %s606 = scalar_lea.vmem [#allocation3], 72
    %v607 = vld [vmem:[%s606] sm:$0xff]
    %v609 = vsel %vm382, %v607, 0
    %611 = vmatpush.msra.mxu0 0.0
    %612 = vmatpush.msra.mxu0 0.0
    %613 = vmatpush.msra.mxu0 0.0
    %614 = vmatpush.msra.mxu0 0.0
    %615 = vmatpush.msra.mxu0 %v98
    %616 = vmatpush.msra.mxu0 %v97
    %617 = vmatpush.msra.mxu0 %v96
    %618 = vmatpush.msra.mxu0 %v95
    %619 = vmatpush.msra.mxu0 %v94
    %620 = vmatpush.msra.mxu0 %v93
    %621 = vmatpush.msra.mxu0 %v92
    %622 = vmatpush.msra.mxu0 %v91
    %623 = vmatpush.msra.mxu0 %v380
    %624 = vmatpush.msra.mxu0 %v379
    %625 = vmatpush.msra.mxu0 %v378
    %626 = vmatpush.msra.mxu0 %v377
    %627 = vmatmul.f32.gmra.mxu0 %v609
    %v628 = vpop.f32.mrf.mxu0
    %v629 = vadd.f32 0.0, %v628
    %630 = vdwg.mxu0
    %s631 = scalar_lea.vmem [#allocation3], 80
    %v632 = vld [vmem:[%s631] sm:$0xff]
    %v634 = vsel %vm382, %v632, 0
    %636 = vmatpush.msra.mxu0 0.0
    %637 = vmatpush.msra.mxu0 0.0
    %638 = vmatpush.msra.mxu0 0.0
    %639 = vmatpush.msra.mxu0 0.0
    %640 = vmatpush.msra.mxu0 %v98
    %641 = vmatpush.msra.mxu0 %v97
    %642 = vmatpush.msra.mxu0 %v96
    %643 = vmatpush.msra.mxu0 %v95
    %644 = vmatpush.msra.mxu0 %v94
    %645 = vmatpush.msra.mxu0 %v93
    %646 = vmatpush.msra.mxu0 %v92
    %647 = vmatpush.msra.mxu0 %v91
    %648 = vmatpush.msra.mxu0 %v380
    %649 = vmatpush.msra.mxu0 %v379
    %650 = vmatpush.msra.mxu0 %v378
    %651 = vmatpush.msra.mxu0 %v377
    %652 = vmatmul.f32.gmra.mxu0 %v634
    %v653 = vpop.f32.mrf.mxu0
    %v654 = vadd.f32 0.0, %v653
    %655 = vdwg.mxu0
    %s656 = scalar_lea.vmem [#allocation3], 88
    %v657 = vld [vmem:[%s656] sm:$0xff]
    %v659 = vsel %vm382, %v657, 0
    %661 = vmatpush.msra.mxu0 0.0
    %662 = vmatpush.msra.mxu0 0.0
    %663 = vmatpush.msra.mxu0 0.0
    %664 = vmatpush.msra.mxu0 0.0
    %665 = vmatpush.msra.mxu0 %v98
    %666 = vmatpush.msra.mxu0 %v97
    %667 = vmatpush.msra.mxu0 %v96
    %668 = vmatpush.msra.mxu0 %v95
    %669 = vmatpush.msra.mxu0 %v94
    %670 = vmatpush.msra.mxu0 %v93
    %671 = vmatpush.msra.mxu0 %v92
    %672 = vmatpush.msra.mxu0 %v91
    %673 = vmatpush.msra.mxu0 %v380
    %674 = vmatpush.msra.mxu0 %v379
    %675 = vmatpush.msra.mxu0 %v378
    %676 = vmatpush.msra.mxu0 %v377
    %677 = vmatmul.f32.gmra.mxu0 %v659
    %v678 = vpop.f32.mrf.mxu0
    %v679 = vadd.f32 0.0, %v678
    %680 = vdwg.mxu0
    %s681 = scalar_lea.vmem [#allocation3], 96
    %v682 = vld [vmem:[%s681] sm:$0xff]
    %v684 = vsel %vm382, %v682, 0
    %686 = vmatpush.msra.mxu0 0.0
    %687 = vmatpush.msra.mxu0 0.0
    %688 = vmatpush.msra.mxu0 0.0
    %689 = vmatpush.msra.mxu0 0.0
    %690 = vmatpush.msra.mxu0 %v98
    %691 = vmatpush.msra.mxu0 %v97
    %692 = vmatpush.msra.mxu0 %v96
    %693 = vmatpush.msra.mxu0 %v95
    %694 = vmatpush.msra.mxu0 %v94
    %695 = vmatpush.msra.mxu0 %v93
    %696 = vmatpush.msra.mxu0 %v92
    %697 = vmatpush.msra.mxu0 %v91
    %698 = vmatpush.msra.mxu0 %v380
    %699 = vmatpush.msra.mxu0 %v379
    %700 = vmatpush.msra.mxu0 %v378
    %701 = vmatpush.msra.mxu0 %v377
    %702 = vmatmul.f32.gmra.mxu0 %v684
    %v703 = vpop.f32.mrf.mxu0
    %v704 = vadd.f32 0.0, %v703
    %705 = vdwg.mxu0
    %s706 = scalar_lea.vmem [#allocation3], 104
    %v707 = vld [vmem:[%s706] sm:$0xff]
    %v709 = vsel %vm382, %v707, 0
    %711 = vmatpush.msra.mxu0 0.0
    %712 = vmatpush.msra.mxu0 0.0
    %713 = vmatpush.msra.mxu0 0.0
    %714 = vmatpush.msra.mxu0 0.0
    %715 = vmatpush.msra.mxu0 %v98
    %716 = vmatpush.msra.mxu0 %v97
    %717 = vmatpush.msra.mxu0 %v96
    %718 = vmatpush.msra.mxu0 %v95
    %719 = vmatpush.msra.mxu0 %v94
    %720 = vmatpush.msra.mxu0 %v93
    %721 = vmatpush.msra.mxu0 %v92
    %722 = vmatpush.msra.mxu0 %v91
    %723 = vmatpush.msra.mxu0 %v380
    %724 = vmatpush.msra.mxu0 %v379
    %725 = vmatpush.msra.mxu0 %v378
    %726 = vmatpush.msra.mxu0 %v377
    %727 = vmatmul.f32.gmra.mxu0 %v709
    %v728 = vpop.f32.mrf.mxu0
    %v729 = vadd.f32 0.0, %v728
    %730 = vdwg.mxu0
    %s731 = scalar_lea.vmem [#allocation3], 112
    %v732 = vld [vmem:[%s731] sm:$0xff]
    %v734 = vsel %vm382, %v732, 0
    %736 = vmatpush.msra.mxu0 0.0
    %737 = vmatpush.msra.mxu0 0.0
    %738 = vmatpush.msra.mxu0 0.0
    %739 = vmatpush.msra.mxu0 0.0
    %740 = vmatpush.msra.mxu0 %v98
    %741 = vmatpush.msra.mxu0 %v97
    %742 = vmatpush.msra.mxu0 %v96
    %743 = vmatpush.msra.mxu0 %v95
    %744 = vmatpush.msra.mxu0 %v94
    %745 = vmatpush.msra.mxu0 %v93
    %746 = vmatpush.msra.mxu0 %v92
    %747 = vmatpush.msra.mxu0 %v91
    %748 = vmatpush.msra.mxu0 %v380
    %749 = vmatpush.msra.mxu0 %v379
    %750 = vmatpush.msra.mxu0 %v378
    %751 = vmatpush.msra.mxu0 %v377
    %752 = vmatmul.f32.gmra.mxu0 %v734
    %v753 = vpop.f32.mrf.mxu0
    %v754 = vadd.f32 0.0, %v753
    %755 = vdwg.mxu0
    %s756 = scalar_lea.vmem [#allocation3], 120
    %v757 = vld [vmem:[%s756] sm:$0xff]
    %v759 = vsel %vm382, %v757, 0
    %761 = vmatpush.msra.mxu0 0.0
    %762 = vmatpush.msra.mxu0 0.0
    %763 = vmatpush.msra.mxu0 0.0
    %764 = vmatpush.msra.mxu0 0.0
    %765 = vmatpush.msra.mxu0 %v98
    %766 = vmatpush.msra.mxu0 %v97
    %767 = vmatpush.msra.mxu0 %v96
    %768 = vmatpush.msra.mxu0 %v95
    %769 = vmatpush.msra.mxu0 %v94
    %770 = vmatpush.msra.mxu0 %v93
    %771 = vmatpush.msra.mxu0 %v92
    %772 = vmatpush.msra.mxu0 %v91
    %773 = vmatpush.msra.mxu0 %v380
    %774 = vmatpush.msra.mxu0 %v379
    %775 = vmatpush.msra.mxu0 %v378
    %776 = vmatpush.msra.mxu0 %v377
    %777 = vmatmul.f32.gmra.mxu0 %v759
    %v778 = vpop.f32.mrf.mxu0
    %v779 = vadd.f32 0.0, %v778
    %780 = vdwg.mxu0
    %v781 = vld [vmem:[%s9] sm:$0xff]
    %v782 = vld [vmem:[%s9 + $0x8] sm:$0xff]
    %v783 = vld [vmem:[%s9 + $0x10] sm:$0xff]
    %v784 = vld [vmem:[%s9 + $0x18] sm:$0xff]
    %v785 = vld [vmem:[%s10] sm:$0xff]
    %v786 = vld [vmem:[%s10 + $0x8] sm:$0xff]
    %v787 = vld [vmem:[%s10 + $0x10] sm:$0xff]
    %v788 = vld [vmem:[%s10 + $0x18] sm:$0xff]
    %790 = vset.pattern.permute.xlu0 0
    %791 = vperm.xlu0 %790, %v785
    %v792 = vpop.permute.xlu0 %791
    %795 = vset.pattern.permute.xlu0 0
    %796 = vperm.xlu0 %795, %v786
    %v797 = vpop.permute.xlu0 %796
    %800 = vset.pattern.permute.xlu0 0
    %801 = vperm.xlu0 %800, %v787
    %v802 = vpop.permute.xlu0 %801
    %805 = vset.pattern.permute.xlu0 0
    %806 = vperm.xlu0 %805, %v788
    %v807 = vpop.permute.xlu0 %806
    %vm809 = vcmask 64512
    %v811 = vsel %vm809, %v781, 0
    %v814 = vsel %vm809, %v782, 0
    %v817 = vsel %vm809, %v783, 0
    %v820 = vsel %vm809, %v784, 0
    %822 = vmatpush.msra.mxu0 0.0
    %823 = vmatpush.msra.mxu0 0.0
    %824 = vmatpush.msra.mxu0 0.0
    %825 = vmatpush.msra.mxu0 0.0
    %826 = vmatpush.msra.mxu0 0.0
    %827 = vmatpush.msra.mxu0 0.0
    %828 = vmatpush.msra.mxu0 0.0
    %829 = vmatpush.msra.mxu0 0.0
    %830 = vmatpush.msra.mxu0 0.0
    %831 = vmatpush.msra.mxu0 0.0
    %832 = vmatpush.msra.mxu0 0.0
    %833 = vmatpush.msra.mxu0 0.0
    %834 = vmatpush.msra.mxu0 0.0
    %835 = vmatpush.msra.mxu0 0.0
    %836 = vmatpush.msra.mxu0 0.0
    %837 = vmatpush.msra.mxu0 %v404
    %838 = vmatmul.f32.gmra.mxu0 %v811
    %v839 = vpop.f32.mrf.mxu0
    %v840 = vadd.f32 %v792, %v839
    %841 = vmatmul.f32.gmra.mxu0 %v814
    %v842 = vpop.f32.mrf.mxu0
    %v843 = vadd.f32 %v797, %v842
    %844 = vmatmul.f32.gmra.mxu0 %v817
    %v845 = vpop.f32.mrf.mxu0
    %v846 = vadd.f32 %v802, %v845
    %847 = vmatmul.f32.gmra.mxu0 %v820
    %v848 = vpop.f32.mrf.mxu0
    %v849 = vadd.f32 %v807, %v848
    %850 = vdwg.mxu0
    %851 = vmatpush.msra.mxu0 0.0
    %852 = vmatpush.msra.mxu0 0.0
    %853 = vmatpush.msra.mxu0 0.0
    %854 = vmatpush.msra.mxu0 0.0
    %855 = vmatpush.msra.mxu0 0.0
    %856 = vmatpush.msra.mxu0 0.0
    %857 = vmatpush.msra.mxu0 0.0
    %858 = vmatpush.msra.mxu0 0.0
    %859 = vmatpush.msra.mxu0 0.0
    %860 = vmatpush.msra.mxu0 0.0
    %861 = vmatpush.msra.mxu0 0.0
    %862 = vmatpush.msra.mxu0 0.0
    %863 = vmatpush.msra.mxu0 0.0
    %864 = vmatpush.msra.mxu0 0.0
    %865 = vmatpush.msra.mxu0 0.0
    %866 = vmatpush.msra.mxu0 %v429
    %867 = vmatmul.f32.gmra.mxu0 %v811
    %v868 = vpop.f32.mrf.mxu0
    %v869 = vadd.f32 %v792, %v868
    %870 = vmatmul.f32.gmra.mxu0 %v814
    %v871 = vpop.f32.mrf.mxu0
    %v872 = vadd.f32 %v797, %v871
    %873 = vmatmul.f32.gmra.mxu0 %v817
    %v874 = vpop.f32.mrf.mxu0
    %v875 = vadd.f32 %v802, %v874
    %876 = vmatmul.f32.gmra.mxu0 %v820
    %v877 = vpop.f32.mrf.mxu0
    %v878 = vadd.f32 %v807, %v877
    %879 = vdwg.mxu0
    %880 = vmatpush.msra.mxu0 0.0
    %881 = vmatpush.msra.mxu0 0.0
    %882 = vmatpush.msra.mxu0 0.0
    %883 = vmatpush.msra.mxu0 0.0
    %884 = vmatpush.msra.mxu0 0.0
    %885 = vmatpush.msra.mxu0 0.0
    %886 = vmatpush.msra.mxu0 0.0
    %887 = vmatpush.msra.mxu0 0.0
    %888 = vmatpush.msra.mxu0 0.0
    %889 = vmatpush.msra.mxu0 0.0
    %890 = vmatpush.msra.mxu0 0.0
    %891 = vmatpush.msra.mxu0 0.0
    %892 = vmatpush.msra.mxu0 0.0
    %893 = vmatpush.msra.mxu0 0.0
    %894 = vmatpush.msra.mxu0 0.0
    %895 = vmatpush.msra.mxu0 %v454
    %896 = vmatmul.f32.gmra.mxu0 %v811
    %v897 = vpop.f32.mrf.mxu0
    %v898 = vadd.f32 %v792, %v897
    %899 = vmatmul.f32.gmra.mxu0 %v814
    %v900 = vpop.f32.mrf.mxu0
    %v901 = vadd.f32 %v797, %v900
    %902 = vmatmul.f32.gmra.mxu0 %v817
    %v903 = vpop.f32.mrf.mxu0
    %v904 = vadd.f32 %v802, %v903
    %905 = vmatmul.f32.gmra.mxu0 %v820
    %v906 = vpop.f32.mrf.mxu0
    %v907 = vadd.f32 %v807, %v906
    %908 = vdwg.mxu0
    %909 = vmatpush.msra.mxu0 0.0
    %910 = vmatpush.msra.mxu0 0.0
    %911 = vmatpush.msra.mxu0 0.0
    %912 = vmatpush.msra.mxu0 0.0
    %913 = vmatpush.msra.mxu0 0.0
    %914 = vmatpush.msra.mxu0 0.0
    %915 = vmatpush.msra.mxu0 0.0
    %916 = vmatpush.msra.mxu0 0.0
    %917 = vmatpush.msra.mxu0 0.0
    %918 = vmatpush.msra.mxu0 0.0
    %919 = vmatpush.msra.mxu0 0.0
    %920 = vmatpush.msra.mxu0 0.0
    %921 = vmatpush.msra.mxu0 0.0
    %922 = vmatpush.msra.mxu0 0.0
    %923 = vmatpush.msra.mxu0 0.0
    %924 = vmatpush.msra.mxu0 %v479
    %925 = vmatmul.f32.gmra.mxu0 %v811
    %v926 = vpop.f32.mrf.mxu0
    %v927 = vadd.f32 %v792, %v926
    %928 = vmatmul.f32.gmra.mxu0 %v814
    %v929 = vpop.f32.mrf.mxu0
    %v930 = vadd.f32 %v797, %v929
    %931 = vmatmul.f32.gmra.mxu0 %v817
    %v932 = vpop.f32.mrf.mxu0
    %v933 = vadd.f32 %v802, %v932
    %934 = vmatmul.f32.gmra.mxu0 %v820
    %v935 = vpop.f32.mrf.mxu0
    %v936 = vadd.f32 %v807, %v935
    %937 = vdwg.mxu0
    %938 = vmatpush.msra.mxu0 0.0
    %939 = vmatpush.msra.mxu0 0.0
    %940 = vmatpush.msra.mxu0 0.0
    %941 = vmatpush.msra.mxu0 0.0
    %942 = vmatpush.msra.mxu0 0.0
    %943 = vmatpush.msra.mxu0 0.0
    %944 = vmatpush.msra.mxu0 0.0
    %945 = vmatpush.msra.mxu0 0.0
    %946 = vmatpush.msra.mxu0 0.0
    %947 = vmatpush.msra.mxu0 0.0
    %948 = vmatpush.msra.mxu0 0.0
    %949 = vmatpush.msra.mxu0 0.0
    %950 = vmatpush.msra.mxu0 0.0
    %951 = vmatpush.msra.mxu0 0.0
    %952 = vmatpush.msra.mxu0 0.0
    %953 = vmatpush.msra.mxu0 %v504
    %954 = vmatmul.f32.gmra.mxu0 %v811
    %v955 = vpop.f32.mrf.mxu0
    %v956 = vadd.f32 %v792, %v955
    %957 = vmatmul.f32.gmra.mxu0 %v814
    %v958 = vpop.f32.mrf.mxu0
    %v959 = vadd.f32 %v797, %v958
    %960 = vmatmul.f32.gmra.mxu0 %v817
    %v961 = vpop.f32.mrf.mxu0
    %v962 = vadd.f32 %v802, %v961
    %963 = vmatmul.f32.gmra.mxu0 %v820
    %v964 = vpop.f32.mrf.mxu0
    %v965 = vadd.f32 %v807, %v964
    %966 = vdwg.mxu0
    %967 = vmatpush.msra.mxu0 0.0
    %968 = vmatpush.msra.mxu0 0.0
    %969 = vmatpush.msra.mxu0 0.0
    %970 = vmatpush.msra.mxu0 0.0
    %971 = vmatpush.msra.mxu0 0.0
    %972 = vmatpush.msra.mxu0 0.0
    %973 = vmatpush.msra.mxu0 0.0
    %974 = vmatpush.msra.mxu0 0.0
    %975 = vmatpush.msra.mxu0 0.0
    %976 = vmatpush.msra.mxu0 0.0
    %977 = vmatpush.msra.mxu0 0.0
    %978 = vmatpush.msra.mxu0 0.0
    %979 = vmatpush.msra.mxu0 0.0
    %980 = vmatpush.msra.mxu0 0.0
    %981 = vmatpush.msra.mxu0 0.0
    %982 = vmatpush.msra.mxu0 %v529
    %983 = vmatmul.f32.gmra.mxu0 %v811
    %v984 = vpop.f32.mrf.mxu0
    %v985 = vadd.f32 %v792, %v984
    %986 = vmatmul.f32.gmra.mxu0 %v814
    %v987 = vpop.f32.mrf.mxu0
    %v988 = vadd.f32 %v797, %v987
    %989 = vmatmul.f32.gmra.mxu0 %v817
    %v990 = vpop.f32.mrf.mxu0
    %v991 = vadd.f32 %v802, %v990
    %992 = vmatmul.f32.gmra.mxu0 %v820
    %v993 = vpop.f32.mrf.mxu0
    %v994 = vadd.f32 %v807, %v993
    %995 = vdwg.mxu0
    %996 = vmatpush.msra.mxu0 0.0
    %997 = vmatpush.msra.mxu0 0.0
    %998 = vmatpush.msra.mxu0 0.0
    %999 = vmatpush.msra.mxu0 0.0
    %1000 = vmatpush.msra.mxu0 0.0
    %1001 = vmatpush.msra.mxu0 0.0
    %1002 = vmatpush.msra.mxu0 0.0
    %1003 = vmatpush.msra.mxu0 0.0
    %1004 = vmatpush.msra.mxu0 0.0
    %1005 = vmatpush.msra.mxu0 0.0
    %1006 = vmatpush.msra.mxu0 0.0
    %1007 = vmatpush.msra.mxu0 0.0
    %1008 = vmatpush.msra.mxu0 0.0
    %1009 = vmatpush.msra.mxu0 0.0
    %1010 = vmatpush.msra.mxu0 0.0
    %1011 = vmatpush.msra.mxu0 %v554
    %1012 = vmatmul.f32.gmra.mxu0 %v811
    %v1013 = vpop.f32.mrf.mxu0
    %v1014 = vadd.f32 %v792, %v1013
    %1015 = vmatmul.f32.gmra.mxu0 %v814
    %v1016 = vpop.f32.mrf.mxu0
    %v1017 = vadd.f32 %v797, %v1016
    %1018 = vmatmul.f32.gmra.mxu0 %v817
    %v1019 = vpop.f32.mrf.mxu0
    %v1020 = vadd.f32 %v802, %v1019
    %1021 = vmatmul.f32.gmra.mxu0 %v820
    %v1022 = vpop.f32.mrf.mxu0
    %v1023 = vadd.f32 %v807, %v1022
    %1024 = vdwg.mxu0
    %1025 = vmatpush.msra.mxu0 0.0
    %1026 = vmatpush.msra.mxu0 0.0
    %1027 = vmatpush.msra.mxu0 0.0
    %1028 = vmatpush.msra.mxu0 0.0
    %1029 = vmatpush.msra.mxu0 0.0
    %1030 = vmatpush.msra.mxu0 0.0
    %1031 = vmatpush.msra.mxu0 0.0
    %1032 = vmatpush.msra.mxu0 0.0
    %1033 = vmatpush.msra.mxu0 0.0
    %1034 = vmatpush.msra.mxu0 0.0
    %1035 = vmatpush.msra.mxu0 0.0
    %1036 = vmatpush.msra.mxu0 0.0
    %1037 = vmatpush.msra.mxu0 0.0
    %1038 = vmatpush.msra.mxu0 0.0
    %1039 = vmatpush.msra.mxu0 0.0
    %1040 = vmatpush.msra.mxu0 %v579
    %1041 = vmatmul.f32.gmra.mxu0 %v811
    %v1042 = vpop.f32.mrf.mxu0
    %v1043 = vadd.f32 %v792, %v1042
    %1044 = vmatmul.f32.gmra.mxu0 %v814
    %v1045 = vpop.f32.mrf.mxu0
    %v1046 = vadd.f32 %v797, %v1045
    %1047 = vmatmul.f32.gmra.mxu0 %v817
    %v1048 = vpop.f32.mrf.mxu0
    %v1049 = vadd.f32 %v802, %v1048
    %1050 = vmatmul.f32.gmra.mxu0 %v820
    %v1051 = vpop.f32.mrf.mxu0
    %v1052 = vadd.f32 %v807, %v1051
    %1053 = vdwg.mxu0
    %1054 = vmatpush.msra.mxu0 0.0
    %1055 = vmatpush.msra.mxu0 0.0
    %1056 = vmatpush.msra.mxu0 0.0
    %1057 = vmatpush.msra.mxu0 0.0
    %1058 = vmatpush.msra.mxu0 0.0
    %1059 = vmatpush.msra.mxu0 0.0
    %1060 = vmatpush.msra.mxu0 0.0
    %1061 = vmatpush.msra.mxu0 0.0
    %1062 = vmatpush.msra.mxu0 0.0
    %1063 = vmatpush.msra.mxu0 0.0
    %1064 = vmatpush.msra.mxu0 0.0
    %1065 = vmatpush.msra.mxu0 0.0
    %1066 = vmatpush.msra.mxu0 0.0
    %1067 = vmatpush.msra.mxu0 0.0
    %1068 = vmatpush.msra.mxu0 0.0
    %1069 = vmatpush.msra.mxu0 %v604
    %1070 = vmatmul.f32.gmra.mxu0 %v811
    %v1071 = vpop.f32.mrf.mxu0
    %v1072 = vadd.f32 %v792, %v1071
    %1073 = vmatmul.f32.gmra.mxu0 %v814
    %v1074 = vpop.f32.mrf.mxu0
    %v1075 = vadd.f32 %v797, %v1074
    %1076 = vmatmul.f32.gmra.mxu0 %v817
    %v1077 = vpop.f32.mrf.mxu0
    %v1078 = vadd.f32 %v802, %v1077
    %1079 = vmatmul.f32.gmra.mxu0 %v820
    %v1080 = vpop.f32.mrf.mxu0
    %v1081 = vadd.f32 %v807, %v1080
    %1082 = vdwg.mxu0
    %1083 = vmatpush.msra.mxu0 0.0
    %1084 = vmatpush.msra.mxu0 0.0
    %1085 = vmatpush.msra.mxu0 0.0
    %1086 = vmatpush.msra.mxu0 0.0
    %1087 = vmatpush.msra.mxu0 0.0
    %1088 = vmatpush.msra.mxu0 0.0
    %1089 = vmatpush.msra.mxu0 0.0
    %1090 = vmatpush.msra.mxu0 0.0
    %1091 = vmatpush.msra.mxu0 0.0
    %1092 = vmatpush.msra.mxu0 0.0
    %1093 = vmatpush.msra.mxu0 0.0
    %1094 = vmatpush.msra.mxu0 0.0
    %1095 = vmatpush.msra.mxu0 0.0
    %1096 = vmatpush.msra.mxu0 0.0
    %1097 = vmatpush.msra.mxu0 0.0
    %1098 = vmatpush.msra.mxu0 %v629
    %1099 = vmatmul.f32.gmra.mxu0 %v811
    %v1100 = vpop.f32.mrf.mxu0
    %v1101 = vadd.f32 %v792, %v1100
    %1102 = vmatmul.f32.gmra.mxu0 %v814
    %v1103 = vpop.f32.mrf.mxu0
    %v1104 = vadd.f32 %v797, %v1103
    %1105 = vmatmul.f32.gmra.mxu0 %v817
    %v1106 = vpop.f32.mrf.mxu0
    %v1107 = vadd.f32 %v802, %v1106
    %1108 = vmatmul.f32.gmra.mxu0 %v820
    %v1109 = vpop.f32.mrf.mxu0
    %v1110 = vadd.f32 %v807, %v1109
    %1111 = vdwg.mxu0
    %1112 = vmatpush.msra.mxu0 0.0
    %1113 = vmatpush.msra.mxu0 0.0
    %1114 = vmatpush.msra.mxu0 0.0
    %1115 = vmatpush.msra.mxu0 0.0
    %1116 = vmatpush.msra.mxu0 0.0
    %1117 = vmatpush.msra.mxu0 0.0
    %1118 = vmatpush.msra.mxu0 0.0
    %1119 = vmatpush.msra.mxu0 0.0
    %1120 = vmatpush.msra.mxu0 0.0
    %1121 = vmatpush.msra.mxu0 0.0
    %1122 = vmatpush.msra.mxu0 0.0
    %1123 = vmatpush.msra.mxu0 0.0
    %1124 = vmatpush.msra.mxu0 0.0
    %1125 = vmatpush.msra.mxu0 0.0
    %1126 = vmatpush.msra.mxu0 0.0
    %1127 = vmatpush.msra.mxu0 %v654
    %1128 = vmatmul.f32.gmra.mxu0 %v811
    %v1129 = vpop.f32.mrf.mxu0
    %v1130 = vadd.f32 %v792, %v1129
    %1131 = vmatmul.f32.gmra.mxu0 %v814
    %v1132 = vpop.f32.mrf.mxu0
    %v1133 = vadd.f32 %v797, %v1132
    %1134 = vmatmul.f32.gmra.mxu0 %v817
    %v1135 = vpop.f32.mrf.mxu0
    %v1136 = vadd.f32 %v802, %v1135
    %1137 = vmatmul.f32.gmra.mxu0 %v820
    %v1138 = vpop.f32.mrf.mxu0
    %v1139 = vadd.f32 %v807, %v1138
    %1140 = vdwg.mxu0
    %1141 = vmatpush.msra.mxu0 0.0
    %1142 = vmatpush.msra.mxu0 0.0
    %1143 = vmatpush.msra.mxu0 0.0
    %1144 = vmatpush.msra.mxu0 0.0
    %1145 = vmatpush.msra.mxu0 0.0
    %1146 = vmatpush.msra.mxu0 0.0
    %1147 = vmatpush.msra.mxu0 0.0
    %1148 = vmatpush.msra.mxu0 0.0
    %1149 = vmatpush.msra.mxu0 0.0
    %1150 = vmatpush.msra.mxu0 0.0
    %1151 = vmatpush.msra.mxu0 0.0
    %1152 = vmatpush.msra.mxu0 0.0
    %1153 = vmatpush.msra.mxu0 0.0
    %1154 = vmatpush.msra.mxu0 0.0
    %1155 = vmatpush.msra.mxu0 0.0
    %1156 = vmatpush.msra.mxu0 %v679
    %1157 = vmatmul.f32.gmra.mxu0 %v811
    %v1158 = vpop.f32.mrf.mxu0
    %v1159 = vadd.f32 %v792, %v1158
    %1160 = vmatmul.f32.gmra.mxu0 %v814
    %v1161 = vpop.f32.mrf.mxu0
    %v1162 = vadd.f32 %v797, %v1161
    %1163 = vmatmul.f32.gmra.mxu0 %v817
    %v1164 = vpop.f32.mrf.mxu0
    %v1165 = vadd.f32 %v802, %v1164
    %1166 = vmatmul.f32.gmra.mxu0 %v820
    %v1167 = vpop.f32.mrf.mxu0
    %v1168 = vadd.f32 %v807, %v1167
    %1169 = vdwg.mxu0
    %1170 = vmatpush.msra.mxu0 0.0
    %1171 = vmatpush.msra.mxu0 0.0
    %1172 = vmatpush.msra.mxu0 0.0
    %1173 = vmatpush.msra.mxu0 0.0
    %1174 = vmatpush.msra.mxu0 0.0
    %1175 = vmatpush.msra.mxu0 0.0
    %1176 = vmatpush.msra.mxu0 0.0
    %1177 = vmatpush.msra.mxu0 0.0
    %1178 = vmatpush.msra.mxu0 0.0
    %1179 = vmatpush.msra.mxu0 0.0
    %1180 = vmatpush.msra.mxu0 0.0
    %1181 = vmatpush.msra.mxu0 0.0
    %1182 = vmatpush.msra.mxu0 0.0
    %1183 = vmatpush.msra.mxu0 0.0
    %1184 = vmatpush.msra.mxu0 0.0
    %1185 = vmatpush.msra.mxu0 %v704
    %1186 = vmatmul.f32.gmra.mxu0 %v811
    %v1187 = vpop.f32.mrf.mxu0
    %v1188 = vadd.f32 %v792, %v1187
    %1189 = vmatmul.f32.gmra.mxu0 %v814
    %v1190 = vpop.f32.mrf.mxu0
    %v1191 = vadd.f32 %v797, %v1190
    %1192 = vmatmul.f32.gmra.mxu0 %v817
    %v1193 = vpop.f32.mrf.mxu0
    %v1194 = vadd.f32 %v802, %v1193
    %1195 = vmatmul.f32.gmra.mxu0 %v820
    %v1196 = vpop.f32.mrf.mxu0
    %v1197 = vadd.f32 %v807, %v1196
    %1198 = vdwg.mxu0
    %1199 = vmatpush.msra.mxu0 0.0
    %1200 = vmatpush.msra.mxu0 0.0
    %1201 = vmatpush.msra.mxu0 0.0
    %1202 = vmatpush.msra.mxu0 0.0
    %1203 = vmatpush.msra.mxu0 0.0
    %1204 = vmatpush.msra.mxu0 0.0
    %1205 = vmatpush.msra.mxu0 0.0
    %1206 = vmatpush.msra.mxu0 0.0
    %1207 = vmatpush.msra.mxu0 0.0
    %1208 = vmatpush.msra.mxu0 0.0
    %1209 = vmatpush.msra.mxu0 0.0
    %1210 = vmatpush.msra.mxu0 0.0
    %1211 = vmatpush.msra.mxu0 0.0
    %1212 = vmatpush.msra.mxu0 0.0
    %1213 = vmatpush.msra.mxu0 0.0
    %1214 = vmatpush.msra.mxu0 %v729
    %1215 = vmatmul.f32.gmra.mxu0 %v811
    %v1216 = vpop.f32.mrf.mxu0
    %v1217 = vadd.f32 %v792, %v1216
    %1218 = vmatmul.f32.gmra.mxu0 %v814
    %v1219 = vpop.f32.mrf.mxu0
    %v1220 = vadd.f32 %v797, %v1219
    %1221 = vmatmul.f32.gmra.mxu0 %v817
    %v1222 = vpop.f32.mrf.mxu0
    %v1223 = vadd.f32 %v802, %v1222
    %1224 = vmatmul.f32.gmra.mxu0 %v820
    %v1225 = vpop.f32.mrf.mxu0
    %v1226 = vadd.f32 %v807, %v1225
    %1227 = vdwg.mxu0
    %1228 = vmatpush.msra.mxu0 0.0
    %1229 = vmatpush.msra.mxu0 0.0
    %1230 = vmatpush.msra.mxu0 0.0
    %1231 = vmatpush.msra.mxu0 0.0
    %1232 = vmatpush.msra.mxu0 0.0
    %1233 = vmatpush.msra.mxu0 0.0
    %1234 = vmatpush.msra.mxu0 0.0
    %1235 = vmatpush.msra.mxu0 0.0
    %1236 = vmatpush.msra.mxu0 0.0
    %1237 = vmatpush.msra.mxu0 0.0
    %1238 = vmatpush.msra.mxu0 0.0
    %1239 = vmatpush.msra.mxu0 0.0
    %1240 = vmatpush.msra.mxu0 0.0
    %1241 = vmatpush.msra.mxu0 0.0
    %1242 = vmatpush.msra.mxu0 0.0
    %1243 = vmatpush.msra.mxu0 %v754
    %1244 = vmatmul.f32.gmra.mxu0 %v811
    %v1245 = vpop.f32.mrf.mxu0
    %v1246 = vadd.f32 %v792, %v1245
    %1247 = vmatmul.f32.gmra.mxu0 %v814
    %v1248 = vpop.f32.mrf.mxu0
    %v1249 = vadd.f32 %v797, %v1248
    %1250 = vmatmul.f32.gmra.mxu0 %v817
    %v1251 = vpop.f32.mrf.mxu0
    %v1252 = vadd.f32 %v802, %v1251
    %1253 = vmatmul.f32.gmra.mxu0 %v820
    %v1254 = vpop.f32.mrf.mxu0
    %v1255 = vadd.f32 %v807, %v1254
    %1256 = vdwg.mxu0
    %1257 = vmatpush.msra.mxu0 0.0
    %1258 = vmatpush.msra.mxu0 0.0
    %1259 = vmatpush.msra.mxu0 0.0
    %1260 = vmatpush.msra.mxu0 0.0
    %1261 = vmatpush.msra.mxu0 0.0
    %1262 = vmatpush.msra.mxu0 0.0
    %1263 = vmatpush.msra.mxu0 0.0
    %1264 = vmatpush.msra.mxu0 0.0
    %1265 = vmatpush.msra.mxu0 0.0
    %1266 = vmatpush.msra.mxu0 0.0
    %1267 = vmatpush.msra.mxu0 0.0
    %1268 = vmatpush.msra.mxu0 0.0
    %1269 = vmatpush.msra.mxu0 0.0
    %1270 = vmatpush.msra.mxu0 0.0
    %1271 = vmatpush.msra.mxu0 0.0
    %1272 = vmatpush.msra.mxu0 %v779
    %1273 = vmatmul.f32.gmra.mxu0 %v811
    %v1274 = vpop.f32.mrf.mxu0
    %v1275 = vadd.f32 %v792, %v1274
    %1276 = vmatmul.f32.gmra.mxu0 %v814
    %v1277 = vpop.f32.mrf.mxu0
    %v1278 = vadd.f32 %v797, %v1277
    %1279 = vmatmul.f32.gmra.mxu0 %v817
    %v1280 = vpop.f32.mrf.mxu0
    %v1281 = vadd.f32 %v802, %v1280
    %1282 = vmatmul.f32.gmra.mxu0 %v820
    %v1283 = vpop.f32.mrf.mxu0
    %v1284 = vadd.f32 %v807, %v1283
    %1285 = vdwg.mxu0
    %vm1286 = vcmp.ge.f32.partialorder %v840, 0.0
    %vm1287 = vcmp.ge.f32.partialorder %v869, 0.0
    %vm1288 = vcmp.ge.f32.partialorder %v898, 0.0
    %vm1289 = vcmp.ge.f32.partialorder %v927, 0.0
    %vm1290 = vcmp.ge.f32.partialorder %v956, 0.0
    %vm1291 = vcmp.ge.f32.partialorder %v985, 0.0
    %vm1292 = vcmp.ge.f32.partialorder %v1014, 0.0
    %vm1293 = vcmp.ge.f32.partialorder %v1043, 0.0
    %vm1294 = vcmp.ge.f32.partialorder %v1072, 0.0
    %vm1295 = vcmp.ge.f32.partialorder %v1101, 0.0
    %vm1296 = vcmp.ge.f32.partialorder %v1130, 0.0
    %vm1297 = vcmp.ge.f32.partialorder %v1159, 0.0
    %vm1298 = vcmp.ge.f32.partialorder %v1188, 0.0
    %vm1299 = vcmp.ge.f32.partialorder %v1217, 0.0
    %vm1300 = vcmp.ge.f32.partialorder %v1246, 0.0
    %vm1301 = vcmp.ge.f32.partialorder %v1275, 0.0
    %vm1302 = vcmp.ge.f32.partialorder %v843, 0.0
    %vm1303 = vcmp.ge.f32.partialorder %v872, 0.0
    %vm1304 = vcmp.ge.f32.partialorder %v901, 0.0
    %vm1305 = vcmp.ge.f32.partialorder %v930, 0.0
    %vm1306 = vcmp.ge.f32.partialorder %v959, 0.0
    %vm1307 = vcmp.ge.f32.partialorder %v988, 0.0
    %vm1308 = vcmp.ge.f32.partialorder %v1017, 0.0
    %vm1309 = vcmp.ge.f32.partialorder %v1046, 0.0
    %vm1310 = vcmp.ge.f32.partialorder %v1075, 0.0
    %vm1311 = vcmp.ge.f32.partialorder %v1104, 0.0
    %vm1312 = vcmp.ge.f32.partialorder %v1133, 0.0
    %vm1313 = vcmp.ge.f32.partialorder %v1162, 0.0
    %vm1314 = vcmp.ge.f32.partialorder %v1191, 0.0
    %vm1315 = vcmp.ge.f32.partialorder %v1220, 0.0
    %vm1316 = vcmp.ge.f32.partialorder %v1249, 0.0
    %vm1317 = vcmp.ge.f32.partialorder %v1278, 0.0
    %vm1318 = vcmp.ge.f32.partialorder %v846, 0.0
    %vm1319 = vcmp.ge.f32.partialorder %v875, 0.0
    %vm1320 = vcmp.ge.f32.partialorder %v904, 0.0
    %vm1321 = vcmp.ge.f32.partialorder %v933, 0.0
    %vm1322 = vcmp.ge.f32.partialorder %v962, 0.0
    %vm1323 = vcmp.ge.f32.partialorder %v991, 0.0
    %vm1324 = vcmp.ge.f32.partialorder %v1020, 0.0
    %vm1325 = vcmp.ge.f32.partialorder %v1049, 0.0
    %vm1326 = vcmp.ge.f32.partialorder %v1078, 0.0
    %vm1327 = vcmp.ge.f32.partialorder %v1107, 0.0
    %vm1328 = vcmp.ge.f32.partialorder %v1136, 0.0
    %vm1329 = vcmp.ge.f32.partialorder %v1165, 0.0
    %vm1330 = vcmp.ge.f32.partialorder %v1194, 0.0
    %vm1331 = vcmp.ge.f32.partialorder %v1223, 0.0
    %vm1332 = vcmp.ge.f32.partialorder %v1252, 0.0
    %vm1333 = vcmp.ge.f32.partialorder %v1281, 0.0
    %vm1334 = vcmp.ge.f32.partialorder %v849, 0.0
    %vm1335 = vcmp.ge.f32.partialorder %v878, 0.0
    %vm1336 = vcmp.ge.f32.partialorder %v907, 0.0
    %vm1337 = vcmp.ge.f32.partialorder %v936, 0.0
    %vm1338 = vcmp.ge.f32.partialorder %v965, 0.0
    %vm1339 = vcmp.ge.f32.partialorder %v994, 0.0
    %vm1340 = vcmp.ge.f32.partialorder %v1023, 0.0
    %vm1341 = vcmp.ge.f32.partialorder %v1052, 0.0
    %vm1342 = vcmp.ge.f32.partialorder %v1081, 0.0
    %vm1343 = vcmp.ge.f32.partialorder %v1110, 0.0
    %vm1344 = vcmp.ge.f32.partialorder %v1139, 0.0
    %vm1345 = vcmp.ge.f32.partialorder %v1168, 0.0
    %vm1346 = vcmp.ge.f32.partialorder %v1197, 0.0
    %vm1347 = vcmp.ge.f32.partialorder %v1226, 0.0
    %vm1348 = vcmp.ge.f32.partialorder %v1255, 0.0
    %vm1349 = vcmp.ge.f32.partialorder %v1284, 0.0
    %v1350 = vmul.f32 %v840, 0.01
    %v1351 = vmul.f32 %v869, 0.01
    %v1352 = vmul.f32 %v898, 0.01
    %v1353 = vmul.f32 %v927, 0.01
    %v1354 = vmul.f32 %v956, 0.01
    %v1355 = vmul.f32 %v985, 0.01
    %v1356 = vmul.f32 %v1014, 0.01
    %v1357 = vmul.f32 %v1043, 0.01
    %v1358 = vmul.f32 %v1072, 0.01
    %v1359 = vmul.f32 %v1101, 0.01
    %v1360 = vmul.f32 %v1130, 0.01
    %v1361 = vmul.f32 %v1159, 0.01
    %v1362 = vmul.f32 %v1188, 0.01
    %v1363 = vmul.f32 %v1217, 0.01
    %v1364 = vmul.f32 %v1246, 0.01
    %v1365 = vmul.f32 %v1275, 0.01
    %v1366 = vmul.f32 %v843, 0.01
    %v1367 = vmul.f32 %v872, 0.01
    %v1368 = vmul.f32 %v901, 0.01
    %v1369 = vmul.f32 %v930, 0.01
    %v1370 = vmul.f32 %v959, 0.01
    %v1371 = vmul.f32 %v988, 0.01
    %v1372 = vmul.f32 %v1017, 0.01
    %v1373 = vmul.f32 %v1046, 0.01
    %v1374 = vmul.f32 %v1075, 0.01
    %v1375 = vmul.f32 %v1104, 0.01
    %v1376 = vmul.f32 %v1133, 0.01
    %v1377 = vmul.f32 %v1162, 0.01
    %v1378 = vmul.f32 %v1191, 0.01
    %v1379 = vmul.f32 %v1220, 0.01
    %v1380 = vmul.f32 %v1249, 0.01
    %v1381 = vmul.f32 %v1278, 0.01
    %v1382 = vmul.f32 %v846, 0.01
    %v1383 = vmul.f32 %v875, 0.01
    %v1384 = vmul.f32 %v904, 0.01
    %v1385 = vmul.f32 %v933, 0.01
    %v1386 = vmul.f32 %v962, 0.01
    %v1387 = vmul.f32 %v991, 0.01
    %v1388 = vmul.f32 %v1020, 0.01
    %v1389 = vmul.f32 %v1049, 0.01
    %v1390 = vmul.f32 %v1078, 0.01
    %v1391 = vmul.f32 %v1107, 0.01
    %v1392 = vmul.f32 %v1136, 0.01
    %v1393 = vmul.f32 %v1165, 0.01
    %v1394 = vmul.f32 %v1194, 0.01
    %v1395 = vmul.f32 %v1223, 0.01
    %v1396 = vmul.f32 %v1252, 0.01
    %v1397 = vmul.f32 %v1281, 0.01
    %v1398 = vmul.f32 %v849, 0.01
    %v1399 = vmul.f32 %v878, 0.01
    %v1400 = vmul.f32 %v907, 0.01
    %v1401 = vmul.f32 %v936, 0.01
    %v1402 = vmul.f32 %v965, 0.01
    %v1403 = vmul.f32 %v994, 0.01
    %v1404 = vmul.f32 %v1023, 0.01
    %v1405 = vmul.f32 %v1052, 0.01
    %v1406 = vmul.f32 %v1081, 0.01
    %v1407 = vmul.f32 %v1110, 0.01
    %v1408 = vmul.f32 %v1139, 0.01
    %v1409 = vmul.f32 %v1168, 0.01
    %v1410 = vmul.f32 %v1197, 0.01
    %v1411 = vmul.f32 %v1226, 0.01
    %v1412 = vmul.f32 %v1255, 0.01
    %v1413 = vmul.f32 %v1284, 0.01
    %v1414 = vsel %vm1286, %v840, %v1350
    %v1415 = vsel %vm1287, %v869, %v1351
    %v1416 = vsel %vm1288, %v898, %v1352
    %v1417 = vsel %vm1289, %v927, %v1353
    %v1418 = vsel %vm1290, %v956, %v1354
    %v1419 = vsel %vm1291, %v985, %v1355
    %v1420 = vsel %vm1292, %v1014, %v1356
    %v1421 = vsel %vm1293, %v1043, %v1357
    %v1422 = vsel %vm1294, %v1072, %v1358
    %v1423 = vsel %vm1295, %v1101, %v1359
    %v1424 = vsel %vm1296, %v1130, %v1360
    %v1425 = vsel %vm1297, %v1159, %v1361
    %v1426 = vsel %vm1298, %v1188, %v1362
    %v1427 = vsel %vm1299, %v1217, %v1363
    %v1428 = vsel %vm1300, %v1246, %v1364
    %v1429 = vsel %vm1301, %v1275, %v1365
    %v1430 = vsel %vm1302, %v843, %v1366
    %v1431 = vsel %vm1303, %v872, %v1367
    %v1432 = vsel %vm1304, %v901, %v1368
    %v1433 = vsel %vm1305, %v930, %v1369
    %v1434 = vsel %vm1306, %v959, %v1370
    %v1435 = vsel %vm1307, %v988, %v1371
    %v1436 = vsel %vm1308, %v1017, %v1372
    %v1437 = vsel %vm1309, %v1046, %v1373
    %v1438 = vsel %vm1310, %v1075, %v1374
    %v1439 = vsel %vm1311, %v1104, %v1375
    %v1440 = vsel %vm1312, %v1133, %v1376
    %v1441 = vsel %vm1313, %v1162, %v1377
    %v1442 = vsel %vm1314, %v1191, %v1378
    %v1443 = vsel %vm1315, %v1220, %v1379
    %v1444 = vsel %vm1316, %v1249, %v1380
    %v1445 = vsel %vm1317, %v1278, %v1381
    %v1446 = vsel %vm1318, %v846, %v1382
    %v1447 = vsel %vm1319, %v875, %v1383
    %v1448 = vsel %vm1320, %v904, %v1384
    %v1449 = vsel %vm1321, %v933, %v1385
    %v1450 = vsel %vm1322, %v962, %v1386
    %v1451 = vsel %vm1323, %v991, %v1387
    %v1452 = vsel %vm1324, %v1020, %v1388
    %v1453 = vsel %vm1325, %v1049, %v1389
    %v1454 = vsel %vm1326, %v1078, %v1390
    %v1455 = vsel %vm1327, %v1107, %v1391
    %v1456 = vsel %vm1328, %v1136, %v1392
    %v1457 = vsel %vm1329, %v1165, %v1393
    %v1458 = vsel %vm1330, %v1194, %v1394
    %v1459 = vsel %vm1331, %v1223, %v1395
    %v1460 = vsel %vm1332, %v1252, %v1396
    %v1461 = vsel %vm1333, %v1281, %v1397
    %v1462 = vsel %vm1334, %v849, %v1398
    %v1463 = vsel %vm1335, %v878, %v1399
    %v1464 = vsel %vm1336, %v907, %v1400
    %v1465 = vsel %vm1337, %v936, %v1401
    %v1466 = vsel %vm1338, %v965, %v1402
    %v1467 = vsel %vm1339, %v994, %v1403
    %v1468 = vsel %vm1340, %v1023, %v1404
    %v1469 = vsel %vm1341, %v1052, %v1405
    %v1470 = vsel %vm1342, %v1081, %v1406
    %v1471 = vsel %vm1343, %v1110, %v1407
    %v1472 = vsel %vm1344, %v1139, %v1408
    %v1473 = vsel %vm1345, %v1168, %v1409
    %v1474 = vsel %vm1346, %v1197, %v1410
    %v1475 = vsel %vm1347, %v1226, %v1411
    %v1476 = vsel %vm1348, %v1255, %v1412
    %v1477 = vsel %vm1349, %v1284, %v1413
    %v1478 = vld [vmem:[#allocation6] sm:$0xff]
    %v1479 = vld [vmem:[#allocation6 + $0x8] sm:$0xff]
    %v1480 = vld [vmem:[#allocation6 + $0x10] sm:$0xff]
    %v1481 = vld [vmem:[#allocation6 + $0x18] sm:$0xff]
    %v1482 = vld [vmem:[%s12] sm:$0xff]
    %v1483 = vld [vmem:[%s12 + $0x8] sm:$0xff]
    %v1484 = vld [vmem:[%s12 + $0x10] sm:$0xff]
    %v1485 = vld [vmem:[%s12 + $0x18] sm:$0xff]
    %1487 = vset.pattern.permute.xlu0 0
    %1488 = vperm.xlu0 %1487, %v1482
    %v1489 = vpop.permute.xlu0 %1488
    %1492 = vset.pattern.permute.xlu0 0
    %1493 = vperm.xlu0 %1492, %v1483
    %v1494 = vpop.permute.xlu0 %1493
    %1497 = vset.pattern.permute.xlu0 0
    %1498 = vperm.xlu0 %1497, %v1484
    %v1499 = vpop.permute.xlu0 %1498
    %1502 = vset.pattern.permute.xlu0 0
    %1503 = vperm.xlu0 %1502, %v1485
    %v1504 = vpop.permute.xlu0 %1503
    %v1507 = vsel %vm209, %v1478, 0
    %v1510 = vsel %vm209, %v1479, 0
    %v1513 = vsel %vm209, %v1480, 0
    %v1516 = vsel %vm209, %v1481, 0
    %1518 = vmatpush.msra.mxu0 0.0
    %1519 = vmatpush.msra.mxu0 0.0
    %1520 = vmatpush.msra.mxu0 0.0
    %1521 = vmatpush.msra.mxu0 0.0
    %1522 = vmatpush.msra.mxu0 0.0
    %1523 = vmatpush.msra.mxu0 0.0
    %1524 = vmatpush.msra.mxu0 0.0
    %1525 = vmatpush.msra.mxu0 0.0
    %1526 = vmatpush.msra.mxu0 0.0
    %1527 = vmatpush.msra.mxu0 0.0
    %1528 = vmatpush.msra.mxu0 0.0
    %1529 = vmatpush.msra.mxu0 0.0
    %1530 = vmatpush.msra.mxu0 %v1462
    %1531 = vmatpush.msra.mxu0 %v1446
    %1532 = vmatpush.msra.mxu0 %v1430
    %1533 = vmatpush.msra.mxu0 %v1414
    %1534 = vmatmul.f32.gmra.mxu0 %v1507
    %v1535 = vpop.f32.mrf.mxu0
    %v1536 = vadd.f32 %v1489, %v1535
    %1537 = vmatmul.f32.gmra.mxu0 %v1510
    %v1538 = vpop.f32.mrf.mxu0
    %v1539 = vadd.f32 %v1494, %v1538
    %1540 = vmatmul.f32.gmra.mxu0 %v1513
    %v1541 = vpop.f32.mrf.mxu0
    %v1542 = vadd.f32 %v1499, %v1541
    %1543 = vmatmul.f32.gmra.mxu0 %v1516
    %v1544 = vpop.f32.mrf.mxu0
    %v1545 = vadd.f32 %v1504, %v1544
    %1546 = vdwg.mxu0
    %1547 = vmatpush.msra.mxu0 0.0
    %1548 = vmatpush.msra.mxu0 0.0
    %1549 = vmatpush.msra.mxu0 0.0
    %1550 = vmatpush.msra.mxu0 0.0
    %1551 = vmatpush.msra.mxu0 0.0
    %1552 = vmatpush.msra.mxu0 0.0
    %1553 = vmatpush.msra.mxu0 0.0
    %1554 = vmatpush.msra.mxu0 0.0
    %1555 = vmatpush.msra.mxu0 0.0
    %1556 = vmatpush.msra.mxu0 0.0
    %1557 = vmatpush.msra.mxu0 0.0
    %1558 = vmatpush.msra.mxu0 0.0
    %1559 = vmatpush.msra.mxu0 %v1463
    %1560 = vmatpush.msra.mxu0 %v1447
    %1561 = vmatpush.msra.mxu0 %v1431
    %1562 = vmatpush.msra.mxu0 %v1415
    %1563 = vmatmul.f32.gmra.mxu0 %v1507
    %v1564 = vpop.f32.mrf.mxu0
    %v1565 = vadd.f32 %v1489, %v1564
    %1566 = vmatmul.f32.gmra.mxu0 %v1510
    %v1567 = vpop.f32.mrf.mxu0
    %v1568 = vadd.f32 %v1494, %v1567
    %1569 = vmatmul.f32.gmra.mxu0 %v1513
    %v1570 = vpop.f32.mrf.mxu0
    %v1571 = vadd.f32 %v1499, %v1570
    %1572 = vmatmul.f32.gmra.mxu0 %v1516
    %v1573 = vpop.f32.mrf.mxu0
    %v1574 = vadd.f32 %v1504, %v1573
    %1575 = vdwg.mxu0
    %1576 = vmatpush.msra.mxu0 0.0
    %1577 = vmatpush.msra.mxu0 0.0
    %1578 = vmatpush.msra.mxu0 0.0
    %1579 = vmatpush.msra.mxu0 0.0
    %1580 = vmatpush.msra.mxu0 0.0
    %1581 = vmatpush.msra.mxu0 0.0
    %1582 = vmatpush.msra.mxu0 0.0
    %1583 = vmatpush.msra.mxu0 0.0
    %1584 = vmatpush.msra.mxu0 0.0
    %1585 = vmatpush.msra.mxu0 0.0
    %1586 = vmatpush.msra.mxu0 0.0
    %1587 = vmatpush.msra.mxu0 0.0
    %1588 = vmatpush.msra.mxu0 %v1464
    %1589 = vmatpush.msra.mxu0 %v1448
    %1590 = vmatpush.msra.mxu0 %v1432
    %1591 = vmatpush.msra.mxu0 %v1416
    %1592 = vmatmul.f32.gmra.mxu0 %v1507
    %v1593 = vpop.f32.mrf.mxu0
    %v1594 = vadd.f32 %v1489, %v1593
    %1595 = vmatmul.f32.gmra.mxu0 %v1510
    %v1596 = vpop.f32.mrf.mxu0
    %v1597 = vadd.f32 %v1494, %v1596
    %1598 = vmatmul.f32.gmra.mxu0 %v1513
    %v1599 = vpop.f32.mrf.mxu0
    %v1600 = vadd.f32 %v1499, %v1599
    %1601 = vmatmul.f32.gmra.mxu0 %v1516
    %v1602 = vpop.f32.mrf.mxu0
    %v1603 = vadd.f32 %v1504, %v1602
    %1604 = vdwg.mxu0
    %1605 = vmatpush.msra.mxu0 0.0
    %1606 = vmatpush.msra.mxu0 0.0
    %1607 = vmatpush.msra.mxu0 0.0
    %1608 = vmatpush.msra.mxu0 0.0
    %1609 = vmatpush.msra.mxu0 0.0
    %1610 = vmatpush.msra.mxu0 0.0
    %1611 = vmatpush.msra.mxu0 0.0
    %1612 = vmatpush.msra.mxu0 0.0
    %1613 = vmatpush.msra.mxu0 0.0
    %1614 = vmatpush.msra.mxu0 0.0
    %1615 = vmatpush.msra.mxu0 0.0
    %1616 = vmatpush.msra.mxu0 0.0
    %1617 = vmatpush.msra.mxu0 %v1465
    %1618 = vmatpush.msra.mxu0 %v1449
    %1619 = vmatpush.msra.mxu0 %v1433
    %1620 = vmatpush.msra.mxu0 %v1417
    %1621 = vmatmul.f32.gmra.mxu0 %v1507
    %v1622 = vpop.f32.mrf.mxu0
    %v1623 = vadd.f32 %v1489, %v1622
    %1624 = vmatmul.f32.gmra.mxu0 %v1510
    %v1625 = vpop.f32.mrf.mxu0
    %v1626 = vadd.f32 %v1494, %v1625
    %1627 = vmatmul.f32.gmra.mxu0 %v1513
    %v1628 = vpop.f32.mrf.mxu0
    %v1629 = vadd.f32 %v1499, %v1628
    %1630 = vmatmul.f32.gmra.mxu0 %v1516
    %v1631 = vpop.f32.mrf.mxu0
    %v1632 = vadd.f32 %v1504, %v1631
    %1633 = vdwg.mxu0
    %1634 = vmatpush.msra.mxu0 0.0
    %1635 = vmatpush.msra.mxu0 0.0
    %1636 = vmatpush.msra.mxu0 0.0
    %1637 = vmatpush.msra.mxu0 0.0
    %1638 = vmatpush.msra.mxu0 0.0
    %1639 = vmatpush.msra.mxu0 0.0
    %1640 = vmatpush.msra.mxu0 0.0
    %1641 = vmatpush.msra.mxu0 0.0
    %1642 = vmatpush.msra.mxu0 0.0
    %1643 = vmatpush.msra.mxu0 0.0
    %1644 = vmatpush.msra.mxu0 0.0
    %1645 = vmatpush.msra.mxu0 0.0
    %1646 = vmatpush.msra.mxu0 %v1466
    %1647 = vmatpush.msra.mxu0 %v1450
    %1648 = vmatpush.msra.mxu0 %v1434
    %1649 = vmatpush.msra.mxu0 %v1418
    %1650 = vmatmul.f32.gmra.mxu0 %v1507
    %v1651 = vpop.f32.mrf.mxu0
    %v1652 = vadd.f32 %v1489, %v1651
    %1653 = vmatmul.f32.gmra.mxu0 %v1510
    %v1654 = vpop.f32.mrf.mxu0
    %v1655 = vadd.f32 %v1494, %v1654
    %1656 = vmatmul.f32.gmra.mxu0 %v1513
    %v1657 = vpop.f32.mrf.mxu0
    %v1658 = vadd.f32 %v1499, %v1657
    %1659 = vmatmul.f32.gmra.mxu0 %v1516
    %v1660 = vpop.f32.mrf.mxu0
    %v1661 = vadd.f32 %v1504, %v1660
    %1662 = vdwg.mxu0
    %1663 = vmatpush.msra.mxu0 0.0
    %1664 = vmatpush.msra.mxu0 0.0
    %1665 = vmatpush.msra.mxu0 0.0
    %1666 = vmatpush.msra.mxu0 0.0
    %1667 = vmatpush.msra.mxu0 0.0
    %1668 = vmatpush.msra.mxu0 0.0
    %1669 = vmatpush.msra.mxu0 0.0
    %1670 = vmatpush.msra.mxu0 0.0
    %1671 = vmatpush.msra.mxu0 0.0
    %1672 = vmatpush.msra.mxu0 0.0
    %1673 = vmatpush.msra.mxu0 0.0
    %1674 = vmatpush.msra.mxu0 0.0
    %1675 = vmatpush.msra.mxu0 %v1467
    %1676 = vmatpush.msra.mxu0 %v1451
    %1677 = vmatpush.msra.mxu0 %v1435
    %1678 = vmatpush.msra.mxu0 %v1419
    %1679 = vmatmul.f32.gmra.mxu0 %v1507
    %v1680 = vpop.f32.mrf.mxu0
    %v1681 = vadd.f32 %v1489, %v1680
    %1682 = vmatmul.f32.gmra.mxu0 %v1510
    %v1683 = vpop.f32.mrf.mxu0
    %v1684 = vadd.f32 %v1494, %v1683
    %1685 = vmatmul.f32.gmra.mxu0 %v1513
    %v1686 = vpop.f32.mrf.mxu0
    %v1687 = vadd.f32 %v1499, %v1686
    %1688 = vmatmul.f32.gmra.mxu0 %v1516
    %v1689 = vpop.f32.mrf.mxu0
    %v1690 = vadd.f32 %v1504, %v1689
    %1691 = vdwg.mxu0
    %1692 = vmatpush.msra.mxu0 0.0
    %1693 = vmatpush.msra.mxu0 0.0
    %1694 = vmatpush.msra.mxu0 0.0
    %1695 = vmatpush.msra.mxu0 0.0
    %1696 = vmatpush.msra.mxu0 0.0
    %1697 = vmatpush.msra.mxu0 0.0
    %1698 = vmatpush.msra.mxu0 0.0
    %1699 = vmatpush.msra.mxu0 0.0
    %1700 = vmatpush.msra.mxu0 0.0
    %1701 = vmatpush.msra.mxu0 0.0
    %1702 = vmatpush.msra.mxu0 0.0
    %1703 = vmatpush.msra.mxu0 0.0
    %1704 = vmatpush.msra.mxu0 %v1468
    %1705 = vmatpush.msra.mxu0 %v1452
    %1706 = vmatpush.msra.mxu0 %v1436
    %1707 = vmatpush.msra.mxu0 %v1420
    %1708 = vmatmul.f32.gmra.mxu0 %v1507
    %v1709 = vpop.f32.mrf.mxu0
    %v1710 = vadd.f32 %v1489, %v1709
    %1711 = vmatmul.f32.gmra.mxu0 %v1510
    %v1712 = vpop.f32.mrf.mxu0
    %v1713 = vadd.f32 %v1494, %v1712
    %1714 = vmatmul.f32.gmra.mxu0 %v1513
    %v1715 = vpop.f32.mrf.mxu0
    %v1716 = vadd.f32 %v1499, %v1715
    %1717 = vmatmul.f32.gmra.mxu0 %v1516
    %v1718 = vpop.f32.mrf.mxu0
    %v1719 = vadd.f32 %v1504, %v1718
    %1720 = vdwg.mxu0
    %1721 = vmatpush.msra.mxu0 0.0
    %1722 = vmatpush.msra.mxu0 0.0
    %1723 = vmatpush.msra.mxu0 0.0
    %1724 = vmatpush.msra.mxu0 0.0
    %1725 = vmatpush.msra.mxu0 0.0
    %1726 = vmatpush.msra.mxu0 0.0
    %1727 = vmatpush.msra.mxu0 0.0
    %1728 = vmatpush.msra.mxu0 0.0
    %1729 = vmatpush.msra.mxu0 0.0
    %1730 = vmatpush.msra.mxu0 0.0
    %1731 = vmatpush.msra.mxu0 0.0
    %1732 = vmatpush.msra.mxu0 0.0
    %1733 = vmatpush.msra.mxu0 %v1469
    %1734 = vmatpush.msra.mxu0 %v1453
    %1735 = vmatpush.msra.mxu0 %v1437
    %1736 = vmatpush.msra.mxu0 %v1421
    %1737 = vmatmul.f32.gmra.mxu0 %v1507
    %v1738 = vpop.f32.mrf.mxu0
    %v1739 = vadd.f32 %v1489, %v1738
    %1740 = vmatmul.f32.gmra.mxu0 %v1510
    %v1741 = vpop.f32.mrf.mxu0
    %v1742 = vadd.f32 %v1494, %v1741
    %1743 = vmatmul.f32.gmra.mxu0 %v1513
    %v1744 = vpop.f32.mrf.mxu0
    %v1745 = vadd.f32 %v1499, %v1744
    %1746 = vmatmul.f32.gmra.mxu0 %v1516
    %v1747 = vpop.f32.mrf.mxu0
    %v1748 = vadd.f32 %v1504, %v1747
    %1749 = vdwg.mxu0
    %1750 = vmatpush.msra.mxu0 0.0
    %1751 = vmatpush.msra.mxu0 0.0
    %1752 = vmatpush.msra.mxu0 0.0
    %1753 = vmatpush.msra.mxu0 0.0
    %1754 = vmatpush.msra.mxu0 0.0
    %1755 = vmatpush.msra.mxu0 0.0
    %1756 = vmatpush.msra.mxu0 0.0
    %1757 = vmatpush.msra.mxu0 0.0
    %1758 = vmatpush.msra.mxu0 0.0
    %1759 = vmatpush.msra.mxu0 0.0
    %1760 = vmatpush.msra.mxu0 0.0
    %1761 = vmatpush.msra.mxu0 0.0
    %1762 = vmatpush.msra.mxu0 %v1470
    %1763 = vmatpush.msra.mxu0 %v1454
    %1764 = vmatpush.msra.mxu0 %v1438
    %1765 = vmatpush.msra.mxu0 %v1422
    %1766 = vmatmul.f32.gmra.mxu0 %v1507
    %v1767 = vpop.f32.mrf.mxu0
    %v1768 = vadd.f32 %v1489, %v1767
    %1769 = vmatmul.f32.gmra.mxu0 %v1510
    %v1770 = vpop.f32.mrf.mxu0
    %v1771 = vadd.f32 %v1494, %v1770
    %1772 = vmatmul.f32.gmra.mxu0 %v1513
    %v1773 = vpop.f32.mrf.mxu0
    %v1774 = vadd.f32 %v1499, %v1773
    %1775 = vmatmul.f32.gmra.mxu0 %v1516
    %v1776 = vpop.f32.mrf.mxu0
    %v1777 = vadd.f32 %v1504, %v1776
    %1778 = vdwg.mxu0
    %1779 = vmatpush.msra.mxu0 0.0
    %1780 = vmatpush.msra.mxu0 0.0
    %1781 = vmatpush.msra.mxu0 0.0
    %1782 = vmatpush.msra.mxu0 0.0
    %1783 = vmatpush.msra.mxu0 0.0
    %1784 = vmatpush.msra.mxu0 0.0
    %1785 = vmatpush.msra.mxu0 0.0
    %1786 = vmatpush.msra.mxu0 0.0
    %1787 = vmatpush.msra.mxu0 0.0
    %1788 = vmatpush.msra.mxu0 0.0
    %1789 = vmatpush.msra.mxu0 0.0
    %1790 = vmatpush.msra.mxu0 0.0
    %1791 = vmatpush.msra.mxu0 %v1471
    %1792 = vmatpush.msra.mxu0 %v1455
    %1793 = vmatpush.msra.mxu0 %v1439
    %1794 = vmatpush.msra.mxu0 %v1423
    %1795 = vmatmul.f32.gmra.mxu0 %v1507
    %v1796 = vpop.f32.mrf.mxu0
    %v1797 = vadd.f32 %v1489, %v1796
    %1798 = vmatmul.f32.gmra.mxu0 %v1510
    %v1799 = vpop.f32.mrf.mxu0
    %v1800 = vadd.f32 %v1494, %v1799
    %1801 = vmatmul.f32.gmra.mxu0 %v1513
    %v1802 = vpop.f32.mrf.mxu0
    %v1803 = vadd.f32 %v1499, %v1802
    %1804 = vmatmul.f32.gmra.mxu0 %v1516
    %v1805 = vpop.f32.mrf.mxu0
    %v1806 = vadd.f32 %v1504, %v1805
    %1807 = vdwg.mxu0
    %1808 = vmatpush.msra.mxu0 0.0
    %1809 = vmatpush.msra.mxu0 0.0
    %1810 = vmatpush.msra.mxu0 0.0
    %1811 = vmatpush.msra.mxu0 0.0
    %1812 = vmatpush.msra.mxu0 0.0
    %1813 = vmatpush.msra.mxu0 0.0
    %1814 = vmatpush.msra.mxu0 0.0
    %1815 = vmatpush.msra.mxu0 0.0
    %1816 = vmatpush.msra.mxu0 0.0
    %1817 = vmatpush.msra.mxu0 0.0
    %1818 = vmatpush.msra.mxu0 0.0
    %1819 = vmatpush.msra.mxu0 0.0
    %1820 = vmatpush.msra.mxu0 %v1472
    %1821 = vmatpush.msra.mxu0 %v1456
    %1822 = vmatpush.msra.mxu0 %v1440
    %1823 = vmatpush.msra.mxu0 %v1424
    %1824 = vmatmul.f32.gmra.mxu0 %v1507
    %v1825 = vpop.f32.mrf.mxu0
    %v1826 = vadd.f32 %v1489, %v1825
    %1827 = vmatmul.f32.gmra.mxu0 %v1510
    %v1828 = vpop.f32.mrf.mxu0
    %v1829 = vadd.f32 %v1494, %v1828
    %1830 = vmatmul.f32.gmra.mxu0 %v1513
    %v1831 = vpop.f32.mrf.mxu0
    %v1832 = vadd.f32 %v1499, %v1831
    %1833 = vmatmul.f32.gmra.mxu0 %v1516
    %v1834 = vpop.f32.mrf.mxu0
    %v1835 = vadd.f32 %v1504, %v1834
    %1836 = vdwg.mxu0
    %1837 = vmatpush.msra.mxu0 0.0
    %1838 = vmatpush.msra.mxu0 0.0
    %1839 = vmatpush.msra.mxu0 0.0
    %1840 = vmatpush.msra.mxu0 0.0
    %1841 = vmatpush.msra.mxu0 0.0
    %1842 = vmatpush.msra.mxu0 0.0
    %1843 = vmatpush.msra.mxu0 0.0
    %1844 = vmatpush.msra.mxu0 0.0
    %1845 = vmatpush.msra.mxu0 0.0
    %1846 = vmatpush.msra.mxu0 0.0
    %1847 = vmatpush.msra.mxu0 0.0
    %1848 = vmatpush.msra.mxu0 0.0
    %1849 = vmatpush.msra.mxu0 %v1473
    %1850 = vmatpush.msra.mxu0 %v1457
    %1851 = vmatpush.msra.mxu0 %v1441
    %1852 = vmatpush.msra.mxu0 %v1425
    %1853 = vmatmul.f32.gmra.mxu0 %v1507
    %v1854 = vpop.f32.mrf.mxu0
    %v1855 = vadd.f32 %v1489, %v1854
    %1856 = vmatmul.f32.gmra.mxu0 %v1510
    %v1857 = vpop.f32.mrf.mxu0
    %v1858 = vadd.f32 %v1494, %v1857
    %1859 = vmatmul.f32.gmra.mxu0 %v1513
    %v1860 = vpop.f32.mrf.mxu0
    %v1861 = vadd.f32 %v1499, %v1860
    %1862 = vmatmul.f32.gmra.mxu0 %v1516
    %v1863 = vpop.f32.mrf.mxu0
    %v1864 = vadd.f32 %v1504, %v1863
    %1865 = vdwg.mxu0
    %1866 = vmatpush.msra.mxu0 0.0
    %1867 = vmatpush.msra.mxu0 0.0
    %1868 = vmatpush.msra.mxu0 0.0
    %1869 = vmatpush.msra.mxu0 0.0
    %1870 = vmatpush.msra.mxu0 0.0
    %1871 = vmatpush.msra.mxu0 0.0
    %1872 = vmatpush.msra.mxu0 0.0
    %1873 = vmatpush.msra.mxu0 0.0
    %1874 = vmatpush.msra.mxu0 0.0
    %1875 = vmatpush.msra.mxu0 0.0
    %1876 = vmatpush.msra.mxu0 0.0
    %1877 = vmatpush.msra.mxu0 0.0
    %1878 = vmatpush.msra.mxu0 %v1474
    %1879 = vmatpush.msra.mxu0 %v1458
    %1880 = vmatpush.msra.mxu0 %v1442
    %1881 = vmatpush.msra.mxu0 %v1426
    %1882 = vmatmul.f32.gmra.mxu0 %v1507
    %v1883 = vpop.f32.mrf.mxu0
    %v1884 = vadd.f32 %v1489, %v1883
    %1885 = vmatmul.f32.gmra.mxu0 %v1510
    %v1886 = vpop.f32.mrf.mxu0
    %v1887 = vadd.f32 %v1494, %v1886
    %1888 = vmatmul.f32.gmra.mxu0 %v1513
    %v1889 = vpop.f32.mrf.mxu0
    %v1890 = vadd.f32 %v1499, %v1889
    %1891 = vmatmul.f32.gmra.mxu0 %v1516
    %v1892 = vpop.f32.mrf.mxu0
    %v1893 = vadd.f32 %v1504, %v1892
    %1894 = vdwg.mxu0
    %1895 = vmatpush.msra.mxu0 0.0
    %1896 = vmatpush.msra.mxu0 0.0
    %1897 = vmatpush.msra.mxu0 0.0
    %1898 = vmatpush.msra.mxu0 0.0
    %1899 = vmatpush.msra.mxu0 0.0
    %1900 = vmatpush.msra.mxu0 0.0
    %1901 = vmatpush.msra.mxu0 0.0
    %1902 = vmatpush.msra.mxu0 0.0
    %1903 = vmatpush.msra.mxu0 0.0
    %1904 = vmatpush.msra.mxu0 0.0
    %1905 = vmatpush.msra.mxu0 0.0
    %1906 = vmatpush.msra.mxu0 0.0
    %1907 = vmatpush.msra.mxu0 %v1475
    %1908 = vmatpush.msra.mxu0 %v1459
    %1909 = vmatpush.msra.mxu0 %v1443
    %1910 = vmatpush.msra.mxu0 %v1427
    %1911 = vmatmul.f32.gmra.mxu0 %v1507
    %v1912 = vpop.f32.mrf.mxu0
    %v1913 = vadd.f32 %v1489, %v1912
    %1914 = vmatmul.f32.gmra.mxu0 %v1510
    %v1915 = vpop.f32.mrf.mxu0
    %v1916 = vadd.f32 %v1494, %v1915
    %1917 = vmatmul.f32.gmra.mxu0 %v1513
    %v1918 = vpop.f32.mrf.mxu0
    %v1919 = vadd.f32 %v1499, %v1918
    %1920 = vmatmul.f32.gmra.mxu0 %v1516
    %v1921 = vpop.f32.mrf.mxu0
    %v1922 = vadd.f32 %v1504, %v1921
    %1923 = vdwg.mxu0
    %1924 = vmatpush.msra.mxu0 0.0
    %1925 = vmatpush.msra.mxu0 0.0
    %1926 = vmatpush.msra.mxu0 0.0
    %1927 = vmatpush.msra.mxu0 0.0
    %1928 = vmatpush.msra.mxu0 0.0
    %1929 = vmatpush.msra.mxu0 0.0
    %1930 = vmatpush.msra.mxu0 0.0
    %1931 = vmatpush.msra.mxu0 0.0
    %1932 = vmatpush.msra.mxu0 0.0
    %1933 = vmatpush.msra.mxu0 0.0
    %1934 = vmatpush.msra.mxu0 0.0
    %1935 = vmatpush.msra.mxu0 0.0
    %1936 = vmatpush.msra.mxu0 %v1476
    %1937 = vmatpush.msra.mxu0 %v1460
    %1938 = vmatpush.msra.mxu0 %v1444
    %1939 = vmatpush.msra.mxu0 %v1428
    %1940 = vmatmul.f32.gmra.mxu0 %v1507
    %v1941 = vpop.f32.mrf.mxu0
    %v1942 = vadd.f32 %v1489, %v1941
    %1943 = vmatmul.f32.gmra.mxu0 %v1510
    %v1944 = vpop.f32.mrf.mxu0
    %v1945 = vadd.f32 %v1494, %v1944
    %1946 = vmatmul.f32.gmra.mxu0 %v1513
    %v1947 = vpop.f32.mrf.mxu0
    %v1948 = vadd.f32 %v1499, %v1947
    %1949 = vmatmul.f32.gmra.mxu0 %v1516
    %v1950 = vpop.f32.mrf.mxu0
    %v1951 = vadd.f32 %v1504, %v1950
    %1952 = vdwg.mxu0
    %1953 = vmatpush.msra.mxu0 0.0
    %1954 = vmatpush.msra.mxu0 0.0
    %1955 = vmatpush.msra.mxu0 0.0
    %1956 = vmatpush.msra.mxu0 0.0
    %1957 = vmatpush.msra.mxu0 0.0
    %1958 = vmatpush.msra.mxu0 0.0
    %1959 = vmatpush.msra.mxu0 0.0
    %1960 = vmatpush.msra.mxu0 0.0
    %1961 = vmatpush.msra.mxu0 0.0
    %1962 = vmatpush.msra.mxu0 0.0
    %1963 = vmatpush.msra.mxu0 0.0
    %1964 = vmatpush.msra.mxu0 0.0
    %1965 = vmatpush.msra.mxu0 %v1477
    %1966 = vmatpush.msra.mxu0 %v1461
    %1967 = vmatpush.msra.mxu0 %v1445
    %1968 = vmatpush.msra.mxu0 %v1429
    %1969 = vmatmul.f32.gmra.mxu0 %v1507
    %v1970 = vpop.f32.mrf.mxu0
    %v1971 = vadd.f32 %v1489, %v1970
    %1972 = vmatmul.f32.gmra.mxu0 %v1510
    %v1973 = vpop.f32.mrf.mxu0
    %v1974 = vadd.f32 %v1494, %v1973
    %1975 = vmatmul.f32.gmra.mxu0 %v1513
    %v1976 = vpop.f32.mrf.mxu0
    %v1977 = vadd.f32 %v1499, %v1976
    %1978 = vmatmul.f32.gmra.mxu0 %v1516
    %v1979 = vpop.f32.mrf.mxu0
    %v1980 = vadd.f32 %v1504, %v1979
    %1981 = vdwg.mxu0
    %vm1982 = vcmp.ge.f32.partialorder %v1536, 0.0
    %vm1983 = vcmp.ge.f32.partialorder %v1565, 0.0
    %vm1984 = vcmp.ge.f32.partialorder %v1594, 0.0
    %vm1985 = vcmp.ge.f32.partialorder %v1623, 0.0
    %vm1986 = vcmp.ge.f32.partialorder %v1652, 0.0
    %vm1987 = vcmp.ge.f32.partialorder %v1681, 0.0
    %vm1988 = vcmp.ge.f32.partialorder %v1710, 0.0
    %vm1989 = vcmp.ge.f32.partialorder %v1739, 0.0
    %vm1990 = vcmp.ge.f32.partialorder %v1768, 0.0
    %vm1991 = vcmp.ge.f32.partialorder %v1797, 0.0
    %vm1992 = vcmp.ge.f32.partialorder %v1826, 0.0
    %vm1993 = vcmp.ge.f32.partialorder %v1855, 0.0
    %vm1994 = vcmp.ge.f32.partialorder %v1884, 0.0
    %vm1995 = vcmp.ge.f32.partialorder %v1913, 0.0
    %vm1996 = vcmp.ge.f32.partialorder %v1942, 0.0
    %vm1997 = vcmp.ge.f32.partialorder %v1971, 0.0
    %vm1998 = vcmp.ge.f32.partialorder %v1539, 0.0
    %vm1999 = vcmp.ge.f32.partialorder %v1568, 0.0
    %vm2000 = vcmp.ge.f32.partialorder %v1597, 0.0
    %vm2001 = vcmp.ge.f32.partialorder %v1626, 0.0
    %vm2002 = vcmp.ge.f32.partialorder %v1655, 0.0
    %vm2003 = vcmp.ge.f32.partialorder %v1684, 0.0
    %vm2004 = vcmp.ge.f32.partialorder %v1713, 0.0
    %vm2005 = vcmp.ge.f32.partialorder %v1742, 0.0
    %vm2006 = vcmp.ge.f32.partialorder %v1771, 0.0
    %vm2007 = vcmp.ge.f32.partialorder %v1800, 0.0
    %vm2008 = vcmp.ge.f32.partialorder %v1829, 0.0
    %vm2009 = vcmp.ge.f32.partialorder %v1858, 0.0
    %vm2010 = vcmp.ge.f32.partialorder %v1887, 0.0
    %vm2011 = vcmp.ge.f32.partialorder %v1916, 0.0
    %vm2012 = vcmp.ge.f32.partialorder %v1945, 0.0
    %vm2013 = vcmp.ge.f32.partialorder %v1974, 0.0
    %vm2014 = vcmp.ge.f32.partialorder %v1542, 0.0
    %vm2015 = vcmp.ge.f32.partialorder %v1571, 0.0
    %vm2016 = vcmp.ge.f32.partialorder %v1600, 0.0
    %vm2017 = vcmp.ge.f32.partialorder %v1629, 0.0
    %vm2018 = vcmp.ge.f32.partialorder %v1658, 0.0
    %vm2019 = vcmp.ge.f32.partialorder %v1687, 0.0
    %vm2020 = vcmp.ge.f32.partialorder %v1716, 0.0
    %vm2021 = vcmp.ge.f32.partialorder %v1745, 0.0
    %vm2022 = vcmp.ge.f32.partialorder %v1774, 0.0
    %vm2023 = vcmp.ge.f32.partialorder %v1803, 0.0
    %vm2024 = vcmp.ge.f32.partialorder %v1832, 0.0
    %vm2025 = vcmp.ge.f32.partialorder %v1861, 0.0
    %vm2026 = vcmp.ge.f32.partialorder %v1890, 0.0
    %vm2027 = vcmp.ge.f32.partialorder %v1919, 0.0
    %vm2028 = vcmp.ge.f32.partialorder %v1948, 0.0
    %vm2029 = vcmp.ge.f32.partialorder %v1977, 0.0
    %vm2030 = vcmp.ge.f32.partialorder %v1545, 0.0
    %vm2031 = vcmp.ge.f32.partialorder %v1574, 0.0
    %vm2032 = vcmp.ge.f32.partialorder %v1603, 0.0
    %vm2033 = vcmp.ge.f32.partialorder %v1632, 0.0
    %vm2034 = vcmp.ge.f32.partialorder %v1661, 0.0
    %vm2035 = vcmp.ge.f32.partialorder %v1690, 0.0
    %vm2036 = vcmp.ge.f32.partialorder %v1719, 0.0
    %vm2037 = vcmp.ge.f32.partialorder %v1748, 0.0
    %vm2038 = vcmp.ge.f32.partialorder %v1777, 0.0
    %vm2039 = vcmp.ge.f32.partialorder %v1806, 0.0
    %vm2040 = vcmp.ge.f32.partialorder %v1835, 0.0
    %vm2041 = vcmp.ge.f32.partialorder %v1864, 0.0
    %vm2042 = vcmp.ge.f32.partialorder %v1893, 0.0
    %vm2043 = vcmp.ge.f32.partialorder %v1922, 0.0
    %vm2044 = vcmp.ge.f32.partialorder %v1951, 0.0
    %vm2045 = vcmp.ge.f32.partialorder %v1980, 0.0
    %v2046 = vmul.f32 %v1536, 0.01
    %v2047 = vmul.f32 %v1565, 0.01
    %v2048 = vmul.f32 %v1594, 0.01
    %v2049 = vmul.f32 %v1623, 0.01
    %v2050 = vmul.f32 %v1652, 0.01
    %v2051 = vmul.f32 %v1681, 0.01
    %v2052 = vmul.f32 %v1710, 0.01
    %v2053 = vmul.f32 %v1739, 0.01
    %v2054 = vmul.f32 %v1768, 0.01
    %v2055 = vmul.f32 %v1797, 0.01
    %v2056 = vmul.f32 %v1826, 0.01
    %v2057 = vmul.f32 %v1855, 0.01
    %v2058 = vmul.f32 %v1884, 0.01
    %v2059 = vmul.f32 %v1913, 0.01
    %v2060 = vmul.f32 %v1942, 0.01
    %v2061 = vmul.f32 %v1971, 0.01
    %v2062 = vmul.f32 %v1539, 0.01
    %v2063 = vmul.f32 %v1568, 0.01
    %v2064 = vmul.f32 %v1597, 0.01
    %v2065 = vmul.f32 %v1626, 0.01
    %v2066 = vmul.f32 %v1655, 0.01
    %v2067 = vmul.f32 %v1684, 0.01
    %v2068 = vmul.f32 %v1713, 0.01
    %v2069 = vmul.f32 %v1742, 0.01
    %v2070 = vmul.f32 %v1771, 0.01
    %v2071 = vmul.f32 %v1800, 0.01
    %v2072 = vmul.f32 %v1829, 0.01
    %v2073 = vmul.f32 %v1858, 0.01
    %v2074 = vmul.f32 %v1887, 0.01
    %v2075 = vmul.f32 %v1916, 0.01
    %v2076 = vmul.f32 %v1945, 0.01
    %v2077 = vmul.f32 %v1974, 0.01
    %v2078 = vmul.f32 %v1542, 0.01
    %v2079 = vmul.f32 %v1571, 0.01
    %v2080 = vmul.f32 %v1600, 0.01
    %v2081 = vmul.f32 %v1629, 0.01
    %v2082 = vmul.f32 %v1658, 0.01
    %v2083 = vmul.f32 %v1687, 0.01
    %v2084 = vmul.f32 %v1716, 0.01
    %v2085 = vmul.f32 %v1745, 0.01
    %v2086 = vmul.f32 %v1774, 0.01
    %v2087 = vmul.f32 %v1803, 0.01
    %v2088 = vmul.f32 %v1832, 0.01
    %v2089 = vmul.f32 %v1861, 0.01
    %v2090 = vmul.f32 %v1890, 0.01
    %v2091 = vmul.f32 %v1919, 0.01
    %v2092 = vmul.f32 %v1948, 0.01
    %v2093 = vmul.f32 %v1977, 0.01
    %v2094 = vmul.f32 %v1545, 0.01
    %v2095 = vmul.f32 %v1574, 0.01
    %v2096 = vmul.f32 %v1603, 0.01
    %v2097 = vmul.f32 %v1632, 0.01
    %v2098 = vmul.f32 %v1661, 0.01
    %v2099 = vmul.f32 %v1690, 0.01
    %v2100 = vmul.f32 %v1719, 0.01
    %v2101 = vmul.f32 %v1748, 0.01
    %v2102 = vmul.f32 %v1777, 0.01
    %v2103 = vmul.f32 %v1806, 0.01
    %v2104 = vmul.f32 %v1835, 0.01
    %v2105 = vmul.f32 %v1864, 0.01
    %v2106 = vmul.f32 %v1893, 0.01
    %v2107 = vmul.f32 %v1922, 0.01
    %v2108 = vmul.f32 %v1951, 0.01
    %v2109 = vmul.f32 %v1980, 0.01
    %v2110 = vsel %vm1982, %v1536, %v2046
    %v2111 = vsel %vm1983, %v1565, %v2047
    %v2112 = vsel %vm1984, %v1594, %v2048
    %v2113 = vsel %vm1985, %v1623, %v2049
    %v2114 = vsel %vm1986, %v1652, %v2050
    %v2115 = vsel %vm1987, %v1681, %v2051
    %v2116 = vsel %vm1988, %v1710, %v2052
    %v2117 = vsel %vm1989, %v1739, %v2053
    %v2118 = vsel %vm1990, %v1768, %v2054
    %v2119 = vsel %vm1991, %v1797, %v2055
    %v2120 = vsel %vm1992, %v1826, %v2056
    %v2121 = vsel %vm1993, %v1855, %v2057
    %v2122 = vsel %vm1994, %v1884, %v2058
    %v2123 = vsel %vm1995, %v1913, %v2059
    %v2124 = vsel %vm1996, %v1942, %v2060
    %v2125 = vsel %vm1997, %v1971, %v2061
    %v2126 = vsel %vm1998, %v1539, %v2062
    %v2127 = vsel %vm1999, %v1568, %v2063
    %v2128 = vsel %vm2000, %v1597, %v2064
    %v2129 = vsel %vm2001, %v1626, %v2065
    %v2130 = vsel %vm2002, %v1655, %v2066
    %v2131 = vsel %vm2003, %v1684, %v2067
    %v2132 = vsel %vm2004, %v1713, %v2068
    %v2133 = vsel %vm2005, %v1742, %v2069
    %v2134 = vsel %vm2006, %v1771, %v2070
    %v2135 = vsel %vm2007, %v1800, %v2071
    %v2136 = vsel %vm2008, %v1829, %v2072
    %v2137 = vsel %vm2009, %v1858, %v2073
    %v2138 = vsel %vm2010, %v1887, %v2074
    %v2139 = vsel %vm2011, %v1916, %v2075
    %v2140 = vsel %vm2012, %v1945, %v2076
    %v2141 = vsel %vm2013, %v1974, %v2077
    %v2142 = vsel %vm2014, %v1542, %v2078
    %v2143 = vsel %vm2015, %v1571, %v2079
    %v2144 = vsel %vm2016, %v1600, %v2080
    %v2145 = vsel %vm2017, %v1629, %v2081
    %v2146 = vsel %vm2018, %v1658, %v2082
    %v2147 = vsel %vm2019, %v1687, %v2083
    %v2148 = vsel %vm2020, %v1716, %v2084
    %v2149 = vsel %vm2021, %v1745, %v2085
    %v2150 = vsel %vm2022, %v1774, %v2086
    %v2151 = vsel %vm2023, %v1803, %v2087
    %v2152 = vsel %vm2024, %v1832, %v2088
    %v2153 = vsel %vm2025, %v1861, %v2089
    %v2154 = vsel %vm2026, %v1890, %v2090
    %v2155 = vsel %vm2027, %v1919, %v2091
    %v2156 = vsel %vm2028, %v1948, %v2092
    %v2157 = vsel %vm2029, %v1977, %v2093
    %v2158 = vsel %vm2030, %v1545, %v2094
    %v2159 = vsel %vm2031, %v1574, %v2095
    %v2160 = vsel %vm2032, %v1603, %v2096
    %v2161 = vsel %vm2033, %v1632, %v2097
    %v2162 = vsel %vm2034, %v1661, %v2098
    %v2163 = vsel %vm2035, %v1690, %v2099
    %v2164 = vsel %vm2036, %v1719, %v2100
    %v2165 = vsel %vm2037, %v1748, %v2101
    %v2166 = vsel %vm2038, %v1777, %v2102
    %v2167 = vsel %vm2039, %v1806, %v2103
    %v2168 = vsel %vm2040, %v1835, %v2104
    %v2169 = vsel %vm2041, %v1864, %v2105
    %v2170 = vsel %vm2042, %v1893, %v2106
    %v2171 = vsel %vm2043, %v1922, %v2107
    %v2172 = vsel %vm2044, %v1951, %v2108
    %v2173 = vsel %vm2045, %v1980, %v2109
    %v2174 = vld [vmem:[%s13] sm:$0x1]
    %v2175 = vld [vmem:[%s14] sm:$0x1]
    %v2177 = vsel %vm209, %v2175, 0
    %2179 = vmatpush.msra.mxu0 0.0
    %2180 = vmatpush.msra.mxu0 0.0
    %2181 = vmatpush.msra.mxu0 0.0
    %2182 = vmatpush.msra.mxu0 0.0
    %2183 = vmatpush.msra.mxu0 0.0
    %2184 = vmatpush.msra.mxu0 0.0
    %2185 = vmatpush.msra.mxu0 0.0
    %2186 = vmatpush.msra.mxu0 0.0
    %2187 = vmatpush.msra.mxu0 0.0
    %2188 = vmatpush.msra.mxu0 0.0
    %2189 = vmatpush.msra.mxu0 0.0
    %2190 = vmatpush.msra.mxu0 0.0
    %2191 = vmatpush.msra.mxu0 %v1462
    %2192 = vmatpush.msra.mxu0 %v1446
    %2193 = vmatpush.msra.mxu0 %v1430
    %2194 = vmatpush.msra.mxu0 %v1414
    %2195 = vmatmul.f32.gmra.mxu0 %v2177
    %v2196 = vpop.f32.mrf.mxu0
    %v2197 = vadd.f32 0.0, %v2196
    %2198 = vdwg.mxu0
    %2199 = vmatpush.msra.mxu0 0.0
    %2200 = vmatpush.msra.mxu0 0.0
    %2201 = vmatpush.msra.mxu0 0.0
    %2202 = vmatpush.msra.mxu0 0.0
    %2203 = vmatpush.msra.mxu0 0.0
    %2204 = vmatpush.msra.mxu0 0.0
    %2205 = vmatpush.msra.mxu0 0.0
    %2206 = vmatpush.msra.mxu0 0.0
    %2207 = vmatpush.msra.mxu0 0.0
    %2208 = vmatpush.msra.mxu0 0.0
    %2209 = vmatpush.msra.mxu0 0.0
    %2210 = vmatpush.msra.mxu0 0.0
    %2211 = vmatpush.msra.mxu0 %v1463
    %2212 = vmatpush.msra.mxu0 %v1447
    %2213 = vmatpush.msra.mxu0 %v1431
    %2214 = vmatpush.msra.mxu0 %v1415
    %2215 = vmatmul.f32.gmra.mxu0 %v2177
    %v2216 = vpop.f32.mrf.mxu0
    %v2217 = vadd.f32 0.0, %v2216
    %2218 = vdwg.mxu0
    %2219 = vmatpush.msra.mxu0 0.0
    %2220 = vmatpush.msra.mxu0 0.0
    %2221 = vmatpush.msra.mxu0 0.0
    %2222 = vmatpush.msra.mxu0 0.0
    %2223 = vmatpush.msra.mxu0 0.0
    %2224 = vmatpush.msra.mxu0 0.0
    %2225 = vmatpush.msra.mxu0 0.0
    %2226 = vmatpush.msra.mxu0 0.0
    %2227 = vmatpush.msra.mxu0 0.0
    %2228 = vmatpush.msra.mxu0 0.0
    %2229 = vmatpush.msra.mxu0 0.0
    %2230 = vmatpush.msra.mxu0 0.0
    %2231 = vmatpush.msra.mxu0 %v1464
    %2232 = vmatpush.msra.mxu0 %v1448
    %2233 = vmatpush.msra.mxu0 %v1432
    %2234 = vmatpush.msra.mxu0 %v1416
    %2235 = vmatmul.f32.gmra.mxu0 %v2177
    %v2236 = vpop.f32.mrf.mxu0
    %v2237 = vadd.f32 0.0, %v2236
    %2238 = vdwg.mxu0
    %2239 = vmatpush.msra.mxu0 0.0
    %2240 = vmatpush.msra.mxu0 0.0
    %2241 = vmatpush.msra.mxu0 0.0
    %2242 = vmatpush.msra.mxu0 0.0
    %2243 = vmatpush.msra.mxu0 0.0
    %2244 = vmatpush.msra.mxu0 0.0
    %2245 = vmatpush.msra.mxu0 0.0
    %2246 = vmatpush.msra.mxu0 0.0
    %2247 = vmatpush.msra.mxu0 0.0
    %2248 = vmatpush.msra.mxu0 0.0
    %2249 = vmatpush.msra.mxu0 0.0
    %2250 = vmatpush.msra.mxu0 0.0
    %2251 = vmatpush.msra.mxu0 %v1465
    %2252 = vmatpush.msra.mxu0 %v1449
    %2253 = vmatpush.msra.mxu0 %v1433
    %2254 = vmatpush.msra.mxu0 %v1417
    %2255 = vmatmul.f32.gmra.mxu0 %v2177
    %v2256 = vpop.f32.mrf.mxu0
    %v2257 = vadd.f32 0.0, %v2256
    %2258 = vdwg.mxu0
    %2259 = vmatpush.msra.mxu0 0.0
    %2260 = vmatpush.msra.mxu0 0.0
    %2261 = vmatpush.msra.mxu0 0.0
    %2262 = vmatpush.msra.mxu0 0.0
    %2263 = vmatpush.msra.mxu0 0.0
    %2264 = vmatpush.msra.mxu0 0.0
    %2265 = vmatpush.msra.mxu0 0.0
    %2266 = vmatpush.msra.mxu0 0.0
    %2267 = vmatpush.msra.mxu0 0.0
    %2268 = vmatpush.msra.mxu0 0.0
    %2269 = vmatpush.msra.mxu0 0.0
    %2270 = vmatpush.msra.mxu0 0.0
    %2271 = vmatpush.msra.mxu0 %v1466
    %2272 = vmatpush.msra.mxu0 %v1450
    %2273 = vmatpush.msra.mxu0 %v1434
    %2274 = vmatpush.msra.mxu0 %v1418
    %2275 = vmatmul.f32.gmra.mxu0 %v2177
    %v2276 = vpop.f32.mrf.mxu0
    %v2277 = vadd.f32 0.0, %v2276
    %2278 = vdwg.mxu0
    %2279 = vmatpush.msra.mxu0 0.0
    %2280 = vmatpush.msra.mxu0 0.0
    %2281 = vmatpush.msra.mxu0 0.0
    %2282 = vmatpush.msra.mxu0 0.0
    %2283 = vmatpush.msra.mxu0 0.0
    %2284 = vmatpush.msra.mxu0 0.0
    %2285 = vmatpush.msra.mxu0 0.0
    %2286 = vmatpush.msra.mxu0 0.0
    %2287 = vmatpush.msra.mxu0 0.0
    %2288 = vmatpush.msra.mxu0 0.0
    %2289 = vmatpush.msra.mxu0 0.0
    %2290 = vmatpush.msra.mxu0 0.0
    %2291 = vmatpush.msra.mxu0 %v1467
    %2292 = vmatpush.msra.mxu0 %v1451
    %2293 = vmatpush.msra.mxu0 %v1435
    %2294 = vmatpush.msra.mxu0 %v1419
    %2295 = vmatmul.f32.gmra.mxu0 %v2177
    %v2296 = vpop.f32.mrf.mxu0
    %v2297 = vadd.f32 0.0, %v2296
    %2298 = vdwg.mxu0
    %2299 = vmatpush.msra.mxu0 0.0
    %2300 = vmatpush.msra.mxu0 0.0
    %2301 = vmatpush.msra.mxu0 0.0
    %2302 = vmatpush.msra.mxu0 0.0
    %2303 = vmatpush.msra.mxu0 0.0
    %2304 = vmatpush.msra.mxu0 0.0
    %2305 = vmatpush.msra.mxu0 0.0
    %2306 = vmatpush.msra.mxu0 0.0
    %2307 = vmatpush.msra.mxu0 0.0
    %2308 = vmatpush.msra.mxu0 0.0
    %2309 = vmatpush.msra.mxu0 0.0
    %2310 = vmatpush.msra.mxu0 0.0
    %2311 = vmatpush.msra.mxu0 %v1468
    %2312 = vmatpush.msra.mxu0 %v1452
    %2313 = vmatpush.msra.mxu0 %v1436
    %2314 = vmatpush.msra.mxu0 %v1420
    %2315 = vmatmul.f32.gmra.mxu0 %v2177
    %v2316 = vpop.f32.mrf.mxu0
    %v2317 = vadd.f32 0.0, %v2316
    %2318 = vdwg.mxu0
    %2319 = vmatpush.msra.mxu0 0.0
    %2320 = vmatpush.msra.mxu0 0.0
    %2321 = vmatpush.msra.mxu0 0.0
    %2322 = vmatpush.msra.mxu0 0.0
    %2323 = vmatpush.msra.mxu0 0.0
    %2324 = vmatpush.msra.mxu0 0.0
    %2325 = vmatpush.msra.mxu0 0.0
    %2326 = vmatpush.msra.mxu0 0.0
    %2327 = vmatpush.msra.mxu0 0.0
    %2328 = vmatpush.msra.mxu0 0.0
    %2329 = vmatpush.msra.mxu0 0.0
    %2330 = vmatpush.msra.mxu0 0.0
    %2331 = vmatpush.msra.mxu0 %v1469
    %2332 = vmatpush.msra.mxu0 %v1453
    %2333 = vmatpush.msra.mxu0 %v1437
    %2334 = vmatpush.msra.mxu0 %v1421
    %2335 = vmatmul.f32.gmra.mxu0 %v2177
    %v2336 = vpop.f32.mrf.mxu0
    %v2337 = vadd.f32 0.0, %v2336
    %2338 = vdwg.mxu0
    %2339 = vmatpush.msra.mxu0 0.0
    %2340 = vmatpush.msra.mxu0 0.0
    %2341 = vmatpush.msra.mxu0 0.0
    %2342 = vmatpush.msra.mxu0 0.0
    %2343 = vmatpush.msra.mxu0 0.0
    %2344 = vmatpush.msra.mxu0 0.0
    %2345 = vmatpush.msra.mxu0 0.0
    %2346 = vmatpush.msra.mxu0 0.0
    %2347 = vmatpush.msra.mxu0 0.0
    %2348 = vmatpush.msra.mxu0 0.0
    %2349 = vmatpush.msra.mxu0 0.0
    %2350 = vmatpush.msra.mxu0 0.0
    %2351 = vmatpush.msra.mxu0 %v1470
    %2352 = vmatpush.msra.mxu0 %v1454
    %2353 = vmatpush.msra.mxu0 %v1438
    %2354 = vmatpush.msra.mxu0 %v1422
    %2355 = vmatmul.f32.gmra.mxu0 %v2177
    %v2356 = vpop.f32.mrf.mxu0
    %v2357 = vadd.f32 0.0, %v2356
    %2358 = vdwg.mxu0
    %2359 = vmatpush.msra.mxu0 0.0
    %2360 = vmatpush.msra.mxu0 0.0
    %2361 = vmatpush.msra.mxu0 0.0
    %2362 = vmatpush.msra.mxu0 0.0
    %2363 = vmatpush.msra.mxu0 0.0
    %2364 = vmatpush.msra.mxu0 0.0
    %2365 = vmatpush.msra.mxu0 0.0
    %2366 = vmatpush.msra.mxu0 0.0
    %2367 = vmatpush.msra.mxu0 0.0
    %2368 = vmatpush.msra.mxu0 0.0
    %2369 = vmatpush.msra.mxu0 0.0
    %2370 = vmatpush.msra.mxu0 0.0
    %2371 = vmatpush.msra.mxu0 %v1471
    %2372 = vmatpush.msra.mxu0 %v1455
    %2373 = vmatpush.msra.mxu0 %v1439
    %2374 = vmatpush.msra.mxu0 %v1423
    %2375 = vmatmul.f32.gmra.mxu0 %v2177
    %v2376 = vpop.f32.mrf.mxu0
    %v2377 = vadd.f32 0.0, %v2376
    %2378 = vdwg.mxu0
    %2379 = vmatpush.msra.mxu0 0.0
    %2380 = vmatpush.msra.mxu0 0.0
    %2381 = vmatpush.msra.mxu0 0.0
    %2382 = vmatpush.msra.mxu0 0.0
    %2383 = vmatpush.msra.mxu0 0.0
    %2384 = vmatpush.msra.mxu0 0.0
    %2385 = vmatpush.msra.mxu0 0.0
    %2386 = vmatpush.msra.mxu0 0.0
    %2387 = vmatpush.msra.mxu0 0.0
    %2388 = vmatpush.msra.mxu0 0.0
    %2389 = vmatpush.msra.mxu0 0.0
    %2390 = vmatpush.msra.mxu0 0.0
    %2391 = vmatpush.msra.mxu0 %v1472
    %2392 = vmatpush.msra.mxu0 %v1456
    %2393 = vmatpush.msra.mxu0 %v1440
    %2394 = vmatpush.msra.mxu0 %v1424
    %2395 = vmatmul.f32.gmra.mxu0 %v2177
    %v2396 = vpop.f32.mrf.mxu0
    %v2397 = vadd.f32 0.0, %v2396
    %2398 = vdwg.mxu0
    %2399 = vmatpush.msra.mxu0 0.0
    %2400 = vmatpush.msra.mxu0 0.0
    %2401 = vmatpush.msra.mxu0 0.0
    %2402 = vmatpush.msra.mxu0 0.0
    %2403 = vmatpush.msra.mxu0 0.0
    %2404 = vmatpush.msra.mxu0 0.0
    %2405 = vmatpush.msra.mxu0 0.0
    %2406 = vmatpush.msra.mxu0 0.0
    %2407 = vmatpush.msra.mxu0 0.0
    %2408 = vmatpush.msra.mxu0 0.0
    %2409 = vmatpush.msra.mxu0 0.0
    %2410 = vmatpush.msra.mxu0 0.0
    %2411 = vmatpush.msra.mxu0 %v1473
    %2412 = vmatpush.msra.mxu0 %v1457
    %2413 = vmatpush.msra.mxu0 %v1441
    %2414 = vmatpush.msra.mxu0 %v1425
    %2415 = vmatmul.f32.gmra.mxu0 %v2177
    %v2416 = vpop.f32.mrf.mxu0
    %v2417 = vadd.f32 0.0, %v2416
    %2418 = vdwg.mxu0
    %2419 = vmatpush.msra.mxu0 0.0
    %2420 = vmatpush.msra.mxu0 0.0
    %2421 = vmatpush.msra.mxu0 0.0
    %2422 = vmatpush.msra.mxu0 0.0
    %2423 = vmatpush.msra.mxu0 0.0
    %2424 = vmatpush.msra.mxu0 0.0
    %2425 = vmatpush.msra.mxu0 0.0
    %2426 = vmatpush.msra.mxu0 0.0
    %2427 = vmatpush.msra.mxu0 0.0
    %2428 = vmatpush.msra.mxu0 0.0
    %2429 = vmatpush.msra.mxu0 0.0
    %2430 = vmatpush.msra.mxu0 0.0
    %2431 = vmatpush.msra.mxu0 %v1474
    %2432 = vmatpush.msra.mxu0 %v1458
    %2433 = vmatpush.msra.mxu0 %v1442
    %2434 = vmatpush.msra.mxu0 %v1426
    %2435 = vmatmul.f32.gmra.mxu0 %v2177
    %v2436 = vpop.f32.mrf.mxu0
    %v2437 = vadd.f32 0.0, %v2436
    %2438 = vdwg.mxu0
    %2439 = vmatpush.msra.mxu0 0.0
    %2440 = vmatpush.msra.mxu0 0.0
    %2441 = vmatpush.msra.mxu0 0.0
    %2442 = vmatpush.msra.mxu0 0.0
    %2443 = vmatpush.msra.mxu0 0.0
    %2444 = vmatpush.msra.mxu0 0.0
    %2445 = vmatpush.msra.mxu0 0.0
    %2446 = vmatpush.msra.mxu0 0.0
    %2447 = vmatpush.msra.mxu0 0.0
    %2448 = vmatpush.msra.mxu0 0.0
    %2449 = vmatpush.msra.mxu0 0.0
    %2450 = vmatpush.msra.mxu0 0.0
    %2451 = vmatpush.msra.mxu0 %v1475
    %2452 = vmatpush.msra.mxu0 %v1459
    %2453 = vmatpush.msra.mxu0 %v1443
    %2454 = vmatpush.msra.mxu0 %v1427
    %2455 = vmatmul.f32.gmra.mxu0 %v2177
    %v2456 = vpop.f32.mrf.mxu0
    %v2457 = vadd.f32 0.0, %v2456
    %2458 = vdwg.mxu0
    %2459 = vmatpush.msra.mxu0 0.0
    %2460 = vmatpush.msra.mxu0 0.0
    %2461 = vmatpush.msra.mxu0 0.0
    %2462 = vmatpush.msra.mxu0 0.0
    %2463 = vmatpush.msra.mxu0 0.0
    %2464 = vmatpush.msra.mxu0 0.0
    %2465 = vmatpush.msra.mxu0 0.0
    %2466 = vmatpush.msra.mxu0 0.0
    %2467 = vmatpush.msra.mxu0 0.0
    %2468 = vmatpush.msra.mxu0 0.0
    %2469 = vmatpush.msra.mxu0 0.0
    %2470 = vmatpush.msra.mxu0 0.0
    %2471 = vmatpush.msra.mxu0 %v1476
    %2472 = vmatpush.msra.mxu0 %v1460
    %2473 = vmatpush.msra.mxu0 %v1444
    %2474 = vmatpush.msra.mxu0 %v1428
    %2475 = vmatmul.f32.gmra.mxu0 %v2177
    %v2476 = vpop.f32.mrf.mxu0
    %v2477 = vadd.f32 0.0, %v2476
    %2478 = vdwg.mxu0
    %2479 = vmatpush.msra.mxu0 0.0
    %2480 = vmatpush.msra.mxu0 0.0
    %2481 = vmatpush.msra.mxu0 0.0
    %2482 = vmatpush.msra.mxu0 0.0
    %2483 = vmatpush.msra.mxu0 0.0
    %2484 = vmatpush.msra.mxu0 0.0
    %2485 = vmatpush.msra.mxu0 0.0
    %2486 = vmatpush.msra.mxu0 0.0
    %2487 = vmatpush.msra.mxu0 0.0
    %2488 = vmatpush.msra.mxu0 0.0
    %2489 = vmatpush.msra.mxu0 0.0
    %2490 = vmatpush.msra.mxu0 0.0
    %2491 = vmatpush.msra.mxu0 %v1477
    %2492 = vmatpush.msra.mxu0 %v1461
    %2493 = vmatpush.msra.mxu0 %v1445
    %2494 = vmatpush.msra.mxu0 %v1429
    %2495 = vmatmul.f32.gmra.mxu0 %v2177
    %v2496 = vpop.f32.mrf.mxu0
    %v2497 = vadd.f32 0.0, %v2496
    %2498 = vdwg.mxu0
    %v2500 = vsel %vm809, %v2174, 0
    %2502 = vmatpush.msra.mxu0 0.0
    %2503 = vmatpush.msra.mxu0 0.0
    %2504 = vmatpush.msra.mxu0 0.0
    %2505 = vmatpush.msra.mxu0 0.0
    %2506 = vmatpush.msra.mxu0 0.0
    %2507 = vmatpush.msra.mxu0 0.0
    %2508 = vmatpush.msra.mxu0 0.0
    %2509 = vmatpush.msra.mxu0 0.0
    %2510 = vmatpush.msra.mxu0 0.0
    %2511 = vmatpush.msra.mxu0 0.0
    %2512 = vmatpush.msra.mxu0 0.0
    %2513 = vmatpush.msra.mxu0 0.0
    %2514 = vmatpush.msra.mxu0 0.0
    %2515 = vmatpush.msra.mxu0 0.0
    %2516 = vmatpush.msra.mxu0 0.0
    %2517 = vmatpush.msra.mxu0 %v404
    %2518 = vmatmul.f32.gmra.mxu0 %v2500
    %v2519 = vpop.f32.mrf.mxu0
    %v2520 = vadd.f32 %v2197, %v2519
    %2521 = vdwg.mxu0
    %2522 = vmatpush.msra.mxu0 0.0
    %2523 = vmatpush.msra.mxu0 0.0
    %2524 = vmatpush.msra.mxu0 0.0
    %2525 = vmatpush.msra.mxu0 0.0
    %2526 = vmatpush.msra.mxu0 0.0
    %2527 = vmatpush.msra.mxu0 0.0
    %2528 = vmatpush.msra.mxu0 0.0
    %2529 = vmatpush.msra.mxu0 0.0
    %2530 = vmatpush.msra.mxu0 0.0
    %2531 = vmatpush.msra.mxu0 0.0
    %2532 = vmatpush.msra.mxu0 0.0
    %2533 = vmatpush.msra.mxu0 0.0
    %2534 = vmatpush.msra.mxu0 0.0
    %2535 = vmatpush.msra.mxu0 0.0
    %2536 = vmatpush.msra.mxu0 0.0
    %2537 = vmatpush.msra.mxu0 %v429
    %2538 = vmatmul.f32.gmra.mxu0 %v2500
    %v2539 = vpop.f32.mrf.mxu0
    %v2540 = vadd.f32 %v2217, %v2539
    %2541 = vdwg.mxu0
    %2542 = vmatpush.msra.mxu0 0.0
    %2543 = vmatpush.msra.mxu0 0.0
    %2544 = vmatpush.msra.mxu0 0.0
    %2545 = vmatpush.msra.mxu0 0.0
    %2546 = vmatpush.msra.mxu0 0.0
    %2547 = vmatpush.msra.mxu0 0.0
    %2548 = vmatpush.msra.mxu0 0.0
    %2549 = vmatpush.msra.mxu0 0.0
    %2550 = vmatpush.msra.mxu0 0.0
    %2551 = vmatpush.msra.mxu0 0.0
    %2552 = vmatpush.msra.mxu0 0.0
    %2553 = vmatpush.msra.mxu0 0.0
    %2554 = vmatpush.msra.mxu0 0.0
    %2555 = vmatpush.msra.mxu0 0.0
    %2556 = vmatpush.msra.mxu0 0.0
    %2557 = vmatpush.msra.mxu0 %v454
    %2558 = vmatmul.f32.gmra.mxu0 %v2500
    %v2559 = vpop.f32.mrf.mxu0
    %v2560 = vadd.f32 %v2237, %v2559
    %2561 = vdwg.mxu0
    %2562 = vmatpush.msra.mxu0 0.0
    %2563 = vmatpush.msra.mxu0 0.0
    %2564 = vmatpush.msra.mxu0 0.0
    %2565 = vmatpush.msra.mxu0 0.0
    %2566 = vmatpush.msra.mxu0 0.0
    %2567 = vmatpush.msra.mxu0 0.0
    %2568 = vmatpush.msra.mxu0 0.0
    %2569 = vmatpush.msra.mxu0 0.0
    %2570 = vmatpush.msra.mxu0 0.0
    %2571 = vmatpush.msra.mxu0 0.0
    %2572 = vmatpush.msra.mxu0 0.0
    %2573 = vmatpush.msra.mxu0 0.0
    %2574 = vmatpush.msra.mxu0 0.0
    %2575 = vmatpush.msra.mxu0 0.0
    %2576 = vmatpush.msra.mxu0 0.0
    %2577 = vmatpush.msra.mxu0 %v479
    %2578 = vmatmul.f32.gmra.mxu0 %v2500
    %v2579 = vpop.f32.mrf.mxu0
    %v2580 = vadd.f32 %v2257, %v2579
    %2581 = vdwg.mxu0
    %2582 = vmatpush.msra.mxu0 0.0
    %2583 = vmatpush.msra.mxu0 0.0
    %2584 = vmatpush.msra.mxu0 0.0
    %2585 = vmatpush.msra.mxu0 0.0
    %2586 = vmatpush.msra.mxu0 0.0
    %2587 = vmatpush.msra.mxu0 0.0
    %2588 = vmatpush.msra.mxu0 0.0
    %2589 = vmatpush.msra.mxu0 0.0
    %2590 = vmatpush.msra.mxu0 0.0
    %2591 = vmatpush.msra.mxu0 0.0
    %2592 = vmatpush.msra.mxu0 0.0
    %2593 = vmatpush.msra.mxu0 0.0
    %2594 = vmatpush.msra.mxu0 0.0
    %2595 = vmatpush.msra.mxu0 0.0
    %2596 = vmatpush.msra.mxu0 0.0
    %2597 = vmatpush.msra.mxu0 %v504
    %2598 = vmatmul.f32.gmra.mxu0 %v2500
    %v2599 = vpop.f32.mrf.mxu0
    %v2600 = vadd.f32 %v2277, %v2599
    %2601 = vdwg.mxu0
    %2602 = vmatpush.msra.mxu0 0.0
    %2603 = vmatpush.msra.mxu0 0.0
    %2604 = vmatpush.msra.mxu0 0.0
    %2605 = vmatpush.msra.mxu0 0.0
    %2606 = vmatpush.msra.mxu0 0.0
    %2607 = vmatpush.msra.mxu0 0.0
    %2608 = vmatpush.msra.mxu0 0.0
    %2609 = vmatpush.msra.mxu0 0.0
    %2610 = vmatpush.msra.mxu0 0.0
    %2611 = vmatpush.msra.mxu0 0.0
    %2612 = vmatpush.msra.mxu0 0.0
    %2613 = vmatpush.msra.mxu0 0.0
    %2614 = vmatpush.msra.mxu0 0.0
    %2615 = vmatpush.msra.mxu0 0.0
    %2616 = vmatpush.msra.mxu0 0.0
    %2617 = vmatpush.msra.mxu0 %v529
    %2618 = vmatmul.f32.gmra.mxu0 %v2500
    %v2619 = vpop.f32.mrf.mxu0
    %v2620 = vadd.f32 %v2297, %v2619
    %2621 = vdwg.mxu0
    %2622 = vmatpush.msra.mxu0 0.0
    %2623 = vmatpush.msra.mxu0 0.0
    %2624 = vmatpush.msra.mxu0 0.0
    %2625 = vmatpush.msra.mxu0 0.0
    %2626 = vmatpush.msra.mxu0 0.0
    %2627 = vmatpush.msra.mxu0 0.0
    %2628 = vmatpush.msra.mxu0 0.0
    %2629 = vmatpush.msra.mxu0 0.0
    %2630 = vmatpush.msra.mxu0 0.0
    %2631 = vmatpush.msra.mxu0 0.0
    %2632 = vmatpush.msra.mxu0 0.0
    %2633 = vmatpush.msra.mxu0 0.0
    %2634 = vmatpush.msra.mxu0 0.0
    %2635 = vmatpush.msra.mxu0 0.0
    %2636 = vmatpush.msra.mxu0 0.0
    %2637 = vmatpush.msra.mxu0 %v554
    %2638 = vmatmul.f32.gmra.mxu0 %v2500
    %v2639 = vpop.f32.mrf.mxu0
    %v2640 = vadd.f32 %v2317, %v2639
    %2641 = vdwg.mxu0
    %2642 = vmatpush.msra.mxu0 0.0
    %2643 = vmatpush.msra.mxu0 0.0
    %2644 = vmatpush.msra.mxu0 0.0
    %2645 = vmatpush.msra.mxu0 0.0
    %2646 = vmatpush.msra.mxu0 0.0
    %2647 = vmatpush.msra.mxu0 0.0
    %2648 = vmatpush.msra.mxu0 0.0
    %2649 = vmatpush.msra.mxu0 0.0
    %2650 = vmatpush.msra.mxu0 0.0
    %2651 = vmatpush.msra.mxu0 0.0
    %2652 = vmatpush.msra.mxu0 0.0
    %2653 = vmatpush.msra.mxu0 0.0
    %2654 = vmatpush.msra.mxu0 0.0
    %2655 = vmatpush.msra.mxu0 0.0
    %2656 = vmatpush.msra.mxu0 0.0
    %2657 = vmatpush.msra.mxu0 %v579
    %2658 = vmatmul.f32.gmra.mxu0 %v2500
    %v2659 = vpop.f32.mrf.mxu0
    %v2660 = vadd.f32 %v2337, %v2659
    %2661 = vdwg.mxu0
    %2662 = vmatpush.msra.mxu0 0.0
    %2663 = vmatpush.msra.mxu0 0.0
    %2664 = vmatpush.msra.mxu0 0.0
    %2665 = vmatpush.msra.mxu0 0.0
    %2666 = vmatpush.msra.mxu0 0.0
    %2667 = vmatpush.msra.mxu0 0.0
    %2668 = vmatpush.msra.mxu0 0.0
    %2669 = vmatpush.msra.mxu0 0.0
    %2670 = vmatpush.msra.mxu0 0.0
    %2671 = vmatpush.msra.mxu0 0.0
    %2672 = vmatpush.msra.mxu0 0.0
    %2673 = vmatpush.msra.mxu0 0.0
    %2674 = vmatpush.msra.mxu0 0.0
    %2675 = vmatpush.msra.mxu0 0.0
    %2676 = vmatpush.msra.mxu0 0.0
    %2677 = vmatpush.msra.mxu0 %v604
    %2678 = vmatmul.f32.gmra.mxu0 %v2500
    %v2679 = vpop.f32.mrf.mxu0
    %v2680 = vadd.f32 %v2357, %v2679
    %2681 = vdwg.mxu0
    %2682 = vmatpush.msra.mxu0 0.0
    %2683 = vmatpush.msra.mxu0 0.0
    %2684 = vmatpush.msra.mxu0 0.0
    %2685 = vmatpush.msra.mxu0 0.0
    %2686 = vmatpush.msra.mxu0 0.0
    %2687 = vmatpush.msra.mxu0 0.0
    %2688 = vmatpush.msra.mxu0 0.0
    %2689 = vmatpush.msra.mxu0 0.0
    %2690 = vmatpush.msra.mxu0 0.0
    %2691 = vmatpush.msra.mxu0 0.0
    %2692 = vmatpush.msra.mxu0 0.0
    %2693 = vmatpush.msra.mxu0 0.0
    %2694 = vmatpush.msra.mxu0 0.0
    %2695 = vmatpush.msra.mxu0 0.0
    %2696 = vmatpush.msra.mxu0 0.0
    %2697 = vmatpush.msra.mxu0 %v629
    %2698 = vmatmul.f32.gmra.mxu0 %v2500
    %v2699 = vpop.f32.mrf.mxu0
    %v2700 = vadd.f32 %v2377, %v2699
    %2701 = vdwg.mxu0
    %2702 = vmatpush.msra.mxu0 0.0
    %2703 = vmatpush.msra.mxu0 0.0
    %2704 = vmatpush.msra.mxu0 0.0
    %2705 = vmatpush.msra.mxu0 0.0
    %2706 = vmatpush.msra.mxu0 0.0
    %2707 = vmatpush.msra.mxu0 0.0
    %2708 = vmatpush.msra.mxu0 0.0
    %2709 = vmatpush.msra.mxu0 0.0
    %2710 = vmatpush.msra.mxu0 0.0
    %2711 = vmatpush.msra.mxu0 0.0
    %2712 = vmatpush.msra.mxu0 0.0
    %2713 = vmatpush.msra.mxu0 0.0
    %2714 = vmatpush.msra.mxu0 0.0
    %2715 = vmatpush.msra.mxu0 0.0
    %2716 = vmatpush.msra.mxu0 0.0
    %2717 = vmatpush.msra.mxu0 %v654
    %2718 = vmatmul.f32.gmra.mxu0 %v2500
    %v2719 = vpop.f32.mrf.mxu0
    %v2720 = vadd.f32 %v2397, %v2719
    %2721 = vdwg.mxu0
    %2722 = vmatpush.msra.mxu0 0.0
    %2723 = vmatpush.msra.mxu0 0.0
    %2724 = vmatpush.msra.mxu0 0.0
    %2725 = vmatpush.msra.mxu0 0.0
    %2726 = vmatpush.msra.mxu0 0.0
    %2727 = vmatpush.msra.mxu0 0.0
    %2728 = vmatpush.msra.mxu0 0.0
    %2729 = vmatpush.msra.mxu0 0.0
    %2730 = vmatpush.msra.mxu0 0.0
    %2731 = vmatpush.msra.mxu0 0.0
    %2732 = vmatpush.msra.mxu0 0.0
    %2733 = vmatpush.msra.mxu0 0.0
    %2734 = vmatpush.msra.mxu0 0.0
    %2735 = vmatpush.msra.mxu0 0.0
    %2736 = vmatpush.msra.mxu0 0.0
    %2737 = vmatpush.msra.mxu0 %v679
    %2738 = vmatmul.f32.gmra.mxu0 %v2500
    %v2739 = vpop.f32.mrf.mxu0
    %v2740 = vadd.f32 %v2417, %v2739
    %2741 = vdwg.mxu0
    %2742 = vmatpush.msra.mxu0 0.0
    %2743 = vmatpush.msra.mxu0 0.0
    %2744 = vmatpush.msra.mxu0 0.0
    %2745 = vmatpush.msra.mxu0 0.0
    %2746 = vmatpush.msra.mxu0 0.0
    %2747 = vmatpush.msra.mxu0 0.0
    %2748 = vmatpush.msra.mxu0 0.0
    %2749 = vmatpush.msra.mxu0 0.0
    %2750 = vmatpush.msra.mxu0 0.0
    %2751 = vmatpush.msra.mxu0 0.0
    %2752 = vmatpush.msra.mxu0 0.0
    %2753 = vmatpush.msra.mxu0 0.0
    %2754 = vmatpush.msra.mxu0 0.0
    %2755 = vmatpush.msra.mxu0 0.0
    %2756 = vmatpush.msra.mxu0 0.0
    %2757 = vmatpush.msra.mxu0 %v704
    %2758 = vmatmul.f32.gmra.mxu0 %v2500
    %v2759 = vpop.f32.mrf.mxu0
    %v2760 = vadd.f32 %v2437, %v2759
    %2761 = vdwg.mxu0
    %2762 = vmatpush.msra.mxu0 0.0
    %2763 = vmatpush.msra.mxu0 0.0
    %2764 = vmatpush.msra.mxu0 0.0
    %2765 = vmatpush.msra.mxu0 0.0
    %2766 = vmatpush.msra.mxu0 0.0
    %2767 = vmatpush.msra.mxu0 0.0
    %2768 = vmatpush.msra.mxu0 0.0
    %2769 = vmatpush.msra.mxu0 0.0
    %2770 = vmatpush.msra.mxu0 0.0
    %2771 = vmatpush.msra.mxu0 0.0
    %2772 = vmatpush.msra.mxu0 0.0
    %2773 = vmatpush.msra.mxu0 0.0
    %2774 = vmatpush.msra.mxu0 0.0
    %2775 = vmatpush.msra.mxu0 0.0
    %2776 = vmatpush.msra.mxu0 0.0
    %2777 = vmatpush.msra.mxu0 %v729
    %2778 = vmatmul.f32.gmra.mxu0 %v2500
    %v2779 = vpop.f32.mrf.mxu0
    %v2780 = vadd.f32 %v2457, %v2779
    %2781 = vdwg.mxu0
    %2782 = vmatpush.msra.mxu0 0.0
    %2783 = vmatpush.msra.mxu0 0.0
    %2784 = vmatpush.msra.mxu0 0.0
    %2785 = vmatpush.msra.mxu0 0.0
    %2786 = vmatpush.msra.mxu0 0.0
    %2787 = vmatpush.msra.mxu0 0.0
    %2788 = vmatpush.msra.mxu0 0.0
    %2789 = vmatpush.msra.mxu0 0.0
    %2790 = vmatpush.msra.mxu0 0.0
    %2791 = vmatpush.msra.mxu0 0.0
    %2792 = vmatpush.msra.mxu0 0.0
    %2793 = vmatpush.msra.mxu0 0.0
    %2794 = vmatpush.msra.mxu0 0.0
    %2795 = vmatpush.msra.mxu0 0.0
    %2796 = vmatpush.msra.mxu0 0.0
    %2797 = vmatpush.msra.mxu0 %v754
    %2798 = vmatmul.f32.gmra.mxu0 %v2500
    %v2799 = vpop.f32.mrf.mxu0
    %v2800 = vadd.f32 %v2477, %v2799
    %2801 = vdwg.mxu0
    %2802 = vmatpush.msra.mxu0 0.0
    %2803 = vmatpush.msra.mxu0 0.0
    %2804 = vmatpush.msra.mxu0 0.0
    %2805 = vmatpush.msra.mxu0 0.0
    %2806 = vmatpush.msra.mxu0 0.0
    %2807 = vmatpush.msra.mxu0 0.0
    %2808 = vmatpush.msra.mxu0 0.0
    %2809 = vmatpush.msra.mxu0 0.0
    %2810 = vmatpush.msra.mxu0 0.0
    %2811 = vmatpush.msra.mxu0 0.0
    %2812 = vmatpush.msra.mxu0 0.0
    %2813 = vmatpush.msra.mxu0 0.0
    %2814 = vmatpush.msra.mxu0 0.0
    %2815 = vmatpush.msra.mxu0 0.0
    %2816 = vmatpush.msra.mxu0 0.0
    %2817 = vmatpush.msra.mxu0 %v779
    %2818 = vmatmul.f32.gmra.mxu0 %v2500
    %v2819 = vpop.f32.mrf.mxu0
    %v2820 = vadd.f32 %v2497, %v2819
    %2821 = vdwg.mxu0
    %v2822 = vld [vmem:[%s15] sm:$0x1]
    %v2824 = vsel %vm209, %v2822, 0
    %2826 = vmatpush.msra.mxu0 0.0
    %2827 = vmatpush.msra.mxu0 0.0
    %2828 = vmatpush.msra.mxu0 0.0
    %2829 = vmatpush.msra.mxu0 0.0
    %2830 = vmatpush.msra.mxu0 0.0
    %2831 = vmatpush.msra.mxu0 0.0
    %2832 = vmatpush.msra.mxu0 0.0
    %2833 = vmatpush.msra.mxu0 0.0
    %2834 = vmatpush.msra.mxu0 0.0
    %2835 = vmatpush.msra.mxu0 0.0
    %2836 = vmatpush.msra.mxu0 0.0
    %2837 = vmatpush.msra.mxu0 0.0
    %2838 = vmatpush.msra.mxu0 %v2158
    %2839 = vmatpush.msra.mxu0 %v2142
    %2840 = vmatpush.msra.mxu0 %v2126
    %2841 = vmatpush.msra.mxu0 %v2110
    %2842 = vmatmul.f32.gmra.mxu0 %v2824
    %v2843 = vpop.f32.mrf.mxu0
    %v2844 = vadd.f32 0.0, %v2843
    %2845 = vdwg.mxu0
    %2846 = vmatpush.msra.mxu0 0.0
    %2847 = vmatpush.msra.mxu0 0.0
    %2848 = vmatpush.msra.mxu0 0.0
    %2849 = vmatpush.msra.mxu0 0.0
    %2850 = vmatpush.msra.mxu0 0.0
    %2851 = vmatpush.msra.mxu0 0.0
    %2852 = vmatpush.msra.mxu0 0.0
    %2853 = vmatpush.msra.mxu0 0.0
    %2854 = vmatpush.msra.mxu0 0.0
    %2855 = vmatpush.msra.mxu0 0.0
    %2856 = vmatpush.msra.mxu0 0.0
    %2857 = vmatpush.msra.mxu0 0.0
    %2858 = vmatpush.msra.mxu0 %v2159
    %2859 = vmatpush.msra.mxu0 %v2143
    %2860 = vmatpush.msra.mxu0 %v2127
    %2861 = vmatpush.msra.mxu0 %v2111
    %2862 = vmatmul.f32.gmra.mxu0 %v2824
    %v2863 = vpop.f32.mrf.mxu0
    %v2864 = vadd.f32 0.0, %v2863
    %2865 = vdwg.mxu0
    %2866 = vmatpush.msra.mxu0 0.0
    %2867 = vmatpush.msra.mxu0 0.0
    %2868 = vmatpush.msra.mxu0 0.0
    %2869 = vmatpush.msra.mxu0 0.0
    %2870 = vmatpush.msra.mxu0 0.0
    %2871 = vmatpush.msra.mxu0 0.0
    %2872 = vmatpush.msra.mxu0 0.0
    %2873 = vmatpush.msra.mxu0 0.0
    %2874 = vmatpush.msra.mxu0 0.0
    %2875 = vmatpush.msra.mxu0 0.0
    %2876 = vmatpush.msra.mxu0 0.0
    %2877 = vmatpush.msra.mxu0 0.0
    %2878 = vmatpush.msra.mxu0 %v2160
    %2879 = vmatpush.msra.mxu0 %v2144
    %2880 = vmatpush.msra.mxu0 %v2128
    %2881 = vmatpush.msra.mxu0 %v2112
    %2882 = vmatmul.f32.gmra.mxu0 %v2824
    %v2883 = vpop.f32.mrf.mxu0
    %v2884 = vadd.f32 0.0, %v2883
    %2885 = vdwg.mxu0
    %2886 = vmatpush.msra.mxu0 0.0
    %2887 = vmatpush.msra.mxu0 0.0
    %2888 = vmatpush.msra.mxu0 0.0
    %2889 = vmatpush.msra.mxu0 0.0
    %2890 = vmatpush.msra.mxu0 0.0
    %2891 = vmatpush.msra.mxu0 0.0
    %2892 = vmatpush.msra.mxu0 0.0
    %2893 = vmatpush.msra.mxu0 0.0
    %2894 = vmatpush.msra.mxu0 0.0
    %2895 = vmatpush.msra.mxu0 0.0
    %2896 = vmatpush.msra.mxu0 0.0
    %2897 = vmatpush.msra.mxu0 0.0
    %2898 = vmatpush.msra.mxu0 %v2161
    %2899 = vmatpush.msra.mxu0 %v2145
    %2900 = vmatpush.msra.mxu0 %v2129
    %2901 = vmatpush.msra.mxu0 %v2113
    %2902 = vmatmul.f32.gmra.mxu0 %v2824
    %v2903 = vpop.f32.mrf.mxu0
    %v2904 = vadd.f32 0.0, %v2903
    %2905 = vdwg.mxu0
    %2906 = vmatpush.msra.mxu0 0.0
    %2907 = vmatpush.msra.mxu0 0.0
    %2908 = vmatpush.msra.mxu0 0.0
    %2909 = vmatpush.msra.mxu0 0.0
    %2910 = vmatpush.msra.mxu0 0.0
    %2911 = vmatpush.msra.mxu0 0.0
    %2912 = vmatpush.msra.mxu0 0.0
    %2913 = vmatpush.msra.mxu0 0.0
    %2914 = vmatpush.msra.mxu0 0.0
    %2915 = vmatpush.msra.mxu0 0.0
    %2916 = vmatpush.msra.mxu0 0.0
    %2917 = vmatpush.msra.mxu0 0.0
    %2918 = vmatpush.msra.mxu0 %v2162
    %2919 = vmatpush.msra.mxu0 %v2146
    %2920 = vmatpush.msra.mxu0 %v2130
    %2921 = vmatpush.msra.mxu0 %v2114
    %2922 = vmatmul.f32.gmra.mxu0 %v2824
    %v2923 = vpop.f32.mrf.mxu0
    %v2924 = vadd.f32 0.0, %v2923
    %2925 = vdwg.mxu0
    %2926 = vmatpush.msra.mxu0 0.0
    %2927 = vmatpush.msra.mxu0 0.0
    %2928 = vmatpush.msra.mxu0 0.0
    %2929 = vmatpush.msra.mxu0 0.0
    %2930 = vmatpush.msra.mxu0 0.0
    %2931 = vmatpush.msra.mxu0 0.0
    %2932 = vmatpush.msra.mxu0 0.0
    %2933 = vmatpush.msra.mxu0 0.0
    %2934 = vmatpush.msra.mxu0 0.0
    %2935 = vmatpush.msra.mxu0 0.0
    %2936 = vmatpush.msra.mxu0 0.0
    %2937 = vmatpush.msra.mxu0 0.0
    %2938 = vmatpush.msra.mxu0 %v2163
    %2939 = vmatpush.msra.mxu0 %v2147
    %2940 = vmatpush.msra.mxu0 %v2131
    %2941 = vmatpush.msra.mxu0 %v2115
    %2942 = vmatmul.f32.gmra.mxu0 %v2824
    %v2943 = vpop.f32.mrf.mxu0
    %v2944 = vadd.f32 0.0, %v2943
    %2945 = vdwg.mxu0
    %2946 = vmatpush.msra.mxu0 0.0
    %2947 = vmatpush.msra.mxu0 0.0
    %2948 = vmatpush.msra.mxu0 0.0
    %2949 = vmatpush.msra.mxu0 0.0
    %2950 = vmatpush.msra.mxu0 0.0
    %2951 = vmatpush.msra.mxu0 0.0
    %2952 = vmatpush.msra.mxu0 0.0
    %2953 = vmatpush.msra.mxu0 0.0
    %2954 = vmatpush.msra.mxu0 0.0
    %2955 = vmatpush.msra.mxu0 0.0
    %2956 = vmatpush.msra.mxu0 0.0
    %2957 = vmatpush.msra.mxu0 0.0
    %2958 = vmatpush.msra.mxu0 %v2164
    %2959 = vmatpush.msra.mxu0 %v2148
    %2960 = vmatpush.msra.mxu0 %v2132
    %2961 = vmatpush.msra.mxu0 %v2116
    %2962 = vmatmul.f32.gmra.mxu0 %v2824
    %v2963 = vpop.f32.mrf.mxu0
    %v2964 = vadd.f32 0.0, %v2963
    %2965 = vdwg.mxu0
    %2966 = vmatpush.msra.mxu0 0.0
    %2967 = vmatpush.msra.mxu0 0.0
    %2968 = vmatpush.msra.mxu0 0.0
    %2969 = vmatpush.msra.mxu0 0.0
    %2970 = vmatpush.msra.mxu0 0.0
    %2971 = vmatpush.msra.mxu0 0.0
    %2972 = vmatpush.msra.mxu0 0.0
    %2973 = vmatpush.msra.mxu0 0.0
    %2974 = vmatpush.msra.mxu0 0.0
    %2975 = vmatpush.msra.mxu0 0.0
    %2976 = vmatpush.msra.mxu0 0.0
    %2977 = vmatpush.msra.mxu0 0.0
    %2978 = vmatpush.msra.mxu0 %v2165
    %2979 = vmatpush.msra.mxu0 %v2149
    %2980 = vmatpush.msra.mxu0 %v2133
    %2981 = vmatpush.msra.mxu0 %v2117
    %2982 = vmatmul.f32.gmra.mxu0 %v2824
    %v2983 = vpop.f32.mrf.mxu0
    %v2984 = vadd.f32 0.0, %v2983
    %2985 = vdwg.mxu0
    %2986 = vmatpush.msra.mxu0 0.0
    %2987 = vmatpush.msra.mxu0 0.0
    %2988 = vmatpush.msra.mxu0 0.0
    %2989 = vmatpush.msra.mxu0 0.0
    %2990 = vmatpush.msra.mxu0 0.0
    %2991 = vmatpush.msra.mxu0 0.0
    %2992 = vmatpush.msra.mxu0 0.0
    %2993 = vmatpush.msra.mxu0 0.0
    %2994 = vmatpush.msra.mxu0 0.0
    %2995 = vmatpush.msra.mxu0 0.0
    %2996 = vmatpush.msra.mxu0 0.0
    %2997 = vmatpush.msra.mxu0 0.0
    %2998 = vmatpush.msra.mxu0 %v2166
    %2999 = vmatpush.msra.mxu0 %v2150
    %3000 = vmatpush.msra.mxu0 %v2134
    %3001 = vmatpush.msra.mxu0 %v2118
    %3002 = vmatmul.f32.gmra.mxu0 %v2824
    %v3003 = vpop.f32.mrf.mxu0
    %v3004 = vadd.f32 0.0, %v3003
    %3005 = vdwg.mxu0
    %3006 = vmatpush.msra.mxu0 0.0
    %3007 = vmatpush.msra.mxu0 0.0
    %3008 = vmatpush.msra.mxu0 0.0
    %3009 = vmatpush.msra.mxu0 0.0
    %3010 = vmatpush.msra.mxu0 0.0
    %3011 = vmatpush.msra.mxu0 0.0
    %3012 = vmatpush.msra.mxu0 0.0
    %3013 = vmatpush.msra.mxu0 0.0
    %3014 = vmatpush.msra.mxu0 0.0
    %3015 = vmatpush.msra.mxu0 0.0
    %3016 = vmatpush.msra.mxu0 0.0
    %3017 = vmatpush.msra.mxu0 0.0
    %3018 = vmatpush.msra.mxu0 %v2167
    %3019 = vmatpush.msra.mxu0 %v2151
    %3020 = vmatpush.msra.mxu0 %v2135
    %3021 = vmatpush.msra.mxu0 %v2119
    %3022 = vmatmul.f32.gmra.mxu0 %v2824
    %v3023 = vpop.f32.mrf.mxu0
    %v3024 = vadd.f32 0.0, %v3023
    %3025 = vdwg.mxu0
    %3026 = vmatpush.msra.mxu0 0.0
    %3027 = vmatpush.msra.mxu0 0.0
    %3028 = vmatpush.msra.mxu0 0.0
    %3029 = vmatpush.msra.mxu0 0.0
    %3030 = vmatpush.msra.mxu0 0.0
    %3031 = vmatpush.msra.mxu0 0.0
    %3032 = vmatpush.msra.mxu0 0.0
    %3033 = vmatpush.msra.mxu0 0.0
    %3034 = vmatpush.msra.mxu0 0.0
    %3035 = vmatpush.msra.mxu0 0.0
    %3036 = vmatpush.msra.mxu0 0.0
    %3037 = vmatpush.msra.mxu0 0.0
    %3038 = vmatpush.msra.mxu0 %v2168
    %3039 = vmatpush.msra.mxu0 %v2152
    %3040 = vmatpush.msra.mxu0 %v2136
    %3041 = vmatpush.msra.mxu0 %v2120
    %3042 = vmatmul.f32.gmra.mxu0 %v2824
    %v3043 = vpop.f32.mrf.mxu0
    %v3044 = vadd.f32 0.0, %v3043
    %3045 = vdwg.mxu0
    %3046 = vmatpush.msra.mxu0 0.0
    %3047 = vmatpush.msra.mxu0 0.0
    %3048 = vmatpush.msra.mxu0 0.0
    %3049 = vmatpush.msra.mxu0 0.0
    %3050 = vmatpush.msra.mxu0 0.0
    %3051 = vmatpush.msra.mxu0 0.0
    %3052 = vmatpush.msra.mxu0 0.0
    %3053 = vmatpush.msra.mxu0 0.0
    %3054 = vmatpush.msra.mxu0 0.0
    %3055 = vmatpush.msra.mxu0 0.0
    %3056 = vmatpush.msra.mxu0 0.0
    %3057 = vmatpush.msra.mxu0 0.0
    %3058 = vmatpush.msra.mxu0 %v2169
    %3059 = vmatpush.msra.mxu0 %v2153
    %3060 = vmatpush.msra.mxu0 %v2137
    %3061 = vmatpush.msra.mxu0 %v2121
    %3062 = vmatmul.f32.gmra.mxu0 %v2824
    %v3063 = vpop.f32.mrf.mxu0
    %v3064 = vadd.f32 0.0, %v3063
    %3065 = vdwg.mxu0
    %3066 = vmatpush.msra.mxu0 0.0
    %3067 = vmatpush.msra.mxu0 0.0
    %3068 = vmatpush.msra.mxu0 0.0
    %3069 = vmatpush.msra.mxu0 0.0
    %3070 = vmatpush.msra.mxu0 0.0
    %3071 = vmatpush.msra.mxu0 0.0
    %3072 = vmatpush.msra.mxu0 0.0
    %3073 = vmatpush.msra.mxu0 0.0
    %3074 = vmatpush.msra.mxu0 0.0
    %3075 = vmatpush.msra.mxu0 0.0
    %3076 = vmatpush.msra.mxu0 0.0
    %3077 = vmatpush.msra.mxu0 0.0
    %3078 = vmatpush.msra.mxu0 %v2170
    %3079 = vmatpush.msra.mxu0 %v2154
    %3080 = vmatpush.msra.mxu0 %v2138
    %3081 = vmatpush.msra.mxu0 %v2122
    %3082 = vmatmul.f32.gmra.mxu0 %v2824
    %v3083 = vpop.f32.mrf.mxu0
    %v3084 = vadd.f32 0.0, %v3083
    %3085 = vdwg.mxu0
    %3086 = vmatpush.msra.mxu0 0.0
    %3087 = vmatpush.msra.mxu0 0.0
    %3088 = vmatpush.msra.mxu0 0.0
    %3089 = vmatpush.msra.mxu0 0.0
    %3090 = vmatpush.msra.mxu0 0.0
    %3091 = vmatpush.msra.mxu0 0.0
    %3092 = vmatpush.msra.mxu0 0.0
    %3093 = vmatpush.msra.mxu0 0.0
    %3094 = vmatpush.msra.mxu0 0.0
    %3095 = vmatpush.msra.mxu0 0.0
    %3096 = vmatpush.msra.mxu0 0.0
    %3097 = vmatpush.msra.mxu0 0.0
    %3098 = vmatpush.msra.mxu0 %v2171
    %3099 = vmatpush.msra.mxu0 %v2155
    %3100 = vmatpush.msra.mxu0 %v2139
    %3101 = vmatpush.msra.mxu0 %v2123
    %3102 = vmatmul.f32.gmra.mxu0 %v2824
    %v3103 = vpop.f32.mrf.mxu0
    %v3104 = vadd.f32 0.0, %v3103
    %3105 = vdwg.mxu0
    %3106 = vmatpush.msra.mxu0 0.0
    %3107 = vmatpush.msra.mxu0 0.0
    %3108 = vmatpush.msra.mxu0 0.0
    %3109 = vmatpush.msra.mxu0 0.0
    %3110 = vmatpush.msra.mxu0 0.0
    %3111 = vmatpush.msra.mxu0 0.0
    %3112 = vmatpush.msra.mxu0 0.0
    %3113 = vmatpush.msra.mxu0 0.0
    %3114 = vmatpush.msra.mxu0 0.0
    %3115 = vmatpush.msra.mxu0 0.0
    %3116 = vmatpush.msra.mxu0 0.0
    %3117 = vmatpush.msra.mxu0 0.0
    %3118 = vmatpush.msra.mxu0 %v2172
    %3119 = vmatpush.msra.mxu0 %v2156
    %3120 = vmatpush.msra.mxu0 %v2140
    %3121 = vmatpush.msra.mxu0 %v2124
    %3122 = vmatmul.f32.gmra.mxu0 %v2824
    %v3123 = vpop.f32.mrf.mxu0
    %v3124 = vadd.f32 0.0, %v3123
    %3125 = vdwg.mxu0
    %3126 = vmatpush.msra.mxu0 0.0
    %3127 = vmatpush.msra.mxu0 0.0
    %3128 = vmatpush.msra.mxu0 0.0
    %3129 = vmatpush.msra.mxu0 0.0
    %3130 = vmatpush.msra.mxu0 0.0
    %3131 = vmatpush.msra.mxu0 0.0
    %3132 = vmatpush.msra.mxu0 0.0
    %3133 = vmatpush.msra.mxu0 0.0
    %3134 = vmatpush.msra.mxu0 0.0
    %3135 = vmatpush.msra.mxu0 0.0
    %3136 = vmatpush.msra.mxu0 0.0
    %3137 = vmatpush.msra.mxu0 0.0
    %3138 = vmatpush.msra.mxu0 %v2173
    %3139 = vmatpush.msra.mxu0 %v2157
    %3140 = vmatpush.msra.mxu0 %v2141
    %3141 = vmatpush.msra.mxu0 %v2125
    %3142 = vmatmul.f32.gmra.mxu0 %v2824
    %v3143 = vpop.f32.mrf.mxu0
    %v3144 = vadd.f32 0.0, %v3143
    %3145 = vdwg.mxu0
    %v3146 = vadd.f32 %v2520, %v2844
    %v3147 = vadd.f32 %v2540, %v2864
    %v3148 = vadd.f32 %v2560, %v2884
    %v3149 = vadd.f32 %v2580, %v2904
    %v3150 = vadd.f32 %v2600, %v2924
    %v3151 = vadd.f32 %v2620, %v2944
    %v3152 = vadd.f32 %v2640, %v2964
    %v3153 = vadd.f32 %v2660, %v2984
    %v3154 = vadd.f32 %v2680, %v3004
    %v3155 = vadd.f32 %v2700, %v3024
    %v3156 = vadd.f32 %v2720, %v3044
    %v3157 = vadd.f32 %v2740, %v3064
    %v3158 = vadd.f32 %v2760, %v3084
    %v3159 = vadd.f32 %v2780, %v3104
    %v3160 = vadd.f32 %v2800, %v3124
    %v3161 = vadd.f32 %v2820, %v3144
    %v3162 = vld [vmem:[#allocation2] sm:$0x1]
    %3164 = vset.pattern.permute.xlu0 0
    %3165 = vperm.xlu0 %3164, %v3162
    %v3166 = vpop.permute.xlu0 %3165
    %v3168 = vperm.slane %v3166, 0
    %v3169 = vadd.f32 %v3146, %v3168
    %v3170 = vadd.f32 %v3147, %v3168
    %v3171 = vadd.f32 %v3148, %v3168
    %v3172 = vadd.f32 %v3149, %v3168
    %v3173 = vadd.f32 %v3150, %v3168
    %v3174 = vadd.f32 %v3151, %v3168
    %v3175 = vadd.f32 %v3152, %v3168
    %v3176 = vadd.f32 %v3153, %v3168
    %v3177 = vadd.f32 %v3154, %v3168
    %v3178 = vadd.f32 %v3155, %v3168
    %v3179 = vadd.f32 %v3156, %v3168
    %v3180 = vadd.f32 %v3157, %v3168
    %v3181 = vadd.f32 %v3158, %v3168
    %v3182 = vadd.f32 %v3159, %v3168
    %v3183 = vadd.f32 %v3160, %v3168
    %v3184 = vadd.f32 %v3161, %v3168
    %v3201 = vrot.slane %v3170, 7
    %v3202 = vrot.slane %v3171, 6
    %v3203 = vrot.slane %v3172, 5
    %v3204 = vrot.slane %v3173, 4
    %v3205 = vrot.slane %v3174, 3
    %v3206 = vrot.slane %v3175, 2
    %v3207 = vrot.slane %v3176, 1
    %v3208 = vrot.slane %v3178, 7
    %v3209 = vrot.slane %v3179, 6
    %v3210 = vrot.slane %v3180, 5
    %v3211 = vrot.slane %v3181, 4
    %v3212 = vrot.slane %v3182, 3
    %v3213 = vrot.slane %v3183, 2
    %v3214 = vrot.slane %v3184, 1
    %vm3215 = vcmask 1040384
    %v3216 = vsel %vm3215, %v3169, %v3201
    %vm3217 = vcmask 1042434
    %v3218 = vsel %vm3217, %v3202, %v3203
    %vm3219 = vcmask 1041408
    %v3220 = vsel %vm3219, %v3216, %v3218
    %vm3221 = vcmask 1044484
    %v3222 = vsel %vm3221, %v3204, %v3205
    %vm3223 = vcmask 1046534
    %v3224 = vsel %vm3223, %v3206, %v3207
    %vm3225 = vcmask 1045508
    %v3226 = vsel %vm3225, %v3222, %v3224
    %vm3227 = vcmask 1043456
    %v3228 = vsel %vm3227, %v3220, %v3226
    %v3229 = vsel %vm3215, %v3177, %v3208
    %v3230 = vsel %vm3217, %v3209, %v3210
    %v3231 = vsel %vm3219, %v3229, %v3230
    %v3232 = vsel %vm3221, %v3211, %v3212
    %v3233 = vsel %vm3223, %v3213, %v3214
    %v3234 = vsel %vm3225, %v3232, %v3233
    %v3235 = vsel %vm3227, %v3231, %v3234
    %3238 = vst [vmem:[#allocation8] sm:$0xff] %v3228
    %3239 = vst [vmem:[#allocation8 + $0x8] sm:$0xff] %v3235
    // Predicated region
    $region78: #{tpu_custom_call.1} parent=1 // pred_check
      _
    $region79: #{tpu_custom_call.1} parent=1 // pred_check_branch
      %3241 = sbr.rel (0) target = $region81
    $region80: #{tpu_custom_call.1} parent=1 // pred_region
      %3243 = vsyncadd [#allocation5], 0
      %s3245 = sshll.u32 [#allocation8], 4
      %s3246 = int_to_ptr.vmem [resolvable:$true] %s3245
      %s3247 = sshll.u32 %s17, 4
      %s3248 = int_to_ptr.hbm [resolvable:$true] %s3247
      %3250 = dma.vmem_to_hbm [thread:$0]  %s3246, 256, %s3248, [#allocation5]
    $region81: #{tpu_custom_call.1} parent=1 // pred_fallthru
      _
    // Predicated region
    $region82: #{tpu_custom_call.1} parent=1 // pred_check
      _
    $region83: #{tpu_custom_call.1} parent=1 // pred_check_branch
      %3252 = sbr.rel (0) target = $region85
    $region84: #{tpu_custom_call.1} parent=1 // pred_region
      %3254 = dma.done [#allocation5], 256
    $region85: #{tpu_custom_call.1} parent=1 // pred_fallthru
      _
    %3255 = vsyncpa [#allocation4], 1
    %3256 = vsyncpa [#allocation7], 1
    %3257 = vsyncpa [#allocation5], 1

</llo_original>
